<compile_context>
chip_gen: v7x
topology: tpu7x:2x2x1
jax: 0.10.0
libtpu: 0.0.40
codegen_flags: <defaults>
</compile_context>

<pallas_src>
import numpy as np
import jax
import jax.numpy as jnp
from jax.experimental import pallas as pl
from jax.experimental.pallas import tpu as pltpu

LN_EPS = 1e-5
BN_EPS = 1e-5
VMEM_LIMIT = 32 * 1024 * 1024          # explicit scoped-VMEM budget (fits v5e/v6e/v7x)


def _sigmoid(x):
    return 1.0 / (1.0 + jnp.exp(-x))


def _softplus(x):
    # numerically stable softplus in f32 (exp/log on EUP)
    return jnp.maximum(x, 0.0) + jnp.log(1.0 + jnp.exp(-jnp.abs(x)))


def _layernorm(v, w, b):
    mu = jnp.mean(v, axis=-1, keepdims=True)
    var = jnp.mean((v - mu) ** 2, axis=-1, keepdims=True)
    return (v - mu) * jax.lax.rsqrt(var + LN_EPS) * w + b


def _mm_bf16(a, w_bf16):
    # bf16 MXU operands (weights pre-cast to bf16 on host), f32 accumulation
    return jnp.dot(a.astype(jnp.bfloat16), w_bf16, preferred_element_type=jnp.float32)


# --------------------------------------------------------------------------
# Kernel 1: point-group Encoder (1x1 convs == matmuls, BN eval folded into w1/b1)
# --------------------------------------------------------------------------
def encoder_kernel(pg_ref, w1_ref, b1_ref, w2_ref, b2_ref, tok_ref):
    G, n, Fp = pg_ref.shape[1], pg_ref.shape[2], pg_ref.shape[3]
    C = w2_ref.shape[1]
    pg = pg_ref[0]                                        # (G, n, Fp)
    fg = jnp.max(pg, axis=1, keepdims=True)               # per-group global max
    # concat of raw per-point features with their group max, exactly as in the
    # reference Encoder (only `second_conv` exists in this module).
    feat = jnp.concatenate(
        [jnp.broadcast_to(fg, (G, n, Fp)), pg], axis=-1)  # (G, n, 2*Fp), 128-aligned
    h = _mm_bf16(feat.reshape(G * n, 2 * Fp), w1_ref[...]) + b1_ref[...]
    h = jnp.maximum(h, 0.0)                               # BN(eval) folded -> just ReLU
    o = _mm_bf16(h, w2_ref[...]) + b2_ref[...]
    tok_ref[0] = jnp.max(o.reshape(G, n, C), axis=1)      # per-group max -> (G, C)


def encoder_forward(neigh, p):
    B, G, n, F = neigh.shape
    F_pad = p['w1'].shape[0] // 2
    C = p['w2'].shape[1]
    # zero-pad the point-feature dim on host (padding hits zero weight rows)
    neigh = jnp.pad(neigh, ((0, 0), (0, 0), (0, 0), (0, F_pad - F)))
    return pl.pallas_call(
        encoder_kernel,
        out_shape=jax.ShapeDtypeStruct((B, G, C), jnp.float32),
        grid=(B,),
        in_specs=[
            pl.BlockSpec((1, G, n, F_pad), lambda b: (b, 0, 0, 0)),
            pl.BlockSpec(p['w1'].shape, lambda b: (0, 0)),
            pl.BlockSpec(p['b1'].shape, lambda b: (0, 0)),
            pl.BlockSpec(p['w2'].shape, lambda b: (0, 0)),
            pl.BlockSpec(p['b2'].shape, lambda b: (0, 0)),
        ],
        out_specs=pl.BlockSpec((1, G, C), lambda b: (b, 0, 0)),
        compiler_params=pltpu.CompilerParams(
            dimension_semantics=("parallel",), vmem_limit_bytes=VMEM_LIMIT),
    )(neigh, p['w1'], p['b1'], p['w2'], p['b2'])


# --------------------------------------------------------------------------
# pos_embed MLP: plain XLA (exact erf-GELU, matches nn.GELU default)
# --------------------------------------------------------------------------
def pos_embed_forward(centers, p):
    h = jax.nn.gelu(centers @ p['w1'] + p['b1'], approximate=False)
    return h @ p['w2'] + p['b2']


# --------------------------------------------------------------------------
# Kernel 2: fully fused Mamba layer (prenorm + in_proj + conv + SSM scan + out_proj)
# --------------------------------------------------------------------------
def mamba_layer_kernel(hid_ref, res_ref, nw_ref, nb_ref, inw_ref, cw_ref, cb_ref,
                       xpw_ref, dtb_ref, at_ref, dpar_ref, ow_ref,
                       hout_ref, rout_ref, y_scr):
    L, D = hid_ref.shape[1], hid_ref.shape[2]
    N, Di = at_ref.shape
    K = cw_ref.shape[0]

    # ---- Block prenorm (DropPath = identity in eval): residual add + LayerNorm ----
    resid = hid_ref[0] + res_ref[0]                       # (L, D)
    rout_ref[0] = resid
    xn = _layernorm(resid, nw_ref[...], nb_ref[...])

    # ---- merged in_proj (x || z): one lane-dense (D, 2*Di) bf16 matmul ----
    xz = _mm_bf16(xn, inw_ref[...])                       # (L, 2*Di)
    xpart = xz[:, :Di]
    zpart = xz[:, Di:]

    # ---- causal depthwise conv1d (kernel K) + SiLU; stays in VMEM/vregs ----
    # TODO(synk): the K-1 row shifts could run on the XLU via pltpu.roll(axis=0)+mask;
    # kept the pad+static-slice form (negligible at this L, unambiguous semantics).
    cw = cw_ref[...]                                      # (K, Di)
    xpad = jnp.concatenate(
        [jnp.zeros((K - 1, Di), jnp.float32), xpart], axis=0)   # (L+K-1, Di)
    acc = cb_ref[...] + xpad[0:L, :] * cw[0:1, :]
    for k in range(1, K):                                 # static unroll, K = 4
        acc = acc + xpad[k:k + L, :] * cw[k:k + 1, :]
    xc = acc * _sigmoid(acc)                              # SiLU; == u in selective_scan

    # ---- merged x_proj: [dt_proj @ x_proj_dt | B | C] as ONE f32 matmul ----
    # dt path kept f32 (its error is amplified exponentially by the recurrence).
    dbc = jnp.dot(xc, xpw_ref[...], preferred_element_type=jnp.float32)  # (L, Di+2N)
    dt = _softplus(dbc[:, :Di] + dtb_ref[...])            # (L, Di)
    bT = dbc[:, Di:Di + N].T                              # (N, L): one transpose / seq
    cT = dbc[:, Di + N:Di + 2 * N].T                      # (N, L)

    # ---- selective scan over the whole visible sequence ----
    # State h never leaves vregs and never crosses grid steps, so there is no
    # grid-ordering dependence; y rows go straight into VMEM scratch (no concat).
    at = at_ref[...]                                      # (N, Di) = A^T, A = -exp(A_log)
    dtx = dt * xc                                         # dt * u
    h = jnp.zeros((N, Di), jnp.float32)
    for t in range(L):                                    # static unroll (L small)
        dA = jnp.exp(dt[t:t + 1, :] * at)                 # (N, Di)
        h = dA * h + bT[:, t:t + 1] * dtx[t:t + 1, :]     # dA*h + dt*B*u (outer product)
        y_scr[pl.ds(t, 1), :] = jnp.sum(h * cT[:, t:t + 1], axis=0, keepdims=True)

    # ---- epilogue: D*u skip, SiLU(z) gate, out_proj as one batched bf16 matmul ----
    y = (y_scr[...] + xc * dpar_ref[...]) * (zpart * _sigmoid(zpart))
    hout_ref[0] = _mm_bf16(y, ow_ref[...])                # (L, D)


def mamba_layer(hidden, residual, p):
    B, L, D = hidden.shape
    N, Di = p['A_T'].shape

    act = pl.BlockSpec((1, L, D), lambda b: (b, 0, 0))

    def rep(a):                                           # resident full-array block
        nd = a.ndim
        return pl.BlockSpec(a.shape, lambda b, _nd=nd: (0,) * _nd)

    weights = (p['norm_w'], p['norm_b'], p['in_w'], p['conv_w'], p['conv_b'],
               p['xproj_w'], p['dt_b'], p['A_T'], p['D'], p['out_w'])

    return pl.pallas_call(
        mamba_layer_kernel,
        out_shape=(jax.ShapeDtypeStruct((B, L, D), jnp.float32),   # hidden out
                   jax.ShapeDtypeStruct((B, L, D), jnp.float32)),  # residual out
        grid=(B,),                                        # one seq per TC on v7x
        in_specs=[act, act] + [rep(w) for w in weights],
        out_specs=(act, act),
        scratch_shapes=[pltpu.VMEM((L, Di), jnp.float32)],          # scan y rows
        compiler_params=pltpu.CompilerParams(
            dimension_semantics=("parallel",), vmem_limit_bytes=VMEM_LIMIT),
    )(hidden, residual, *weights)


# --------------------------------------------------------------------------
# Kernel 3: fused (hidden + residual) -> norm_f -> MaskMamba.norm (batch folded)
# --------------------------------------------------------------------------
def final_norm_kernel(x_ref, r_ref, w1_ref, b1_ref, w2_ref, b2_ref, o_ref):
    v = x_ref[...] + r_ref[...]
    h = _layernorm(v, w1_ref[...], b1_ref[...])           # MixerModel.norm_f
    o_ref[...] = _layernorm(h, w2_ref[...], b2_ref[...])  # MaskMamba.norm


def final_norms(hidden, residual, params):
    B, L, D = hidden.shape
    out = pl.pallas_call(
        final_norm_kernel,
        out_shape=jax.ShapeDtypeStruct((B * L, D), jnp.float32),
        compiler_params=pltpu.CompilerParams(vmem_limit_bytes=VMEM_LIMIT),
    )(hidden.reshape(B * L, D), residual.reshape(B * L, D),
      params['norm_f_w'], params['norm_f_b'], params['norm_w'], params['norm_b'])
    return out.reshape(B, L, D)


# --------------------------------------------------------------------------
# Full MaskMamba forward (random masking + gather done host-side / plain JAX)
# --------------------------------------------------------------------------
def mask_mamba_forward(neighborhood, center, vis_idx, params):
    B = neighborhood.shape[0]
    tokens = encoder_forward(neighborhood, params['enc'])          # (B, G, C)
    rows = jnp.arange(B)[:, None]
    x_vis = tokens[rows, vis_idx]                                  # (B, Lv, C)
    c_vis = center[rows, vis_idx]                                  # (B, Lv, 3)
    pos = pos_embed_forward(c_vis, params['pos'])                  # (B, Lv, C)

    # MixerModel: hidden_states = x + pos is realised by feeding pos as the
    # initial residual (layer 0 computes hidden + residual = x + pos).
    hidden, residual = x_vis, pos
    for p in params['layers']:
        hidden, residual = mamba_layer(hidden, residual, p)
    return final_norms(hidden, residual, params)                   # (B, Lv, C)


# --------------------------------------------------------------------------
# Host-side random masking (matches _mask_center_rand; NumPy RNG, no Pallas op)
# --------------------------------------------------------------------------
def make_rand_mask(B, G, mask_ratio, seed=0):
    rng = np.random.RandomState(seed)
    num_mask = int(mask_ratio * G)
    mask = np.zeros((B, G), dtype=bool)
    for i in range(B):
        m = np.hstack([np.zeros(G - num_mask), np.ones(num_mask)])
        rng.shuffle(m)
        mask[i] = m.astype(bool)
    return mask


# --------------------------------------------------------------------------
# Synthetic, deterministic parameters (host-side folds / merges / bf16 casts)
# --------------------------------------------------------------------------
def init_encoder_params(key, C, F=273, F_pad=384):
    H, Hp = 2 * F, 2 * F_pad
    k1, k2 = jax.random.split(key)
    s = 0.02
    w1 = s * jax.random.normal(k1, (H, H), jnp.float32)       # Conv1d(546,546,1) (in,out)
    b1 = jnp.zeros((H,), jnp.float32)
    # BatchNorm1d(546) eval statistics folded into w1/b1
    gamma, beta = jnp.ones((H,), jnp.float32), jnp.zeros((H,), jnp.float32)
    mean, var = jnp.zeros((H,), jnp.float32), jnp.ones((H,), jnp.float32)
    scale = gamma * jax.lax.rsqrt(var + BN_EPS)
    w1 = w1 * scale[None, :]
    b1 = b1 * scale + (beta - mean * scale)
    w2 = s * jax.random.normal(k2, (H, C), jnp.float32)       # Conv1d(546,C,1)
    # zero-pad 273 -> 384 per feature half so contraction dims are 128-multiples
    # (padded rows / cols are zero, results are unchanged).
    w1p = jnp.zeros((Hp, Hp), jnp.float32)
    w1p = w1p.at[:F, :H].set(w1[:F])                  # global-max feature half
    w1p = w1p.at[F_pad:F_pad + F, :H].set(w1[F:])     # raw point feature half
    b1p = jnp.zeros((1, Hp), jnp.float32).at[0, :H].set(b1)
    w2p = jnp.zeros((Hp, C), jnp.float32).at[:H].set(w2)
    return {
        'w1': w1p.astype(jnp.bfloat16),               # bf16 weights on host (half DMA)
        'b1': b1p,
        'w2': w2p.astype(jnp.bfloat16),
        'b2': jnp.zeros((1, C), jnp.float32),
    }


def init_pos_params(key, D):
    k1, k2 = jax.random.split(key)
    s = 0.02
    return {
        'w1': s * jax.random.normal(k1, (3, 128), jnp.float32),
        'b1': jnp.zeros((1, 128), jnp.float32),
        'w2': s * jax.random.normal(k2, (128, D), jnp.float32),
        'b2': jnp.zeros((1, D), jnp.float32),
    }


def init_layer_params(key, D, Di, N, R, K):
    ks = jax.random.split(key, 8)
    s = 0.05
    # Mamba stores A_log; A = -exp(A_log) (default init A_log = log(1..N)).
    A_log = jnp.log(jnp.tile(jnp.arange(1, N + 1, dtype=jnp.float32)[None, :], (Di, 1)))
    A = -jnp.exp(A_log)                                                # (Di, N)
    x_w = s * jax.random.normal(ks[0], (D, Di), jnp.float32)           # in_proj x half
    z_w = s * jax.random.normal(ks[1], (D, Di), jnp.float32)           # in_proj z half
    dtx_w = s * jax.random.normal(ks[3], (Di, R), jnp.float32)         # x_proj dt head
    b_w = s * jax.random.normal(ks[4], (Di, N), jnp.float32)           # x_proj B head
    c_w = s * jax.random.normal(ks[5], (Di, N), jnp.float32)           # x_proj C head
    dt_w = s * jax.random.normal(ks[6], (R, Di), jnp.float32)          # dt_proj
    return {
        'norm_w': jnp.ones((1, D), jnp.float32),
        'norm_b': jnp.zeros((1, D), jnp.float32),
        # merged in_proj (x || z), pre-cast to bf16 on host
        'in_w': jnp.concatenate([x_w, z_w], axis=1).astype(jnp.bfloat16),   # (D, 2*Di)
        'conv_w': s * jax.random.normal(ks[2], (K, Di), jnp.float32),       # depthwise
        'conv_b': jnp.zeros((1, Di), jnp.float32),
        # merged x_proj with dt_proj folded in: [dtx_w@dt_w | B | C], kept f32
        'xproj_w': jnp.concatenate([dtx_w @ dt_w, b_w, c_w], axis=1),       # (Di, Di+2N)
        'dt_b': jnp.zeros((1, Di), jnp.float32),
        'A_T': A.T,                                                         # (N, Di) f32
        'D': jnp.ones((1, Di), jnp.float32),
        'out_w': (s * jax.random.normal(ks[7], (Di, D), jnp.float32)
                  ).astype(jnp.bfloat16),                                   # out_proj
    }


if __name__ == "__main__":
    # small config consistent with MaskMamba (trans_dim == encoder_dims)
    B, G, n, F = 2, 16, 8, 273     # batch, groups, points/group, point feature dim
    D = 32                         # trans_dim / encoder_dims
    depth = 2                      # n_layer
    expand, N, K = 2, 16, 4        # Mamba defaults: expand, d_state, d_conv
    Di = expand * D                # d_inner = 64
    R = -(-D // 16)                # dt_rank = ceil(d_model / 16) = 2
    mask_ratio = 0.5

    key = jax.random.PRNGKey(0)
    kn, kc, ke, kp, kl = jax.random.split(key, 5)
    neighborhood = jax.random.normal(kn, (B, G, n, F), jnp.float32)
    center = jax.random.normal(kc, (B, G, 3), jnp.float32)

    # random masking + visible-token index build (host side, deterministic)
    mask = make_rand_mask(B, G, mask_ratio, seed=0)
    vis_idx = jnp.asarray(
        np.stack([np.nonzero(~mask[i])[0] for i in range(B)]), jnp.int32)  # (B, Lv)
    Lv = G - int(mask_ratio * G)

    layer_keys = jax.random.split(kl, depth)
    params = {
        'enc': init_encoder_params(ke, D, F=F),
        'pos': init_pos_params(kp, D),
        'layers': [init_layer_params(layer_keys[i], D, Di, N, R, K)
                   for i in range(depth)],
        'norm_f_w': jnp.ones((1, D), jnp.float32),
        'norm_f_b': jnp.zeros((1, D), jnp.float32),
        'norm_w': jnp.ones((1, D), jnp.float32),
        'norm_b': jnp.zeros((1, D), jnp.float32),
    }

    fwd = jax.jit(mask_mamba_forward)
    out = fwd(neighborhood, center, vis_idx, params)   # == x_vis; mask returned host-side
    out = jax.block_until_ready(out)
    assert out.shape == (B, Lv, D), out.shape
    assert bool(jnp.all(jnp.isfinite(out)))
    print("KERNEL_OK")
</pallas_src>

<mosaic_0001>
module attributes {stable_mosaic.version = 11 : i64} {
  func.func @encoder_kernel(%arg0: i32, %arg1: memref<1x16x8x384xf32, #tpu.memory_space<vmem>>, %arg2: memref<768x768xbf16, #tpu.memory_space<vmem>>, %arg3: memref<1x768xf32, #tpu.memory_space<vmem>>, %arg4: memref<768x32xbf16, #tpu.memory_space<vmem>>, %arg5: memref<1x32xf32, #tpu.memory_space<vmem>>, %arg6: memref<1x16x32xf32, #tpu.memory_space<vmem>>) attributes {dimension_semantics = [#tpu.dimension_semantics<parallel>], iteration_bounds = array<i64: 2>, scalar_prefetch = 0 : i64, scratch_operands = 0 : i64, tpu.core_type = #tpu.core_type<tc>, window_params = [{transform_indices = @transform_0, window_bounds = array<i64: 1, 16, 8, 384>}, {pipeline_mode = #tpu.pipeline_mode<synchronous>, transform_indices = @transform_1, window_bounds = array<i64: 768, 768>}, {pipeline_mode = #tpu.pipeline_mode<synchronous>, transform_indices = @transform_2, window_bounds = array<i64: 1, 768>}, {pipeline_mode = #tpu.pipeline_mode<synchronous>, transform_indices = @transform_3, window_bounds = array<i64: 768, 32>}, {pipeline_mode = #tpu.pipeline_mode<synchronous>, transform_indices = @transform_4, window_bounds = array<i64: 1, 32>}, {transform_indices = @transform_5, window_bounds = array<i64: 1, 16, 32>}]} {
    %c0 = arith.constant 0 : index
    %c0_0 = arith.constant 0 : index
    %c0_1 = arith.constant 0 : index
    %c0_2 = arith.constant 0 : index
    %0 = vector.load %arg1[%c0, %c0_0, %c0_1, %c0_2] : memref<1x16x8x384xf32, #tpu.memory_space<vmem>>, vector<1x16x8x384xf32>
    %1 = vector.shape_cast %0 : vector<1x16x8x384xf32> to vector<16x8x384xf32>
    %cst = arith.constant dense<0xFF800000> : vector<16x384xf32>
    %2 = vector.multi_reduction <maximumf>, %1, %cst [1] : vector<16x8x384xf32> to vector<16x384xf32>
    %3 = vector.shape_cast %2 : vector<16x384xf32> to vector<16x1x384xf32>
    %4 = vector.shape_cast %3 : vector<16x1x384xf32> to vector<16x1x384xf32>
    %5 = vector.broadcast %4 : vector<16x1x384xf32> to vector<16x8x384xf32>
    %6 = tpu.concatenate %5, %1 in 2 : vector<16x8x384xf32>, vector<16x8x384xf32> -> vector<16x8x768xf32>
    %7 = vector.shape_cast %6 : vector<16x8x768xf32> to vector<128x768xf32>
    %c0_3 = arith.constant 0 : index
    %c0_4 = arith.constant 0 : index
    %8 = vector.load %arg2[%c0_3, %c0_4] : memref<768x768xbf16, #tpu.memory_space<vmem>>, vector<768x768xbf16>
    %9 = arith.truncf %7 : vector<128x768xf32> to vector<128x768xbf16>
    %cst_5 = arith.constant dense<0.000000e+00> : vector<128x768xf32>
    %10 = tpu.matmul %9, %8, %cst_5 {dimension_numbers = #tpu.dot_dimension_numbers<[1], [0], [0], [1], [0, 0, 1, 1], [], []>} : vector<128x768xbf16>, vector<768x768xbf16>, vector<128x768xf32> -> vector<128x768xf32>
    %c0_6 = arith.constant 0 : index
    %c0_7 = arith.constant 0 : index
    %11 = vector.load %arg3[%c0_6, %c0_7] : memref<1x768xf32, #tpu.memory_space<vmem>>, vector<1x768xf32>
    %12 = vector.broadcast %11 : vector<1x768xf32> to vector<128x768xf32>
    %13 = arith.addf %10, %12 : vector<128x768xf32>
    %cst_8 = arith.constant 0.000000e+00 : f32
    %14 = vector.broadcast %cst_8 : f32 to vector<128x768xf32>
    %15 = arith.maximumf %13, %14 : vector<128x768xf32>
    %c0_9 = arith.constant 0 : index
    %c0_10 = arith.constant 0 : index
    %16 = vector.load %arg4[%c0_9, %c0_10] : memref<768x32xbf16, #tpu.memory_space<vmem>>, vector<768x32xbf16>
    %17 = arith.truncf %15 : vector<128x768xf32> to vector<128x768xbf16>
    %cst_11 = arith.constant dense<0.000000e+00> : vector<128x32xf32>
    %18 = tpu.matmul %17, %16, %cst_11 {dimension_numbers = #tpu.dot_dimension_numbers<[1], [0], [0], [1], [0, 0, 1, 1], [], []>} : vector<128x768xbf16>, vector<768x32xbf16>, vector<128x32xf32> -> vector<128x32xf32>
    %c0_12 = arith.constant 0 : index
    %c0_13 = arith.constant 0 : index
    %19 = vector.load %arg5[%c0_12, %c0_13] : memref<1x32xf32, #tpu.memory_space<vmem>>, vector<1x32xf32>
    %20 = vector.broadcast %19 : vector<1x32xf32> to vector<128x32xf32>
    %21 = arith.addf %18, %20 : vector<128x32xf32>
    %22 = vector.shape_cast %21 : vector<128x32xf32> to vector<16x8x32xf32>
    %cst_14 = arith.constant dense<0xFF800000> : vector<16x32xf32>
    %23 = vector.multi_reduction <maximumf>, %22, %cst_14 [1] : vector<16x8x32xf32> to vector<16x32xf32>
    %c0_15 = arith.constant 0 : index
    %c0_16 = arith.constant 0 : index
    %c0_17 = arith.constant 0 : index
    %24 = vector.load %arg6[%c0_15, %c0_16, %c0_17] : memref<1x16x32xf32, #tpu.memory_space<vmem>>, vector<1x16x32xf32>
    %25 = vector.shape_cast %24 : vector<1x16x32xf32> to vector<16x32xf32>
    %26 = vector.shape_cast %23 : vector<16x32xf32> to vector<1x16x32xf32>
    tpu.vector_store %arg6[%c0_15, %c0_16, %c0_17], %26 {strides = array<i32>} : memref<1x16x32xf32, #tpu.memory_space<vmem>>, vector<1x16x32xf32>,
    return
  }
  func.func @transform_0(%arg0: i32) -> (i32, i32, i32, i32) {
    %c0_i32 = arith.constant 0 : i32
    %c0_i32_0 = arith.constant 0 : i32
    %c0_i32_1 = arith.constant 0 : i32
    %c0_i32_2 = arith.constant 0 : i32
    return %arg0, %c0_i32, %c0_i32_0, %c0_i32_1 : i32, i32, i32, i32
  }
  func.func @transform_1(%arg0: i32) -> (i32, i32) {
    %c0_i32 = arith.constant 0 : i32
    %c0_i32_0 = arith.constant 0 : i32
    %c0_i32_1 = arith.constant 0 : i32
    return %c0_i32, %c0_i32_0 : i32, i32
  }
  func.func @transform_2(%arg0: i32) -> (i32, i32) {
    %c0_i32 = arith.constant 0 : i32
    %c0_i32_0 = arith.constant 0 : i32
    %c0_i32_1 = arith.constant 0 : i32
    return %c0_i32, %c0_i32_0 : i32, i32
  }
  func.func @transform_3(%arg0: i32) -> (i32, i32) {
    %c0_i32 = arith.constant 0 : i32
    %c0_i32_0 = arith.constant 0 : i32
    %c0_i32_1 = arith.constant 0 : i32
    return %c0_i32, %c0_i32_0 : i32, i32
  }
  func.func @transform_4(%arg0: i32) -> (i32, i32) {
    %c0_i32 = arith.constant 0 : i32
    %c0_i32_0 = arith.constant 0 : i32
    %c0_i32_1 = arith.constant 0 : i32
    return %c0_i32, %c0_i32_0 : i32, i32
  }
  func.func @transform_5(%arg0: i32) -> (i32, i32, i32) {
    %c0_i32 = arith.constant 0 : i32
    %c0_i32_0 = arith.constant 0 : i32
    %c0_i32_1 = arith.constant 0 : i32
    return %arg0, %c0_i32, %c0_i32_0 : i32, i32, i32
  }
}

module attributes {stable_mosaic.version = 11 : i64} {
  func.func @final_norm_kernel(%arg0: memref<16x32xf32, #tpu.memory_space<vmem>>, %arg1: memref<16x32xf32, #tpu.memory_space<vmem>>, %arg2: memref<1x32xf32, #tpu.memory_space<vmem>>, %arg3: memref<1x32xf32, #tpu.memory_space<vmem>>, %arg4: memref<1x32xf32, #tpu.memory_space<vmem>>, %arg5: memref<1x32xf32, #tpu.memory_space<vmem>>, %arg6: memref<16x32xf32, #tpu.memory_space<vmem>>) attributes {dimension_semantics = [], scalar_prefetch = 0 : i64, scratch_operands = 0 : i64, tpu.core_type = #tpu.core_type<tc>} {
    %c0 = arith.constant 0 : index
    %c0_0 = arith.constant 0 : index
    %0 = vector.load %arg0[%c0, %c0_0] : memref<16x32xf32, #tpu.memory_space<vmem>>, vector<16x32xf32>
    %c0_1 = arith.constant 0 : index
    %c0_2 = arith.constant 0 : index
    %1 = vector.load %arg1[%c0_1, %c0_2] : memref<16x32xf32, #tpu.memory_space<vmem>>, vector<16x32xf32>
    %2 = arith.addf %0, %1 : vector<16x32xf32>
    %c0_3 = arith.constant 0 : index
    %c0_4 = arith.constant 0 : index
    %3 = vector.load %arg2[%c0_3, %c0_4] : memref<1x32xf32, #tpu.memory_space<vmem>>, vector<1x32xf32>
    %c0_5 = arith.constant 0 : index
    %c0_6 = arith.constant 0 : index
    %4 = vector.load %arg3[%c0_5, %c0_6] : memref<1x32xf32, #tpu.memory_space<vmem>>, vector<1x32xf32>
    %cst = arith.constant dense<0.000000e+00> : vector<16xf32>
    %5 = vector.multi_reduction <add>, %2, %cst [1] : vector<16x32xf32> to vector<16xf32>
    %6 = vector.shape_cast %5 : vector<16xf32> to vector<16x1xf32>
    %cst_7 = arith.constant 3.200000e+01 : f32
    %7 = vector.broadcast %cst_7 : f32 to vector<16x1xf32>
    %8 = arith.divf %6, %7 : vector<16x1xf32>
    %9 = vector.broadcast %8 : vector<16x1xf32> to vector<16x32xf32>
    %10 = arith.subf %2, %9 : vector<16x32xf32>
    %11 = arith.mulf %10, %10 : vector<16x32xf32>
    %cst_8 = arith.constant dense<0.000000e+00> : vector<16xf32>
    %12 = vector.multi_reduction <add>, %11, %cst_8 [1] : vector<16x32xf32> to vector<16xf32>
    %13 = vector.shape_cast %12 : vector<16xf32> to vector<16x1xf32>
    %cst_9 = arith.constant 3.200000e+01 : f32
    %14 = vector.broadcast %cst_9 : f32 to vector<16x1xf32>
    %15 = arith.divf %13, %14 : vector<16x1xf32>
    %16 = vector.broadcast %8 : vector<16x1xf32> to vector<16x32xf32>
    %17 = arith.subf %2, %16 : vector<16x32xf32>
    %cst_10 = arith.constant 9.99999974E-6 : f32
    %18 = vector.broadcast %cst_10 : f32 to vector<16x1xf32>
    %19 = arith.addf %15, %18 : vector<16x1xf32>
    %20 = math.rsqrt %19 : vector<16x1xf32>
    %21 = vector.broadcast %20 : vector<16x1xf32> to vector<16x32xf32>
    %22 = arith.mulf %17, %21 : vector<16x32xf32>
    %23 = vector.broadcast %3 : vector<1x32xf32> to vector<16x32xf32>
    %24 = arith.mulf %22, %23 : vector<16x32xf32>
    %25 = vector.broadcast %4 : vector<1x32xf32> to vector<16x32xf32>
    %26 = arith.addf %24, %25 : vector<16x32xf32>
    %c0_11 = arith.constant 0 : index
    %c0_12 = arith.constant 0 : index
    %27 = vector.load %arg4[%c0_11, %c0_12] : memref<1x32xf32, #tpu.memory_space<vmem>>, vector<1x32xf32>
    %c0_13 = arith.constant 0 : index
    %c0_14 = arith.constant 0 : index
    %28 = vector.load %arg5[%c0_13, %c0_14] : memref<1x32xf32, #tpu.memory_space<vmem>>, vector<1x32xf32>
    %cst_15 = arith.constant dense<0.000000e+00> : vector<16xf32>
    %29 = vector.multi_reduction <add>, %26, %cst_15 [1] : vector<16x32xf32> to vector<16xf32>
    %30 = vector.shape_cast %29 : vector<16xf32> to vector<16x1xf32>
    %cst_16 = arith.constant 3.200000e+01 : f32
    %31 = vector.broadcast %cst_16 : f32 to vector<16x1xf32>
    %32 = arith.divf %30, %31 : vector<16x1xf32>
    %33 = vector.broadcast %32 : vector<16x1xf32> to vector<16x32xf32>
    %34 = arith.subf %26, %33 : vector<16x32xf32>
    %35 = arith.mulf %34, %34 : vector<16x32xf32>
    %cst_17 = arith.constant dense<0.000000e+00> : vector<16xf32>
    %36 = vector.multi_reduction <add>, %35, %cst_17 [1] : vector<16x32xf32> to vector<16xf32>
    %37 = vector.shape_cast %36 : vector<16xf32> to vector<16x1xf32>
    %cst_18 = arith.constant 3.200000e+01 : f32
    %38 = vector.broadcast %cst_18 : f32 to vector<16x1xf32>
    %39 = arith.divf %37, %38 : vector<16x1xf32>
    %40 = vector.broadcast %32 : vector<16x1xf32> to vector<16x32xf32>
    %41 = arith.subf %26, %40 : vector<16x32xf32>
    %cst_19 = arith.constant 9.99999974E-6 : f32
    %42 = vector.broadcast %cst_19 : f32 to vector<16x1xf32>
    %43 = arith.addf %39, %42 : vector<16x1xf32>
    %44 = math.rsqrt %43 : vector<16x1xf32>
    %45 = vector.broadcast %44 : vector<16x1xf32> to vector<16x32xf32>
    %46 = arith.mulf %41, %45 : vector<16x32xf32>
    %47 = vector.broadcast %27 : vector<1x32xf32> to vector<16x32xf32>
    %48 = arith.mulf %46, %47 : vector<16x32xf32>
    %49 = vector.broadcast %28 : vector<1x32xf32> to vector<16x32xf32>
    %50 = arith.addf %48, %49 : vector<16x32xf32>
    %c0_20 = arith.constant 0 : index
    %c0_21 = arith.constant 0 : index
    %51 = vector.load %arg6[%c0_20, %c0_21] : memref<16x32xf32, #tpu.memory_space<vmem>>, vector<16x32xf32>
    tpu.vector_store %arg6[%c0_20, %c0_21], %50 {strides = array<i32>} : memref<16x32xf32, #tpu.memory_space<vmem>>, vector<16x32xf32>,
    return
  }
}

module attributes {stable_mosaic.version = 11 : i64} {
  func.func @mamba_layer_kernel(%arg0: i32, %arg1: memref<1x8x32xf32, #tpu.memory_space<vmem>>, %arg2: memref<1x8x32xf32, #tpu.memory_space<vmem>>, %arg3: memref<1x32xf32, #tpu.memory_space<vmem>>, %arg4: memref<1x32xf32, #tpu.memory_space<vmem>>, %arg5: memref<32x128xbf16, #tpu.memory_space<vmem>>, %arg6: memref<4x64xf32, #tpu.memory_space<vmem>>, %arg7: memref<1x64xf32, #tpu.memory_space<vmem>>, %arg8: memref<64x96xf32, #tpu.memory_space<vmem>>, %arg9: memref<1x64xf32, #tpu.memory_space<vmem>>, %arg10: memref<16x64xf32, #tpu.memory_space<vmem>>, %arg11: memref<1x64xf32, #tpu.memory_space<vmem>>, %arg12: memref<64x32xbf16, #tpu.memory_space<vmem>>, %arg13: memref<1x8x32xf32, #tpu.memory_space<vmem>>, %arg14: memref<1x8x32xf32, #tpu.memory_space<vmem>>, %arg15: memref<8x64xf32, #tpu.memory_space<vmem>>) attributes {dimension_semantics = [#tpu.dimension_semantics<parallel>], iteration_bounds = array<i64: 2>, scalar_prefetch = 0 : i64, scratch_operands = 1 : i64, tpu.core_type = #tpu.core_type<tc>, window_params = [{transform_indices = @transform_0, window_bounds = array<i64: 1, 8, 32>}, {transform_indices = @transform_1, window_bounds = array<i64: 1, 8, 32>}, {pipeline_mode = #tpu.pipeline_mode<synchronous>, transform_indices = @transform_2, window_bounds = array<i64: 1, 32>}, {pipeline_mode = #tpu.pipeline_mode<synchronous>, transform_indices = @transform_3, window_bounds = array<i64: 1, 32>}, {pipeline_mode = #tpu.pipeline_mode<synchronous>, transform_indices = @transform_4, window_bounds = array<i64: 32, 128>}, {pipeline_mode = #tpu.pipeline_mode<synchronous>, transform_indices = @transform_5, window_bounds = array<i64: 4, 64>}, {pipeline_mode = #tpu.pipeline_mode<synchronous>, transform_indices = @transform_6, window_bounds = array<i64: 1, 64>}, {pipeline_mode = #tpu.pipeline_mode<synchronous>, transform_indices = @transform_7, window_bounds = array<i64: 64, 96>}, {pipeline_mode = #tpu.pipeline_mode<synchronous>, transform_indices = @transform_8, window_bounds = array<i64: 1, 64>}, {pipeline_mode = #tpu.pipeline_mode<synchronous>, transform_indices = @transform_9, window_bounds = array<i64: 16, 64>}, {pipeline_mode = #tpu.pipeline_mode<synchronous>, transform_indices = @transform_10, window_bounds = array<i64: 1, 64>}, {pipeline_mode = #tpu.pipeline_mode<synchronous>, transform_indices = @transform_11, window_bounds = array<i64: 64, 32>}, {transform_indices = @transform_12, window_bounds = array<i64: 1, 8, 32>}, {transform_indices = @transform_13, window_bounds = array<i64: 1, 8, 32>}]} {
    %c0 = arith.constant 0 : index
    %c0_0 = arith.constant 0 : index
    %c0_1 = arith.constant 0 : index
    %0 = vector.load %arg1[%c0, %c0_0, %c0_1] : memref<1x8x32xf32, #tpu.memory_space<vmem>>, vector<1x8x32xf32>
    %1 = vector.shape_cast %0 : vector<1x8x32xf32> to vector<8x32xf32>
    %c0_2 = arith.constant 0 : index
    %c0_3 = arith.constant 0 : index
    %c0_4 = arith.constant 0 : index
    %2 = vector.load %arg2[%c0_2, %c0_3, %c0_4] : memref<1x8x32xf32, #tpu.memory_space<vmem>>, vector<1x8x32xf32>
    %3 = vector.shape_cast %2 : vector<1x8x32xf32> to vector<8x32xf32>
    %4 = arith.addf %1, %3 : vector<8x32xf32>
    %c0_5 = arith.constant 0 : index
    %c0_6 = arith.constant 0 : index
    %c0_7 = arith.constant 0 : index
    %5 = vector.load %arg14[%c0_5, %c0_6, %c0_7] : memref<1x8x32xf32, #tpu.memory_space<vmem>>, vector<1x8x32xf32>
    %6 = vector.shape_cast %5 : vector<1x8x32xf32> to vector<8x32xf32>
    %7 = vector.shape_cast %4 : vector<8x32xf32> to vector<1x8x32xf32>
    tpu.vector_store %arg14[%c0_5, %c0_6, %c0_7], %7 {strides = array<i32>} : memref<1x8x32xf32, #tpu.memory_space<vmem>>, vector<1x8x32xf32>,
    %c0_8 = arith.constant 0 : index
    %c0_9 = arith.constant 0 : index
    %8 = vector.load %arg3[%c0_8, %c0_9] : memref<1x32xf32, #tpu.memory_space<vmem>>, vector<1x32xf32>
    %c0_10 = arith.constant 0 : index
    %c0_11 = arith.constant 0 : index
    %9 = vector.load %arg4[%c0_10, %c0_11] : memref<1x32xf32, #tpu.memory_space<vmem>>, vector<1x32xf32>
    %cst = arith.constant dense<0.000000e+00> : vector<8xf32>
    %10 = vector.multi_reduction <add>, %4, %cst [1] : vector<8x32xf32> to vector<8xf32>
    %11 = vector.shape_cast %10 : vector<8xf32> to vector<8x1xf32>
    %cst_12 = arith.constant 3.200000e+01 : f32
    %12 = vector.broadcast %cst_12 : f32 to vector<8x1xf32>
    %13 = arith.divf %11, %12 : vector<8x1xf32>
    %14 = vector.broadcast %13 : vector<8x1xf32> to vector<8x32xf32>
    %15 = arith.subf %4, %14 : vector<8x32xf32>
    %16 = arith.mulf %15, %15 : vector<8x32xf32>
    %cst_13 = arith.constant dense<0.000000e+00> : vector<8xf32>
    %17 = vector.multi_reduction <add>, %16, %cst_13 [1] : vector<8x32xf32> to vector<8xf32>
    %18 = vector.shape_cast %17 : vector<8xf32> to vector<8x1xf32>
    %cst_14 = arith.constant 3.200000e+01 : f32
    %19 = vector.broadcast %cst_14 : f32 to vector<8x1xf32>
    %20 = arith.divf %18, %19 : vector<8x1xf32>
    %21 = vector.broadcast %13 : vector<8x1xf32> to vector<8x32xf32>
    %22 = arith.subf %4, %21 : vector<8x32xf32>
    %cst_15 = arith.constant 9.99999974E-6 : f32
    %23 = vector.broadcast %cst_15 : f32 to vector<8x1xf32>
    %24 = arith.addf %20, %23 : vector<8x1xf32>
    %25 = math.rsqrt %24 : vector<8x1xf32>
    %26 = vector.broadcast %25 : vector<8x1xf32> to vector<8x32xf32>
    %27 = arith.mulf %22, %26 : vector<8x32xf32>
    %28 = vector.broadcast %8 : vector<1x32xf32> to vector<8x32xf32>
    %29 = arith.mulf %27, %28 : vector<8x32xf32>
    %30 = vector.broadcast %9 : vector<1x32xf32> to vector<8x32xf32>
    %31 = arith.addf %29, %30 : vector<8x32xf32>
    %c0_16 = arith.constant 0 : index
    %c0_17 = arith.constant 0 : index
    %32 = vector.load %arg5[%c0_16, %c0_17] : memref<32x128xbf16, #tpu.memory_space<vmem>>, vector<32x128xbf16>
    %33 = arith.truncf %31 : vector<8x32xf32> to vector<8x32xbf16>
    %cst_18 = arith.constant dense<0.000000e+00> : vector<8x128xf32>
    %34 = tpu.matmul %33, %32, %cst_18 {dimension_numbers = #tpu.dot_dimension_numbers<[1], [0], [0], [1], [0, 0, 1, 1], [], []>} : vector<8x32xbf16>, vector<32x128xbf16>, vector<8x128xf32> -> vector<8x128xf32>
    %35 = vector.extract_strided_slice %34 {offsets = [0, 0], sizes = [8, 64], strides = [1, 1]} : vector<8x128xf32> to vector<8x64xf32>
    %36 = vector.extract_strided_slice %34 {offsets = [0, 64], sizes = [8, 64], strides = [1, 1]} : vector<8x128xf32> to vector<8x64xf32>
    %c0_19 = arith.constant 0 : index
    %c0_20 = arith.constant 0 : index
    %37 = vector.load %arg6[%c0_19, %c0_20] : memref<4x64xf32, #tpu.memory_space<vmem>>, vector<4x64xf32>
    %cst_21 = arith.constant 0.000000e+00 : f32
    %38 = vector.broadcast %cst_21 : f32 to vector<3x64xf32>
    %39 = tpu.concatenate %38, %35 in 0 : vector<3x64xf32>, vector<8x64xf32> -> vector<11x64xf32>
    %c0_22 = arith.constant 0 : index
    %c0_23 = arith.constant 0 : index
    %40 = vector.load %arg7[%c0_22, %c0_23] : memref<1x64xf32, #tpu.memory_space<vmem>>, vector<1x64xf32>
    %41 = vector.extract_strided_slice %39 {offsets = [0, 0], sizes = [8, 64], strides = [1, 1]} : vector<11x64xf32> to vector<8x64xf32>
    %42 = vector.extract_strided_slice %37 {offsets = [0, 0], sizes = [1, 64], strides = [1, 1]} : vector<4x64xf32> to vector<1x64xf32>
    %43 = vector.broadcast %42 : vector<1x64xf32> to vector<8x64xf32>
    %44 = arith.mulf %41, %43 : vector<8x64xf32>
    %45 = vector.broadcast %40 : vector<1x64xf32> to vector<8x64xf32>
    %46 = arith.addf %45, %44 : vector<8x64xf32>
    %47 = vector.extract_strided_slice %39 {offsets = [1, 0], sizes = [8, 64], strides = [1, 1]} : vector<11x64xf32> to vector<8x64xf32>
    %48 = vector.extract_strided_slice %37 {offsets = [1, 0], sizes = [1, 64], strides = [1, 1]} : vector<4x64xf32> to vector<1x64xf32>
    %49 = vector.broadcast %48 : vector<1x64xf32> to vector<8x64xf32>
    %50 = arith.mulf %47, %49 : vector<8x64xf32>
    %51 = arith.addf %46, %50 : vector<8x64xf32>
    %52 = vector.extract_strided_slice %39 {offsets = [2, 0], sizes = [8, 64], strides = [1, 1]} : vector<11x64xf32> to vector<8x64xf32>
    %53 = vector.extract_strided_slice %37 {offsets = [2, 0], sizes = [1, 64], strides = [1, 1]} : vector<4x64xf32> to vector<1x64xf32>
    %54 = vector.broadcast %53 : vector<1x64xf32> to vector<8x64xf32>
    %55 = arith.mulf %52, %54 : vector<8x64xf32>
    %56 = arith.addf %51, %55 : vector<8x64xf32>
    %57 = vector.extract_strided_slice %39 {offsets = [3, 0], sizes = [8, 64], strides = [1, 1]} : vector<11x64xf32> to vector<8x64xf32>
    %58 = vector.extract_strided_slice %37 {offsets = [3, 0], sizes = [1, 64], strides = [1, 1]} : vector<4x64xf32> to vector<1x64xf32>
    %59 = vector.broadcast %58 : vector<1x64xf32> to vector<8x64xf32>
    %60 = arith.mulf %57, %59 : vector<8x64xf32>
    %61 = arith.addf %56, %60 : vector<8x64xf32>
    %cst_24 = arith.constant 0.000000e+00 : f32
    %62 = vector.broadcast %cst_24 : f32 to vector<8x64xf32>
    %63 = arith.subf %62, %61 : vector<8x64xf32>
    %64 = math.exp %63 : vector<8x64xf32>
    %cst_25 = arith.constant 1.000000e+00 : f32
    %65 = vector.broadcast %cst_25 : f32 to vector<8x64xf32>
    %66 = arith.addf %65, %64 : vector<8x64xf32>
    %cst_26 = arith.constant 1.000000e+00 : f32
    %67 = vector.broadcast %cst_26 : f32 to vector<8x64xf32>
    %68 = arith.divf %67, %66 : vector<8x64xf32>
    %69 = arith.mulf %61, %68 : vector<8x64xf32>
    %c0_27 = arith.constant 0 : index
    %c0_28 = arith.constant 0 : index
    %70 = vector.load %arg8[%c0_27, %c0_28] : memref<64x96xf32, #tpu.memory_space<vmem>>, vector<64x96xf32>
    %cst_29 = arith.constant dense<0.000000e+00> : vector<8x96xf32>
    %71 = tpu.matmul %69, %70, %cst_29 {dimension_numbers = #tpu.dot_dimension_numbers<[1], [0], [0], [1], [0, 0, 1, 1], [], []>} : vector<8x64xf32>, vector<64x96xf32>, vector<8x96xf32> -> vector<8x96xf32>
    %72 = vector.extract_strided_slice %71 {offsets = [0, 0], sizes = [8, 64], strides = [1, 1]} : vector<8x96xf32> to vector<8x64xf32>
    %c0_30 = arith.constant 0 : index
    %c0_31 = arith.constant 0 : index
    %73 = vector.load %arg9[%c0_30, %c0_31] : memref<1x64xf32, #tpu.memory_space<vmem>>, vector<1x64xf32>
    %74 = vector.broadcast %73 : vector<1x64xf32> to vector<8x64xf32>
    %75 = arith.addf %72, %74 : vector<8x64xf32>
    %cst_32 = arith.constant 0.000000e+00 : f32
    %76 = vector.broadcast %cst_32 : f32 to vector<8x64xf32>
    %77 = arith.maximumf %75, %76 : vector<8x64xf32>
    %78 = math.absf %75 : vector<8x64xf32>
    %cst_33 = arith.constant 0.000000e+00 : f32
    %79 = vector.broadcast %cst_33 : f32 to vector<8x64xf32>
    %80 = arith.subf %79, %78 : vector<8x64xf32>
    %81 = math.exp %80 : vector<8x64xf32>
    %cst_34 = arith.constant 1.000000e+00 : f32
    %82 = vector.broadcast %cst_34 : f32 to vector<8x64xf32>
    %83 = arith.addf %82, %81 : vector<8x64xf32>
    %84 = math.log %83 : vector<8x64xf32>
    %85 = arith.addf %77, %84 : vector<8x64xf32>
    %86 = vector.extract_strided_slice %71 {offsets = [0, 64], sizes = [8, 16], strides = [1, 1]} : vector<8x96xf32> to vector<8x16xf32>
    %87 = tpu.transpose %86, [1, 0] : vector<8x16xf32> -> vector<16x8xf32>
    %88 = vector.extract_strided_slice %71 {offsets = [0, 80], sizes = [8, 16], strides = [1, 1]} : vector<8x96xf32> to vector<8x16xf32>
    %89 = tpu.transpose %88, [1, 0] : vector<8x16xf32> -> vector<16x8xf32>
    %c0_35 = arith.constant 0 : index
    %c0_36 = arith.constant 0 : index
    %90 = vector.load %arg10[%c0_35, %c0_36] : memref<16x64xf32, #tpu.memory_space<vmem>>, vector<16x64xf32>
    %91 = arith.mulf %85, %69 : vector<8x64xf32>
    %cst_37 = arith.constant 0.000000e+00 : f32
    %92 = vector.broadcast %cst_37 : f32 to vector<16x64xf32>
    %93 = vector.extract_strided_slice %85 {offsets = [0, 0], sizes = [1, 64], strides = [1, 1]} : vector<8x64xf32> to vector<1x64xf32>
    %94 = vector.broadcast %93 : vector<1x64xf32> to vector<16x64xf32>
    %95 = arith.mulf %94, %90 : vector<16x64xf32>
    %96 = math.exp %95 : vector<16x64xf32>
    %97 = arith.mulf %96, %92 : vector<16x64xf32>
    %98 = vector.extract_strided_slice %87 {offsets = [0, 0], sizes = [16, 1], strides = [1, 1]} : vector<16x8xf32> to vector<16x1xf32>
    %99 = vector.extract_strided_slice %91 {offsets = [0, 0], sizes = [1, 64], strides = [1, 1]} : vector<8x64xf32> to vector<1x64xf32>
    %100 = vector.broadcast %98 : vector<16x1xf32> to vector<16x64xf32>
    %101 = vector.broadcast %99 : vector<1x64xf32> to vector<16x64xf32>
    %102 = arith.mulf %100, %101 : vector<16x64xf32>
    %103 = arith.addf %97, %102 : vector<16x64xf32>
    %104 = vector.extract_strided_slice %89 {offsets = [0, 0], sizes = [16, 1], strides = [1, 1]} : vector<16x8xf32> to vector<16x1xf32>
    %105 = vector.broadcast %104 : vector<16x1xf32> to vector<16x64xf32>
    %106 = arith.mulf %103, %105 : vector<16x64xf32>
    %cst_38 = arith.constant dense<0.000000e+00> : vector<64xf32>
    %107 = vector.multi_reduction <add>, %106, %cst_38 [0] : vector<16x64xf32> to vector<64xf32>
    %108 = vector.shape_cast %107 : vector<64xf32> to vector<1x64xf32>
    %c0_39 = arith.constant 0 : index
    %c0_40 = arith.constant 0 : index
    %109 = vector.load %arg15[%c0_39, %c0_40] : memref<8x64xf32, #tpu.memory_space<vmem>>, vector<1x64xf32>
    tpu.vector_store %arg15[%c0_39, %c0_40], %108 {strides = array<i32>} : memref<8x64xf32, #tpu.memory_space<vmem>>, vector<1x64xf32>,
    %110 = vector.extract_strided_slice %85 {offsets = [1, 0], sizes = [1, 64], strides = [1, 1]} : vector<8x64xf32> to vector<1x64xf32>
    %111 = vector.broadcast %110 : vector<1x64xf32> to vector<16x64xf32>
    %112 = arith.mulf %111, %90 : vector<16x64xf32>
    %113 = math.exp %112 : vector<16x64xf32>
    %114 = arith.mulf %113, %103 : vector<16x64xf32>
    %115 = vector.extract_strided_slice %87 {offsets = [0, 1], sizes = [16, 1], strides = [1, 1]} : vector<16x8xf32> to vector<16x1xf32>
    %116 = vector.extract_strided_slice %91 {offsets = [1, 0], sizes = [1, 64], strides = [1, 1]} : vector<8x64xf32> to vector<1x64xf32>
    %117 = vector.broadcast %115 : vector<16x1xf32> to vector<16x64xf32>
    %118 = vector.broadcast %116 : vector<1x64xf32> to vector<16x64xf32>
    %119 = arith.mulf %117, %118 : vector<16x64xf32>
    %120 = arith.addf %114, %119 : vector<16x64xf32>
    %121 = vector.extract_strided_slice %89 {offsets = [0, 1], sizes = [16, 1], strides = [1, 1]} : vector<16x8xf32> to vector<16x1xf32>
    %122 = vector.broadcast %121 : vector<16x1xf32> to vector<16x64xf32>
    %123 = arith.mulf %120, %122 : vector<16x64xf32>
    %cst_41 = arith.constant dense<0.000000e+00> : vector<64xf32>
    %124 = vector.multi_reduction <add>, %123, %cst_41 [0] : vector<16x64xf32> to vector<64xf32>
    %125 = vector.shape_cast %124 : vector<64xf32> to vector<1x64xf32>
    %c1 = arith.constant 1 : index
    %c0_42 = arith.constant 0 : index
    %126 = vector.load %arg15[%c1, %c0_42] : memref<8x64xf32, #tpu.memory_space<vmem>>, vector<1x64xf32>
    tpu.vector_store %arg15[%c1, %c0_42], %125 {strides = array<i32>} : memref<8x64xf32, #tpu.memory_space<vmem>>, vector<1x64xf32>,
    %127 = vector.extract_strided_slice %85 {offsets = [2, 0], sizes = [1, 64], strides = [1, 1]} : vector<8x64xf32> to vector<1x64xf32>
    %128 = vector.broadcast %127 : vector<1x64xf32> to vector<16x64xf32>
    %129 = arith.mulf %128, %90 : vector<16x64xf32>
    %130 = math.exp %129 : vector<16x64xf32>
    %131 = arith.mulf %130, %120 : vector<16x64xf32>
    %132 = vector.extract_strided_slice %87 {offsets = [0, 2], sizes = [16, 1], strides = [1, 1]} : vector<16x8xf32> to vector<16x1xf32>
    %133 = vector.extract_strided_slice %91 {offsets = [2, 0], sizes = [1, 64], strides = [1, 1]} : vector<8x64xf32> to vector<1x64xf32>
    %134 = vector.broadcast %132 : vector<16x1xf32> to vector<16x64xf32>
    %135 = vector.broadcast %133 : vector<1x64xf32> to vector<16x64xf32>
    %136 = arith.mulf %134, %135 : vector<16x64xf32>
    %137 = arith.addf %131, %136 : vector<16x64xf32>
    %138 = vector.extract_strided_slice %89 {offsets = [0, 2], sizes = [16, 1], strides = [1, 1]} : vector<16x8xf32> to vector<16x1xf32>
    %139 = vector.broadcast %138 : vector<16x1xf32> to vector<16x64xf32>
    %140 = arith.mulf %137, %139 : vector<16x64xf32>
    %cst_43 = arith.constant dense<0.000000e+00> : vector<64xf32>
    %141 = vector.multi_reduction <add>, %140, %cst_43 [0] : vector<16x64xf32> to vector<64xf32>
    %142 = vector.shape_cast %141 : vector<64xf32> to vector<1x64xf32>
    %c2 = arith.constant 2 : index
    %c0_44 = arith.constant 0 : index
    %143 = vector.load %arg15[%c2, %c0_44] : memref<8x64xf32, #tpu.memory_space<vmem>>, vector<1x64xf32>
    tpu.vector_store %arg15[%c2, %c0_44], %142 {strides = array<i32>} : memref<8x64xf32, #tpu.memory_space<vmem>>, vector<1x64xf32>,
    %144 = vector.extract_strided_slice %85 {offsets = [3, 0], sizes = [1, 64], strides = [1, 1]} : vector<8x64xf32> to vector<1x64xf32>
    %145 = vector.broadcast %144 : vector<1x64xf32> to vector<16x64xf32>
    %146 = arith.mulf %145, %90 : vector<16x64xf32>
    %147 = math.exp %146 : vector<16x64xf32>
    %148 = arith.mulf %147, %137 : vector<16x64xf32>
    %149 = vector.extract_strided_slice %87 {offsets = [0, 3], sizes = [16, 1], strides = [1, 1]} : vector<16x8xf32> to vector<16x1xf32>
    %150 = vector.extract_strided_slice %91 {offsets = [3, 0], sizes = [1, 64], strides = [1, 1]} : vector<8x64xf32> to vector<1x64xf32>
    %151 = vector.broadcast %149 : vector<16x1xf32> to vector<16x64xf32>
    %152 = vector.broadcast %150 : vector<1x64xf32> to vector<16x64xf32>
    %153 = arith.mulf %151, %152 : vector<16x64xf32>
    %154 = arith.addf %148, %153 : vector<16x64xf32>
    %155 = vector.extract_strided_slice %89 {offsets = [0, 3], sizes = [16, 1], strides = [1, 1]} : vector<16x8xf32> to vector<16x1xf32>
    %156 = vector.broadcast %155 : vector<16x1xf32> to vector<16x64xf32>
    %157 = arith.mulf %154, %156 : vector<16x64xf32>
    %cst_45 = arith.constant dense<0.000000e+00> : vector<64xf32>
    %158 = vector.multi_reduction <add>, %157, %cst_45 [0] : vector<16x64xf32> to vector<64xf32>
    %159 = vector.shape_cast %158 : vector<64xf32> to vector<1x64xf32>
    %c3 = arith.constant 3 : index
    %c0_46 = arith.constant 0 : index
    %160 = vector.load %arg15[%c3, %c0_46] : memref<8x64xf32, #tpu.memory_space<vmem>>, vector<1x64xf32>
    tpu.vector_store %arg15[%c3, %c0_46], %159 {strides = array<i32>} : memref<8x64xf32, #tpu.memory_space<vmem>>, vector<1x64xf32>,
    %161 = vector.extract_strided_slice %85 {offsets = [4, 0], sizes = [1, 64], strides = [1, 1]} : vector<8x64xf32> to vector<1x64xf32>
    %162 = vector.broadcast %161 : vector<1x64xf32> to vector<16x64xf32>
    %163 = arith.mulf %162, %90 : vector<16x64xf32>
    %164 = math.exp %163 : vector<16x64xf32>
    %165 = arith.mulf %164, %154 : vector<16x64xf32>
    %166 = vector.extract_strided_slice %87 {offsets = [0, 4], sizes = [16, 1], strides = [1, 1]} : vector<16x8xf32> to vector<16x1xf32>
    %167 = vector.extract_strided_slice %91 {offsets = [4, 0], sizes = [1, 64], strides = [1, 1]} : vector<8x64xf32> to vector<1x64xf32>
    %168 = vector.broadcast %166 : vector<16x1xf32> to vector<16x64xf32>
    %169 = vector.broadcast %167 : vector<1x64xf32> to vector<16x64xf32>
    %170 = arith.mulf %168, %169 : vector<16x64xf32>
    %171 = arith.addf %165, %170 : vector<16x64xf32>
    %172 = vector.extract_strided_slice %89 {offsets = [0, 4], sizes = [16, 1], strides = [1, 1]} : vector<16x8xf32> to vector<16x1xf32>
    %173 = vector.broadcast %172 : vector<16x1xf32> to vector<16x64xf32>
    %174 = arith.mulf %171, %173 : vector<16x64xf32>
    %cst_47 = arith.constant dense<0.000000e+00> : vector<64xf32>
    %175 = vector.multi_reduction <add>, %174, %cst_47 [0] : vector<16x64xf32> to vector<64xf32>
    %176 = vector.shape_cast %175 : vector<64xf32> to vector<1x64xf32>
    %c4 = arith.constant 4 : index
    %c0_48 = arith.constant 0 : index
    %177 = vector.load %arg15[%c4, %c0_48] : memref<8x64xf32, #tpu.memory_space<vmem>>, vector<1x64xf32>
    tpu.vector_store %arg15[%c4, %c0_48], %176 {strides = array<i32>} : memref<8x64xf32, #tpu.memory_space<vmem>>, vector<1x64xf32>,
    %178 = vector.extract_strided_slice %85 {offsets = [5, 0], sizes = [1, 64], strides = [1, 1]} : vector<8x64xf32> to vector<1x64xf32>
    %179 = vector.broadcast %178 : vector<1x64xf32> to vector<16x64xf32>
    %180 = arith.mulf %179, %90 : vector<16x64xf32>
    %181 = math.exp %180 : vector<16x64xf32>
    %182 = arith.mulf %181, %171 : vector<16x64xf32>
    %183 = vector.extract_strided_slice %87 {offsets = [0, 5], sizes = [16, 1], strides = [1, 1]} : vector<16x8xf32> to vector<16x1xf32>
    %184 = vector.extract_strided_slice %91 {offsets = [5, 0], sizes = [1, 64], strides = [1, 1]} : vector<8x64xf32> to vector<1x64xf32>
    %185 = vector.broadcast %183 : vector<16x1xf32> to vector<16x64xf32>
    %186 = vector.broadcast %184 : vector<1x64xf32> to vector<16x64xf32>
    %187 = arith.mulf %185, %186 : vector<16x64xf32>
    %188 = arith.addf %182, %187 : vector<16x64xf32>
    %189 = vector.extract_strided_slice %89 {offsets = [0, 5], sizes = [16, 1], strides = [1, 1]} : vector<16x8xf32> to vector<16x1xf32>
    %190 = vector.broadcast %189 : vector<16x1xf32> to vector<16x64xf32>
    %191 = arith.mulf %188, %190 : vector<16x64xf32>
    %cst_49 = arith.constant dense<0.000000e+00> : vector<64xf32>
    %192 = vector.multi_reduction <add>, %191, %cst_49 [0] : vector<16x64xf32> to vector<64xf32>
    %193 = vector.shape_cast %192 : vector<64xf32> to vector<1x64xf32>
    %c5 = arith.constant 5 : index
    %c0_50 = arith.constant 0 : index
    %194 = vector.load %arg15[%c5, %c0_50] : memref<8x64xf32, #tpu.memory_space<vmem>>, vector<1x64xf32>
    tpu.vector_store %arg15[%c5, %c0_50], %193 {strides = array<i32>} : memref<8x64xf32, #tpu.memory_space<vmem>>, vector<1x64xf32>,
    %195 = vector.extract_strided_slice %85 {offsets = [6, 0], sizes = [1, 64], strides = [1, 1]} : vector<8x64xf32> to vector<1x64xf32>
    %196 = vector.broadcast %195 : vector<1x64xf32> to vector<16x64xf32>
    %197 = arith.mulf %196, %90 : vector<16x64xf32>
    %198 = math.exp %197 : vector<16x64xf32>
    %199 = arith.mulf %198, %188 : vector<16x64xf32>
    %200 = vector.extract_strided_slice %87 {offsets = [0, 6], sizes = [16, 1], strides = [1, 1]} : vector<16x8xf32> to vector<16x1xf32>
    %201 = vector.extract_strided_slice %91 {offsets = [6, 0], sizes = [1, 64], strides = [1, 1]} : vector<8x64xf32> to vector<1x64xf32>
    %202 = vector.broadcast %200 : vector<16x1xf32> to vector<16x64xf32>
    %203 = vector.broadcast %201 : vector<1x64xf32> to vector<16x64xf32>
    %204 = arith.mulf %202, %203 : vector<16x64xf32>
    %205 = arith.addf %199, %204 : vector<16x64xf32>
    %206 = vector.extract_strided_slice %89 {offsets = [0, 6], sizes = [16, 1], strides = [1, 1]} : vector<16x8xf32> to vector<16x1xf32>
    %207 = vector.broadcast %206 : vector<16x1xf32> to vector<16x64xf32>
    %208 = arith.mulf %205, %207 : vector<16x64xf32>
    %cst_51 = arith.constant dense<0.000000e+00> : vector<64xf32>
    %209 = vector.multi_reduction <add>, %208, %cst_51 [0] : vector<16x64xf32> to vector<64xf32>
    %210 = vector.shape_cast %209 : vector<64xf32> to vector<1x64xf32>
    %c6 = arith.constant 6 : index
    %c0_52 = arith.constant 0 : index
    %211 = vector.load %arg15[%c6, %c0_52] : memref<8x64xf32, #tpu.memory_space<vmem>>, vector<1x64xf32>
    tpu.vector_store %arg15[%c6, %c0_52], %210 {strides = array<i32>} : memref<8x64xf32, #tpu.memory_space<vmem>>, vector<1x64xf32>,
    %212 = vector.extract_strided_slice %85 {offsets = [7, 0], sizes = [1, 64], strides = [1, 1]} : vector<8x64xf32> to vector<1x64xf32>
    %213 = vector.broadcast %212 : vector<1x64xf32> to vector<16x64xf32>
    %214 = arith.mulf %213, %90 : vector<16x64xf32>
    %215 = math.exp %214 : vector<16x64xf32>
    %216 = arith.mulf %215, %205 : vector<16x64xf32>
    %217 = vector.extract_strided_slice %87 {offsets = [0, 7], sizes = [16, 1], strides = [1, 1]} : vector<16x8xf32> to vector<16x1xf32>
    %218 = vector.extract_strided_slice %91 {offsets = [7, 0], sizes = [1, 64], strides = [1, 1]} : vector<8x64xf32> to vector<1x64xf32>
    %219 = vector.broadcast %217 : vector<16x1xf32> to vector<16x64xf32>
    %220 = vector.broadcast %218 : vector<1x64xf32> to vector<16x64xf32>
    %221 = arith.mulf %219, %220 : vector<16x64xf32>
    %222 = arith.addf %216, %221 : vector<16x64xf32>
    %223 = vector.extract_strided_slice %89 {offsets = [0, 7], sizes = [16, 1], strides = [1, 1]} : vector<16x8xf32> to vector<16x1xf32>
    %224 = vector.broadcast %223 : vector<16x1xf32> to vector<16x64xf32>
    %225 = arith.mulf %222, %224 : vector<16x64xf32>
    %cst_53 = arith.constant dense<0.000000e+00> : vector<64xf32>
    %226 = vector.multi_reduction <add>, %225, %cst_53 [0] : vector<16x64xf32> to vector<64xf32>
    %227 = vector.shape_cast %226 : vector<64xf32> to vector<1x64xf32>
    %c7 = arith.constant 7 : index
    %c0_54 = arith.constant 0 : index
    %228 = vector.load %arg15[%c7, %c0_54] : memref<8x64xf32, #tpu.memory_space<vmem>>, vector<1x64xf32>
    tpu.vector_store %arg15[%c7, %c0_54], %227 {strides = array<i32>} : memref<8x64xf32, #tpu.memory_space<vmem>>, vector<1x64xf32>,
    %c0_55 = arith.constant 0 : index
    %c0_56 = arith.constant 0 : index
    %229 = vector.load %arg15[%c0_55, %c0_56] : memref<8x64xf32, #tpu.memory_space<vmem>>, vector<8x64xf32>
    %c0_57 = arith.constant 0 : index
    %c0_58 = arith.constant 0 : index
    %230 = vector.load %arg11[%c0_57, %c0_58] : memref<1x64xf32, #tpu.memory_space<vmem>>, vector<1x64xf32>
    %231 = vector.broadcast %230 : vector<1x64xf32> to vector<8x64xf32>
    %232 = arith.mulf %69, %231 : vector<8x64xf32>
    %233 = arith.addf %229, %232 : vector<8x64xf32>
    %cst_59 = arith.constant 0.000000e+00 : f32
    %234 = vector.broadcast %cst_59 : f32 to vector<8x64xf32>
    %235 = arith.subf %234, %36 : vector<8x64xf32>
    %236 = math.exp %235 : vector<8x64xf32>
    %cst_60 = arith.constant 1.000000e+00 : f32
    %237 = vector.broadcast %cst_60 : f32 to vector<8x64xf32>
    %238 = arith.addf %237, %236 : vector<8x64xf32>
    %cst_61 = arith.constant 1.000000e+00 : f32
    %239 = vector.broadcast %cst_61 : f32 to vector<8x64xf32>
    %240 = arith.divf %239, %238 : vector<8x64xf32>
    %241 = arith.mulf %36, %240 : vector<8x64xf32>
    %242 = arith.mulf %233, %241 : vector<8x64xf32>
    %c0_62 = arith.constant 0 : index
    %c0_63 = arith.constant 0 : index
    %243 = vector.load %arg12[%c0_62, %c0_63] : memref<64x32xbf16, #tpu.memory_space<vmem>>, vector<64x32xbf16>
    %244 = arith.truncf %242 : vector<8x64xf32> to vector<8x64xbf16>
    %cst_64 = arith.constant dense<0.000000e+00> : vector<8x32xf32>
    %245 = tpu.matmul %244, %243, %cst_64 {dimension_numbers = #tpu.dot_dimension_numbers<[1], [0], [0], [1], [0, 0, 1, 1], [], []>} : vector<8x64xbf16>, vector<64x32xbf16>, vector<8x32xf32> -> vector<8x32xf32>
    %c0_65 = arith.constant 0 : index
    %c0_66 = arith.constant 0 : index
    %c0_67 = arith.constant 0 : index
    %246 = vector.load %arg13[%c0_65, %c0_66, %c0_67] : memref<1x8x32xf32, #tpu.memory_space<vmem>>, vector<1x8x32xf32>
    %247 = vector.shape_cast %246 : vector<1x8x32xf32> to vector<8x32xf32>
    %248 = vector.shape_cast %245 : vector<8x32xf32> to vector<1x8x32xf32>
    tpu.vector_store %arg13[%c0_65, %c0_66, %c0_67], %248 {strides = array<i32>} : memref<1x8x32xf32, #tpu.memory_space<vmem>>, vector<1x8x32xf32>,
    return
  }
  func.func @transform_0(%arg0: i32) -> (i32, i32, i32) {
    %c0_i32 = arith.constant 0 : i32
    %c0_i32_0 = arith.constant 0 : i32
    %c0_i32_1 = arith.constant 0 : i32
    return %arg0, %c0_i32, %c0_i32_0 : i32, i32, i32
  }
  func.func @transform_1(%arg0: i32) -> (i32, i32, i32) {
    %c0_i32 = arith.constant 0 : i32
    %c0_i32_0 = arith.constant 0 : i32
    %c0_i32_1 = arith.constant 0 : i32
    return %arg0, %c0_i32, %c0_i32_0 : i32, i32, i32
  }
  func.func @transform_2(%arg0: i32) -> (i32, i32) {
    %c0_i32 = arith.constant 0 : i32
    %c0_i32_0 = arith.constant 0 : i32
    %c0_i32_1 = arith.constant 0 : i32
    return %c0_i32, %c0_i32_0 : i32, i32
  }
  func.func @transform_3(%arg0: i32) -> (i32, i32) {
    %c0_i32 = arith.constant 0 : i32
    %c0_i32_0 = arith.constant 0 : i32
    %c0_i32_1 = arith.constant 0 : i32
    return %c0_i32, %c0_i32_0 : i32, i32
  }
  func.func @transform_4(%arg0: i32) -> (i32, i32) {
    %c0_i32 = arith.constant 0 : i32
    %c0_i32_0 = arith.constant 0 : i32
    %c0_i32_1 = arith.constant 0 : i32
    return %c0_i32, %c0_i32_0 : i32, i32
  }
  func.func @transform_5(%arg0: i32) -> (i32, i32) {
    %c0_i32 = arith.constant 0 : i32
    %c0_i32_0 = arith.constant 0 : i32
    %c0_i32_1 = arith.constant 0 : i32
    return %c0_i32, %c0_i32_0 : i32, i32
  }
  func.func @transform_6(%arg0: i32) -> (i32, i32) {
    %c0_i32 = arith.constant 0 : i32
    %c0_i32_0 = arith.constant 0 : i32
    %c0_i32_1 = arith.constant 0 : i32
    return %c0_i32, %c0_i32_0 : i32, i32
  }
  func.func @transform_7(%arg0: i32) -> (i32, i32) {
    %c0_i32 = arith.constant 0 : i32
    %c0_i32_0 = arith.constant 0 : i32
    %c0_i32_1 = arith.constant 0 : i32
    return %c0_i32, %c0_i32_0 : i32, i32
  }
  func.func @transform_8(%arg0: i32) -> (i32, i32) {
    %c0_i32 = arith.constant 0 : i32
    %c0_i32_0 = arith.constant 0 : i32
    %c0_i32_1 = arith.constant 0 : i32
    return %c0_i32, %c0_i32_0 : i32, i32
  }
  func.func @transform_9(%arg0: i32) -> (i32, i32) {
    %c0_i32 = arith.constant 0 : i32
    %c0_i32_0 = arith.constant 0 : i32
    %c0_i32_1 = arith.constant 0 : i32
    return %c0_i32, %c0_i32_0 : i32, i32
  }
  func.func @transform_10(%arg0: i32) -> (i32, i32) {
    %c0_i32 = arith.constant 0 : i32
    %c0_i32_0 = arith.constant 0 : i32
    %c0_i32_1 = arith.constant 0 : i32
    return %c0_i32, %c0_i32_0 : i32, i32
  }
  func.func @transform_11(%arg0: i32) -> (i32, i32) {
    %c0_i32 = arith.constant 0 : i32
    %c0_i32_0 = arith.constant 0 : i32
    %c0_i32_1 = arith.constant 0 : i32
    return %c0_i32, %c0_i32_0 : i32, i32
  }
  func.func @transform_12(%arg0: i32) -> (i32, i32, i32) {
    %c0_i32 = arith.constant 0 : i32
    %c0_i32_0 = arith.constant 0 : i32
    %c0_i32_1 = arith.constant 0 : i32
    return %arg0, %c0_i32, %c0_i32_0 : i32, i32, i32
  }
  func.func @transform_13(%arg0: i32) -> (i32, i32, i32) {
    %c0_i32 = arith.constant 0 : i32
    %c0_i32_0 = arith.constant 0 : i32
    %c0_i32_1 = arith.constant 0 : i32
    return %arg0, %c0_i32, %c0_i32_0 : i32, i32, i32
  }
}

</mosaic_0001>

<llo_original>
// kernel: mask_mamba_forward.7
$region0: #{mask_mamba_forward.7}
  #allocation0 [shape = 'u32[]', space=smem, size = 0x4, offset = 0x4, fixed_abs, tag = 'smem constant byte address 0x4 - core index']
  #allocation1 [shape = 'u32[144,128]{1,0:T(1,128)}', space=vmem, size = 0x12000, scoped, tag = 'internal scratch']
  %s0 = inlined_call_operand.vmem [shape: f32[16,32], index: 0, kind: input, shape index: {}]
  %s1 = inlined_call_operand.vmem [shape: f32[16,32], index: 1, kind: input, shape index: {}]
  %s2 = inlined_call_operand.vmem [shape: f32[1,32], index: 2, kind: input, shape index: {}]
  %s3 = inlined_call_operand.vmem [shape: f32[1,32], index: 3, kind: input, shape index: {}]
  %s4 = inlined_call_operand.vmem [shape: f32[1,32], index: 4, kind: input, shape index: {}]
  %s5 = inlined_call_operand.vmem [shape: f32[1,32], index: 5, kind: input, shape index: {}]
  %s6 = inlined_call_operand.hbm [shape: f32[16,32], index: 6, kind: output, shape index: {}]
  %s7 = sld [smem:[#allocation0]]
  $region34: #{mask_mamba_forward.7} parent=0
    _
  %s9 = ssub.s32 1, %s7
  %s10 = scalar_select 0, %s9, %s7
  $region1: #{mask_mamba_forward.7} parent=0
    #allocation2 [shape = 'u8[8192]{0}', space=vmem, size = 0x2000, scoped, tag = 'output window, operand 0, single buffered']
    #allocation3 [shape = 's32[1]{0}', space=sflag, size = 0x4, scoped, tag = 'scoped memory for mask_mamba_forward.7']
    %11 = vsyncpa [#allocation3], 0
    // Predicated region
    $region2: #{mask_mamba_forward.7} parent=1 // pred_check
      _
    $region3: #{mask_mamba_forward.7} parent=1 // pred_check_branch
      %13 = sbr.rel (0) target = $region5
    $region4: #{mask_mamba_forward.7} parent=1 // pred_region
      _
    $region5: #{mask_mamba_forward.7} parent=1 // pred_fallthru
      _
    // Predicated region
    $region6: #{mask_mamba_forward.7} parent=1 // pred_check
      _
    $region7: #{mask_mamba_forward.7} parent=1 // pred_check_branch
      %15 = sbr.rel (0) target = $region9
    $region8: #{mask_mamba_forward.7} parent=1 // pred_region
      _
    $region9: #{mask_mamba_forward.7} parent=1 // pred_fallthru
      _
    // Predicated region
    $region10: #{mask_mamba_forward.7} parent=1 // pred_check
      _
    $region11: #{mask_mamba_forward.7} parent=1 // pred_check_branch
      %17 = sbr.rel (0) target = $region13
    $region12: #{mask_mamba_forward.7} parent=1 // pred_region
      _
    $region13: #{mask_mamba_forward.7} parent=1 // pred_fallthru
      _
    // Predicated region
    $region14: #{mask_mamba_forward.7} parent=1 // pred_check
      _
    $region15: #{mask_mamba_forward.7} parent=1 // pred_check_branch
      %19 = sbr.rel (0) target = $region17
    $region16: #{mask_mamba_forward.7} parent=1 // pred_region
      _
    $region17: #{mask_mamba_forward.7} parent=1 // pred_fallthru
      _
    // Predicated region
    $region18: #{mask_mamba_forward.7} parent=1 // pred_check
      _
    $region19: #{mask_mamba_forward.7} parent=1 // pred_check_branch
      %21 = sbr.rel (0) target = $region21
    $region20: #{mask_mamba_forward.7} parent=1 // pred_region
      _
    $region21: #{mask_mamba_forward.7} parent=1 // pred_fallthru
      _
    // Predicated region
    $region22: #{mask_mamba_forward.7} parent=1 // pred_check
      _
    $region23: #{mask_mamba_forward.7} parent=1 // pred_check_branch
      %23 = sbr.rel (0) target = $region25
    $region24: #{mask_mamba_forward.7} parent=1 // pred_region
      _
    $region25: #{mask_mamba_forward.7} parent=1 // pred_fallthru
      _
    %v24 = vld [vmem:[%s0] sm:$0xff]
    %v25 = vld [vmem:[%s0 + $0x8] sm:$0xff]
    %v26 = vld [vmem:[%s1] sm:$0xff]
    %v27 = vld [vmem:[%s1 + $0x8] sm:$0xff]
    %v28 = vadd.f32 %v24, %v26
    %v29 = vadd.f32 %v25, %v27
    %v30 = vld [vmem:[%s2] sm:$0x1]
    %v31 = vld [vmem:[%s3] sm:$0x1]
    %vm32 = vcmask 261120
    %v33 = vsel %vm32, %v28, 0.0
    %34 = vadd.xlane.f32.xlu0 %v33
    %v35 = vpop.xlane.xlu0 %34
    %v36 = vsel %vm32, %v29, 0.0
    %37 = vadd.xlane.f32.xlu0 %v36
    %v38 = vpop.xlane.xlu0 %37
    %v39 = vrcp.pop 32.0
    %v40 = vmul.f32 %v35, %v39
    %v41 = vmul.f32 %v38, %v39
    %v42 = vsub.f32 %v28, %v40
    %v43 = vsub.f32 %v29, %v41
    %v44 = vmul.f32 %v42, %v42
    %v45 = vmul.f32 %v43, %v43
    %v46 = vsel %vm32, %v44, 0.0
    %47 = vadd.xlane.f32.xlu0 %v46
    %v48 = vpop.xlane.xlu0 %47
    %v49 = vsel %vm32, %v45, 0.0
    %50 = vadd.xlane.f32.xlu0 %v49
    %v51 = vpop.xlane.xlu0 %50
    %v52 = vmul.f32 %v48, %v39
    %v53 = vmul.f32 %v51, %v39
    %v54 = vadd.f32 %v52, 1e-05
    %v55 = vadd.f32 %v53, 1e-05
    %v56 = vrsqrt.pop %v54
    %v57 = vrsqrt.pop %v55
    %v58 = vmul.f32 %v42, %v56
    %v59 = vmul.f32 %v43, %v57
    %v61 = vlaneseq
    %v62 = vshrl.u32 %v61, 7
    %v63 = vsub.s32 0, %v62
    %v64 = vrot.slane %v30, %v63
    %v66 = vmul.f32 %v58, %v64
    %v67 = vmul.f32 %v59, %v64
    %v69 = vlaneseq
    %v70 = vshrl.u32 %v69, 7
    %v71 = vsub.s32 0, %v70
    %v72 = vrot.slane %v31, %v71
    %v74 = vadd.f32 %v66, %v72
    %v75 = vadd.f32 %v67, %v72
    %v76 = vld [vmem:[%s4] sm:$0x1]
    %v77 = vld [vmem:[%s5] sm:$0x1]
    %v78 = vsel %vm32, %v74, 0.0
    %79 = vadd.xlane.f32.xlu0 %v78
    %v80 = vpop.xlane.xlu0 %79
    %v81 = vsel %vm32, %v75, 0.0
    %82 = vadd.xlane.f32.xlu0 %v81
    %v83 = vpop.xlane.xlu0 %82
    %v84 = vmul.f32 %v80, %v39
    %v85 = vmul.f32 %v83, %v39
    %v86 = vsub.f32 %v74, %v84
    %v87 = vsub.f32 %v75, %v85
    %v88 = vmul.f32 %v86, %v86
    %v89 = vmul.f32 %v87, %v87
    %v90 = vsel %vm32, %v88, 0.0
    %91 = vadd.xlane.f32.xlu0 %v90
    %v92 = vpop.xlane.xlu0 %91
    %v93 = vsel %vm32, %v89, 0.0
    %94 = vadd.xlane.f32.xlu0 %v93
    %v95 = vpop.xlane.xlu0 %94
    %v96 = vmul.f32 %v92, %v39
    %v97 = vmul.f32 %v95, %v39
    %v98 = vadd.f32 %v96, 1e-05
    %v99 = vadd.f32 %v97, 1e-05
    %v100 = vrsqrt.pop %v98
    %v101 = vrsqrt.pop %v99
    %v102 = vmul.f32 %v86, %v100
    %v103 = vmul.f32 %v87, %v101
    %v105 = vlaneseq
    %v106 = vshrl.u32 %v105, 7
    %v107 = vsub.s32 0, %v106
    %v108 = vrot.slane %v76, %v107
    %v110 = vmul.f32 %v102, %v108
    %v111 = vmul.f32 %v103, %v108
    %v113 = vlaneseq
    %v114 = vshrl.u32 %v113, 7
    %v115 = vsub.s32 0, %v114
    %v116 = vrot.slane %v77, %v115
    %v118 = vadd.f32 %v110, %v116
    %v119 = vadd.f32 %v111, %v116
    %120 = vst.msk [vmem:[#allocation2] sm:$0xff] %vm32, %v118
    %121 = vst.msk [vmem:[#allocation2 + $0x8] sm:$0xff] %vm32, %v119
    // Predicated region
    $region26: #{mask_mamba_forward.7} parent=1 // pred_check
      _
    $region27: #{mask_mamba_forward.7} parent=1 // pred_check_branch
      %123 = sbr.rel (0) target = $region29
    $region28: #{mask_mamba_forward.7} parent=1 // pred_region
      %s125 = ssub.s32 256, 256
      %126 = vsyncadd [#allocation3], %s125
      %s127 = sshll.u32 [#allocation2], 4
      %s128 = int_to_ptr.vmem [resolvable:$true] %s127
      %133 = dma.vmem_to_hbm [thread:$0]  %s128, 256, %s6, [#allocation3], 128, 128, 8
    $region29: #{mask_mamba_forward.7} parent=1 // pred_fallthru
      _
    // Predicated region
    $region30: #{mask_mamba_forward.7} parent=1 // pred_check
      _
    $region31: #{mask_mamba_forward.7} parent=1 // pred_check_branch
      %135 = sbr.rel (0) target = $region33
    $region32: #{mask_mamba_forward.7} parent=1 // pred_region
      %136 = dma.done [#allocation3], 256
    $region33: #{mask_mamba_forward.7} parent=1 // pred_fallthru
      _
    %137 = vsyncpa [#allocation3], 1

// kernel: mask_mamba_forward.5
$region0: #{mask_mamba_forward.5}
  #allocation0 [shape = 'u32[]', space=smem, size = 0x4, offset = 0x4, fixed_abs, tag = 'smem constant byte address 0x4 - core index']
  #allocation1 [shape = 'u32[144,128]{1,0:T(1,128)}', space=vmem, size = 0x12000, scoped, tag = 'internal scratch']
  #allocation2 [shape = 'f32[8,64]{1,0:T(8,128)}', space=vmem, size = 0x1000, scoped, tag = 'scratch operand']
  %s0 = inlined_call_operand.vmem [shape: f32[2,8,32], index: 0, kind: input, shape index: {}]
  %s1 = inlined_call_operand.vmem [shape: f32[2,8,32], index: 1, kind: input, shape index: {}]
  %s2 = inlined_call_operand.vmem [shape: f32[1,32], index: 2, kind: input, shape index: {}]
  %s3 = inlined_call_operand.vmem [shape: f32[1,32], index: 3, kind: input, shape index: {}]
  %s4 = inlined_call_operand.vmem [shape: bf16[32,128], index: 4, kind: input, shape index: {}]
  %s5 = inlined_call_operand.vmem [shape: f32[4,64], index: 5, kind: input, shape index: {}]
  %s6 = inlined_call_operand.vmem [shape: f32[1,64], index: 6, kind: input, shape index: {}]
  %s7 = inlined_call_operand.vmem [shape: f32[64,96], index: 7, kind: input, shape index: {}]
  %s8 = inlined_call_operand.vmem [shape: f32[1,64], index: 8, kind: input, shape index: {}]
  %s9 = inlined_call_operand.vmem [shape: f32[16,64], index: 9, kind: input, shape index: {}]
  %s10 = inlined_call_operand.vmem [shape: f32[1,64], index: 10, kind: input, shape index: {}]
  %s11 = inlined_call_operand.vmem [shape: bf16[64,32], index: 11, kind: input, shape index: {}]
  %s12 = inlined_call_operand.vmem [shape: f32[2,8,32], index: 12, kind: output, shape index: {0}]
  %s13 = inlined_call_operand.vmem [shape: f32[2,8,32], index: 13, kind: output, shape index: {1}]
  %14 = xla_tuple %s12, %s13
  %s15 = sld [smem:[#allocation0]]
  $region89: #{mask_mamba_forward.5} parent=0
    _
  %s17 = ssub.s32 1, %s15
  %s18 = scalar_select 0, %s17, %s15
  loop: start=0, step=1, limit=4
  $region2: #{mask_mamba_forward.5} parent=0 // loop_pre_header
    _
  $region3: #{mask_mamba_forward.5} parent=0 // loop_header
    %s20 = sphi 0, %s24
    %p21 = scmp.ge.s32.totalorder %s20, 4
    %s30 = sphi 0, %s32
    %s33 = sphi 0, %s30
    %s34 = sphi 0, %s33
    %s50 = sphi 0, %s34
    %s56 = sphi 0, %s58
    %s59 = sphi 0, %s56
    %s60 = sphi 0, %s59
    %s76 = sphi 0, %s60
    %s80 = sphi 0, %s80
    %s82 = sphi 0, %s80
    %s83 = sphi 0, %s82
    %s97 = sphi 0, %s83
    %s101 = sphi 0, %s101
    %s103 = sphi 0, %s101
    %s104 = sphi 0, %s103
    %s118 = sphi 0, %s104
    %s122 = sphi 0, %s122
    %s124 = sphi 0, %s122
    %s125 = sphi 0, %s124
    %s139 = sphi 0, %s125
    %s143 = sphi 0, %s143
    %s145 = sphi 0, %s143
    %s146 = sphi 0, %s145
    %s160 = sphi 0, %s146
    %s164 = sphi 0, %s164
    %s166 = sphi 0, %s164
    %s167 = sphi 0, %s166
    %s181 = sphi 0, %s167
    %s185 = sphi 0, %s185
    %s187 = sphi 0, %s185
    %s188 = sphi 0, %s187
    %s202 = sphi 0, %s188
    %s206 = sphi 0, %s206
    %s208 = sphi 0, %s206
    %s209 = sphi 0, %s208
    %s223 = sphi 0, %s209
    %s227 = sphi 0, %s227
    %s229 = sphi 0, %s227
    %s230 = sphi 0, %s229
    %s244 = sphi 0, %s230
    %s248 = sphi 0, %s248
    %s250 = sphi 0, %s248
    %s251 = sphi 0, %s250
    %s265 = sphi 0, %s251
    %s269 = sphi 0, %s269
    %s271 = sphi 0, %s269
    %s272 = sphi 0, %s271
    %s286 = sphi 0, %s272
    %s292 = sphi 0, %s294
    %s295 = sphi 0, %s292
    %s296 = sphi 0, %s295
    %s312 = sphi 0, %s296
    %s318 = sphi 0, %s320
    %s321 = sphi 0, %s318
    %s322 = sphi 0, %s321
    %s338 = sphi 0, %s322
  $region4: #{mask_mamba_forward.5} parent=0 // loop_header_branch
    %23 = sbr.rel (%p21) target = $region8
  $region5: #{mask_mamba_forward.5} parent=0 // loop_body
    %s25 = ssub.s32 %s20, 1
    %s26 = ssub.s32 %s20, 2
    %s27 = sadd.s32 %s20, 1
    %s28 = ssub.s32 %s20, %s27
    %p29 = scmp.eq.s32.totalorder %s28, 0
    %s31 = sadd.s32 %s30, 1
    %s32 = scalar_select %p29, %s30, %s31
    %p35 = pneg %p29
    %p36 = scmp.eq.s32.totalorder %s20, 1
    %p37 = por %p35, %p36
    %p38 = scmp.ne.s32.totalorder %s30, %s33
    %p39 = scmp.eq.s32.totalorder %s20, 0
    %p40 = por %p38, %p39
    %p41 = scmp.ne.s32.totalorder %s30, %s33
    %p42 = scmp.eq.s32.totalorder %s25, 1
    %p43 = por %p41, %p42
    %p44 = scmp.ne.s32.totalorder %s33, %s34
    %p45 = scmp.eq.s32.totalorder %s25, 0
    %p46 = por %p44, %p45
    %p47 = scmp.ne.s32.totalorder %s33, %s34
    %p48 = scmp.eq.s32.totalorder %s26, 1
    %p49 = por %p47, %p48
    %p51 = scmp.ne.s32.totalorder %s34, %s50
    %p52 = scmp.eq.s32.totalorder %s26, 0
    %p53 = por %p51, %p52
    %s54 = ssub.s32 %s20, %s27
    %p55 = scmp.eq.s32.totalorder %s54, 0
    %s57 = sadd.s32 %s56, 1
    %s58 = scalar_select %p55, %s56, %s57
    %p61 = pneg %p55
    %p62 = scmp.eq.s32.totalorder %s20, 1
    %p63 = por %p61, %p62
    %p64 = scmp.ne.s32.totalorder %s56, %s59
    %p65 = scmp.eq.s32.totalorder %s20, 0
    %p66 = por %p64, %p65
    %p67 = scmp.ne.s32.totalorder %s56, %s59
    %p68 = scmp.eq.s32.totalorder %s25, 1
    %p69 = por %p67, %p68
    %p70 = scmp.ne.s32.totalorder %s59, %s60
    %p71 = scmp.eq.s32.totalorder %s25, 0
    %p72 = por %p70, %p71
    %p73 = scmp.ne.s32.totalorder %s59, %s60
    %p74 = scmp.eq.s32.totalorder %s26, 1
    %p75 = por %p73, %p74
    %p77 = scmp.ne.s32.totalorder %s60, %s76
    %p78 = scmp.eq.s32.totalorder %s26, 0
    %p79 = por %p77, %p78
    %s81 = sadd.s32 %s80, 1
    %p84 = scmp.eq.s32.totalorder %s20, 1
    %p85 = scmp.ne.s32.totalorder %s80, %s82
    %p86 = scmp.eq.s32.totalorder %s20, 0
    %p87 = por %p85, %p86
    %p88 = scmp.ne.s32.totalorder %s80, %s82
    %p89 = scmp.eq.s32.totalorder %s25, 1
    %p90 = por %p88, %p89
    %p91 = scmp.ne.s32.totalorder %s82, %s83
    %p92 = scmp.eq.s32.totalorder %s25, 0
    %p93 = por %p91, %p92
    %p94 = scmp.ne.s32.totalorder %s82, %s83
    %p95 = scmp.eq.s32.totalorder %s26, 1
    %p96 = por %p94, %p95
    %p98 = scmp.ne.s32.totalorder %s83, %s97
    %p99 = scmp.eq.s32.totalorder %s26, 0
    %p100 = por %p98, %p99
    %s102 = sadd.s32 %s101, 1
    %p105 = scmp.eq.s32.totalorder %s20, 1
    %p106 = scmp.ne.s32.totalorder %s101, %s103
    %p107 = scmp.eq.s32.totalorder %s20, 0
    %p108 = por %p106, %p107
    %p109 = scmp.ne.s32.totalorder %s101, %s103
    %p110 = scmp.eq.s32.totalorder %s25, 1
    %p111 = por %p109, %p110
    %p112 = scmp.ne.s32.totalorder %s103, %s104
    %p113 = scmp.eq.s32.totalorder %s25, 0
    %p114 = por %p112, %p113
    %p115 = scmp.ne.s32.totalorder %s103, %s104
    %p116 = scmp.eq.s32.totalorder %s26, 1
    %p117 = por %p115, %p116
    %p119 = scmp.ne.s32.totalorder %s104, %s118
    %p120 = scmp.eq.s32.totalorder %s26, 0
    %p121 = por %p119, %p120
    %s123 = sadd.s32 %s122, 1
    %p126 = scmp.eq.s32.totalorder %s20, 1
    %p127 = scmp.ne.s32.totalorder %s122, %s124
    %p128 = scmp.eq.s32.totalorder %s20, 0
    %p129 = por %p127, %p128
    %p130 = scmp.ne.s32.totalorder %s122, %s124
    %p131 = scmp.eq.s32.totalorder %s25, 1
    %p132 = por %p130, %p131
    %p133 = scmp.ne.s32.totalorder %s124, %s125
    %p134 = scmp.eq.s32.totalorder %s25, 0
    %p135 = por %p133, %p134
    %p136 = scmp.ne.s32.totalorder %s124, %s125
    %p137 = scmp.eq.s32.totalorder %s26, 1
    %p138 = por %p136, %p137
    %p140 = scmp.ne.s32.totalorder %s125, %s139
    %p141 = scmp.eq.s32.totalorder %s26, 0
    %p142 = por %p140, %p141
    %s144 = sadd.s32 %s143, 1
    %p147 = scmp.eq.s32.totalorder %s20, 1
    %p148 = scmp.ne.s32.totalorder %s143, %s145
    %p149 = scmp.eq.s32.totalorder %s20, 0
    %p150 = por %p148, %p149
    %p151 = scmp.ne.s32.totalorder %s143, %s145
    %p152 = scmp.eq.s32.totalorder %s25, 1
    %p153 = por %p151, %p152
    %p154 = scmp.ne.s32.totalorder %s145, %s146
    %p155 = scmp.eq.s32.totalorder %s25, 0
    %p156 = por %p154, %p155
    %p157 = scmp.ne.s32.totalorder %s145, %s146
    %p158 = scmp.eq.s32.totalorder %s26, 1
    %p159 = por %p157, %p158
    %p161 = scmp.ne.s32.totalorder %s146, %s160
    %p162 = scmp.eq.s32.totalorder %s26, 0
    %p163 = por %p161, %p162
    %s165 = sadd.s32 %s164, 1
    %p168 = scmp.eq.s32.totalorder %s20, 1
    %p169 = scmp.ne.s32.totalorder %s164, %s166
    %p170 = scmp.eq.s32.totalorder %s20, 0
    %p171 = por %p169, %p170
    %p172 = scmp.ne.s32.totalorder %s164, %s166
    %p173 = scmp.eq.s32.totalorder %s25, 1
    %p174 = por %p172, %p173
    %p175 = scmp.ne.s32.totalorder %s166, %s167
    %p176 = scmp.eq.s32.totalorder %s25, 0
    %p177 = por %p175, %p176
    %p178 = scmp.ne.s32.totalorder %s166, %s167
    %p179 = scmp.eq.s32.totalorder %s26, 1
    %p180 = por %p178, %p179
    %p182 = scmp.ne.s32.totalorder %s167, %s181
    %p183 = scmp.eq.s32.totalorder %s26, 0
    %p184 = por %p182, %p183
    %s186 = sadd.s32 %s185, 1
    %p189 = scmp.eq.s32.totalorder %s20, 1
    %p190 = scmp.ne.s32.totalorder %s185, %s187
    %p191 = scmp.eq.s32.totalorder %s20, 0
    %p192 = por %p190, %p191
    %p193 = scmp.ne.s32.totalorder %s185, %s187
    %p194 = scmp.eq.s32.totalorder %s25, 1
    %p195 = por %p193, %p194
    %p196 = scmp.ne.s32.totalorder %s187, %s188
    %p197 = scmp.eq.s32.totalorder %s25, 0
    %p198 = por %p196, %p197
    %p199 = scmp.ne.s32.totalorder %s187, %s188
    %p200 = scmp.eq.s32.totalorder %s26, 1
    %p201 = por %p199, %p200
    %p203 = scmp.ne.s32.totalorder %s188, %s202
    %p204 = scmp.eq.s32.totalorder %s26, 0
    %p205 = por %p203, %p204
    %s207 = sadd.s32 %s206, 1
    %p210 = scmp.eq.s32.totalorder %s20, 1
    %p211 = scmp.ne.s32.totalorder %s206, %s208
    %p212 = scmp.eq.s32.totalorder %s20, 0
    %p213 = por %p211, %p212
    %p214 = scmp.ne.s32.totalorder %s206, %s208
    %p215 = scmp.eq.s32.totalorder %s25, 1
    %p216 = por %p214, %p215
    %p217 = scmp.ne.s32.totalorder %s208, %s209
    %p218 = scmp.eq.s32.totalorder %s25, 0
    %p219 = por %p217, %p218
    %p220 = scmp.ne.s32.totalorder %s208, %s209
    %p221 = scmp.eq.s32.totalorder %s26, 1
    %p222 = por %p220, %p221
    %p224 = scmp.ne.s32.totalorder %s209, %s223
    %p225 = scmp.eq.s32.totalorder %s26, 0
    %p226 = por %p224, %p225
    %s228 = sadd.s32 %s227, 1
    %p231 = scmp.eq.s32.totalorder %s20, 1
    %p232 = scmp.ne.s32.totalorder %s227, %s229
    %p233 = scmp.eq.s32.totalorder %s20, 0
    %p234 = por %p232, %p233
    %p235 = scmp.ne.s32.totalorder %s227, %s229
    %p236 = scmp.eq.s32.totalorder %s25, 1
    %p237 = por %p235, %p236
    %p238 = scmp.ne.s32.totalorder %s229, %s230
    %p239 = scmp.eq.s32.totalorder %s25, 0
    %p240 = por %p238, %p239
    %p241 = scmp.ne.s32.totalorder %s229, %s230
    %p242 = scmp.eq.s32.totalorder %s26, 1
    %p243 = por %p241, %p242
    %p245 = scmp.ne.s32.totalorder %s230, %s244
    %p246 = scmp.eq.s32.totalorder %s26, 0
    %p247 = por %p245, %p246
    %s249 = sadd.s32 %s248, 1
    %p252 = scmp.eq.s32.totalorder %s20, 1
    %p253 = scmp.ne.s32.totalorder %s248, %s250
    %p254 = scmp.eq.s32.totalorder %s20, 0
    %p255 = por %p253, %p254
    %p256 = scmp.ne.s32.totalorder %s248, %s250
    %p257 = scmp.eq.s32.totalorder %s25, 1
    %p258 = por %p256, %p257
    %p259 = scmp.ne.s32.totalorder %s250, %s251
    %p260 = scmp.eq.s32.totalorder %s25, 0
    %p261 = por %p259, %p260
    %p262 = scmp.ne.s32.totalorder %s250, %s251
    %p263 = scmp.eq.s32.totalorder %s26, 1
    %p264 = por %p262, %p263
    %p266 = scmp.ne.s32.totalorder %s251, %s265
    %p267 = scmp.eq.s32.totalorder %s26, 0
    %p268 = por %p266, %p267
    %s270 = sadd.s32 %s269, 1
    %p273 = scmp.eq.s32.totalorder %s20, 1
    %p274 = scmp.ne.s32.totalorder %s269, %s271
    %p275 = scmp.eq.s32.totalorder %s20, 0
    %p276 = por %p274, %p275
    %p277 = scmp.ne.s32.totalorder %s269, %s271
    %p278 = scmp.eq.s32.totalorder %s25, 1
    %p279 = por %p277, %p278
    %p280 = scmp.ne.s32.totalorder %s271, %s272
    %p281 = scmp.eq.s32.totalorder %s25, 0
    %p282 = por %p280, %p281
    %p283 = scmp.ne.s32.totalorder %s271, %s272
    %p284 = scmp.eq.s32.totalorder %s26, 1
    %p285 = por %p283, %p284
    %p287 = scmp.ne.s32.totalorder %s272, %s286
    %p288 = scmp.eq.s32.totalorder %s26, 0
    %p289 = por %p287, %p288
    %s290 = ssub.s32 %s20, %s27
    %p291 = scmp.eq.s32.totalorder %s290, 0
    %s293 = sadd.s32 %s292, 1
    %s294 = scalar_select %p291, %s292, %s293
    %p297 = pneg %p291
    %p298 = scmp.eq.s32.totalorder %s20, 1
    %p299 = por %p297, %p298
    %p300 = scmp.ne.s32.totalorder %s292, %s295
    %p301 = scmp.eq.s32.totalorder %s20, 0
    %p302 = por %p300, %p301
    %p303 = scmp.ne.s32.totalorder %s292, %s295
    %p304 = scmp.eq.s32.totalorder %s25, 1
    %p305 = por %p303, %p304
    %p306 = scmp.ne.s32.totalorder %s295, %s296
    %p307 = scmp.eq.s32.totalorder %s25, 0
    %p308 = por %p306, %p307
    %p309 = scmp.ne.s32.totalorder %s295, %s296
    %p310 = scmp.eq.s32.totalorder %s26, 1
    %p311 = por %p309, %p310
    %p313 = scmp.ne.s32.totalorder %s296, %s312
    %p314 = scmp.eq.s32.totalorder %s26, 0
    %p315 = por %p313, %p314
    %s316 = ssub.s32 %s20, %s27
    %p317 = scmp.eq.s32.totalorder %s316, 0
    %s319 = sadd.s32 %s318, 1
    %s320 = scalar_select %p317, %s318, %s319
    %p323 = pneg %p317
    %p324 = scmp.eq.s32.totalorder %s20, 1
    %p325 = por %p323, %p324
    %p326 = scmp.ne.s32.totalorder %s318, %s321
    %p327 = scmp.eq.s32.totalorder %s20, 0
    %p328 = por %p326, %p327
    %p329 = scmp.ne.s32.totalorder %s318, %s321
    %p330 = scmp.eq.s32.totalorder %s25, 1
    %p331 = por %p329, %p330
    %p332 = scmp.ne.s32.totalorder %s321, %s322
    %p333 = scmp.eq.s32.totalorder %s25, 0
    %p334 = por %p332, %p333
    %p335 = scmp.ne.s32.totalorder %s321, %s322
    %p336 = scmp.eq.s32.totalorder %s26, 1
    %p337 = por %p335, %p336
    %p339 = scmp.ne.s32.totalorder %s322, %s338
    %p340 = scmp.eq.s32.totalorder %s26, 0
    %p341 = por %p339, %p340
    %p342 = scmp.le.s32.totalorder 1, %s20
    %p343 = scmp.lt.s32.totalorder %s20, 3
    %p344 = pnand %p342, %p343
    %p345 = pneg %p344
    // Predicated region
    $region9: #{mask_mamba_forward.5} parent=5 // pred_check
      _
    $region10: #{mask_mamba_forward.5} parent=5 // pred_check_branch
      %347 = sbr.rel (%p344) target = $region12
    $region11: #{mask_mamba_forward.5} parent=5 // pred_region
      %s348 = ssub.s32 %s20, 1
      // Predicated region
      $region13: #{mask_mamba_forward.5} parent=11 // pred_check
        %p349 = pneg %p93
      $region14: #{mask_mamba_forward.5} parent=11 // pred_check_branch
        %351 = sbr.rel (%p349) target = $region16
      $region15: #{mask_mamba_forward.5} parent=11 // pred_region
        _
      $region16: #{mask_mamba_forward.5} parent=11 // pred_fallthru
        _
      // Predicated region
      $region17: #{mask_mamba_forward.5} parent=11 // pred_check
        %p352 = pneg %p114
      $region18: #{mask_mamba_forward.5} parent=11 // pred_check_branch
        %354 = sbr.rel (%p352) target = $region20
      $region19: #{mask_mamba_forward.5} parent=11 // pred_region
        _
      $region20: #{mask_mamba_forward.5} parent=11 // pred_fallthru
        _
      // Predicated region
      $region21: #{mask_mamba_forward.5} parent=11 // pred_check
        %p355 = pneg %p135
      $region22: #{mask_mamba_forward.5} parent=11 // pred_check_branch
        %357 = sbr.rel (%p355) target = $region24
      $region23: #{mask_mamba_forward.5} parent=11 // pred_region
        _
      $region24: #{mask_mamba_forward.5} parent=11 // pred_fallthru
        _
      // Predicated region
      $region25: #{mask_mamba_forward.5} parent=11 // pred_check
        %p358 = pneg %p156
      $region26: #{mask_mamba_forward.5} parent=11 // pred_check_branch
        %360 = sbr.rel (%p358) target = $region28
      $region27: #{mask_mamba_forward.5} parent=11 // pred_region
        _
      $region28: #{mask_mamba_forward.5} parent=11 // pred_fallthru
        _
      // Predicated region
      $region29: #{mask_mamba_forward.5} parent=11 // pred_check
        %p361 = pneg %p177
      $region30: #{mask_mamba_forward.5} parent=11 // pred_check_branch
        %363 = sbr.rel (%p361) target = $region32
      $region31: #{mask_mamba_forward.5} parent=11 // pred_region
        _
      $region32: #{mask_mamba_forward.5} parent=11 // pred_fallthru
        _
      // Predicated region
      $region33: #{mask_mamba_forward.5} parent=11 // pred_check
        %p364 = pneg %p198
      $region34: #{mask_mamba_forward.5} parent=11 // pred_check_branch
        %366 = sbr.rel (%p364) target = $region36
      $region35: #{mask_mamba_forward.5} parent=11 // pred_region
        _
      $region36: #{mask_mamba_forward.5} parent=11 // pred_fallthru
        _
      // Predicated region
      $region37: #{mask_mamba_forward.5} parent=11 // pred_check
        %p367 = pneg %p219
      $region38: #{mask_mamba_forward.5} parent=11 // pred_check_branch
        %369 = sbr.rel (%p367) target = $region40
      $region39: #{mask_mamba_forward.5} parent=11 // pred_region
        _
      $region40: #{mask_mamba_forward.5} parent=11 // pred_fallthru
        _
      // Predicated region
      $region41: #{mask_mamba_forward.5} parent=11 // pred_check
        %p370 = pneg %p240
      $region42: #{mask_mamba_forward.5} parent=11 // pred_check_branch
        %372 = sbr.rel (%p370) target = $region44
      $region43: #{mask_mamba_forward.5} parent=11 // pred_region
        _
      $region44: #{mask_mamba_forward.5} parent=11 // pred_fallthru
        _
      // Predicated region
      $region45: #{mask_mamba_forward.5} parent=11 // pred_check
        %p373 = pneg %p261
      $region46: #{mask_mamba_forward.5} parent=11 // pred_check_branch
        %375 = sbr.rel (%p373) target = $region48
      $region47: #{mask_mamba_forward.5} parent=11 // pred_region
        _
      $region48: #{mask_mamba_forward.5} parent=11 // pred_fallthru
        _
      // Predicated region
      $region49: #{mask_mamba_forward.5} parent=11 // pred_check
        %p376 = pneg %p282
      $region50: #{mask_mamba_forward.5} parent=11 // pred_check_branch
        %378 = sbr.rel (%p376) target = $region52
      $region51: #{mask_mamba_forward.5} parent=11 // pred_region
        _
      $region52: #{mask_mamba_forward.5} parent=11 // pred_fallthru
        _
    $region12: #{mask_mamba_forward.5} parent=5 // pred_fallthru
      _
    %p379 = scmp.lt.s32.totalorder %s20, 2
    // Predicated region
    $region53: #{mask_mamba_forward.5} parent=5 // pred_check
      %p380 = pneg %p379
    $region54: #{mask_mamba_forward.5} parent=5 // pred_check_branch
      %382 = sbr.rel (%p380) target = $region56
    $region55: #{mask_mamba_forward.5} parent=5 // pred_region
      // Predicated region
      $region57: #{mask_mamba_forward.5} parent=55 // pred_check
        %p383 = pneg %p40
      $region58: #{mask_mamba_forward.5} parent=55 // pred_check_branch
        %385 = sbr.rel (%p383) target = $region60
      $region59: #{mask_mamba_forward.5} parent=55 // pred_region
        %p386 = scmp.lt.s32.totalorder %s20, 1
        %s387 = scalar_select %p386, %s20, 1
        %s388 = smul.addr %s387, 8
        %s389 = scalar_lea.vmem %s0, %s388
      $region60: #{mask_mamba_forward.5} parent=55 // pred_fallthru
        _
      // Predicated region
      $region61: #{mask_mamba_forward.5} parent=55 // pred_check
        %p390 = pneg %p66
      $region62: #{mask_mamba_forward.5} parent=55 // pred_check_branch
        %392 = sbr.rel (%p390) target = $region64
      $region63: #{mask_mamba_forward.5} parent=55 // pred_region
        %p393 = scmp.lt.s32.totalorder %s20, 1
        %s394 = scalar_select %p393, %s20, 1
        %s395 = smul.addr %s394, 8
        %s396 = scalar_lea.vmem %s1, %s395
      $region64: #{mask_mamba_forward.5} parent=55 // pred_fallthru
        _
    $region56: #{mask_mamba_forward.5} parent=5 // pred_fallthru
      _
    %p397 = scmp.le.s32.totalorder 1, %s20
    %p398 = scmp.lt.s32.totalorder %s20, 3
    %p399 = pnand %p397, %p398
    %p400 = pneg %p399
    // Predicated region
    $region65: #{mask_mamba_forward.5} parent=5 // pred_check
      _
    $region66: #{mask_mamba_forward.5} parent=5 // pred_check_branch
      %402 = sbr.rel (%p399) target = $region68
    $region67: #{mask_mamba_forward.5} parent=5 // pred_region
      %s403 = ssub.s32 %s20, 1
      %p404 = scmp.lt.s32.totalorder %s25, 1
      %s405 = scalar_select %p404, %s25, 1
      %s406 = smul.addr %s405, 8
      %s407 = scalar_lea.vmem %s0, %s406
      %p408 = pneg %p46
      %p409 = pneg %p43
      %p410 = scmp.lt.s32.totalorder %s25, 1
      %s411 = scalar_select %p410, %s25, 1
      %s412 = smul.addr %s411, 8
      %s413 = scalar_lea.vmem %s1, %s412
      %p414 = pneg %p72
      %p415 = pneg %p69
      %p416 = pneg %p93
      %p417 = pneg %p90
      %p418 = pneg %p114
      %p419 = pneg %p111
      %p420 = pneg %p135
      %p421 = pneg %p132
      %p422 = pneg %p156
      %p423 = pneg %p153
      %p424 = pneg %p177
      %p425 = pneg %p174
      %p426 = pneg %p198
      %p427 = pneg %p195
      %p428 = pneg %p219
      %p429 = pneg %p216
      %p430 = pneg %p240
      %p431 = pneg %p237
      %p432 = pneg %p261
      %p433 = pneg %p258
      %p434 = pneg %p282
      %p435 = pneg %p279
      %p436 = pneg %p308
      %p437 = pneg %p305
      %p438 = scmp.lt.s32.totalorder %s25, 1
      %s439 = scalar_select %p438, %s25, 1
      %s440 = smul.addr %s439, 8
      %s441 = scalar_lea.vmem %s12, %s440
      %p442 = pneg %p334
      %p443 = pneg %p331
      %p444 = scmp.lt.s32.totalorder %s25, 1
      %s445 = scalar_select %p444, %s25, 1
      %s446 = smul.addr %s445, 8
      %s447 = scalar_lea.vmem %s13, %s446
      %p448 = scmp.lt.s32.totalorder %s25, 1
      %s449 = scalar_select %p448, %s25, 1
      %s450 = smul.addr %s449, 8
      %s451 = scalar_lea.vmem %s0, %s450
      %p452 = scmp.lt.s32.totalorder %s25, 1
      %s453 = scalar_select %p452, %s25, 1
      %s454 = smul.addr %s453, 8
      %s455 = scalar_lea.vmem %s1, %s454
      %p456 = scmp.lt.s32.totalorder %s25, 1
      %s457 = scalar_select %p456, %s25, 1
      %s458 = smul.addr %s457, 8
      %s459 = scalar_lea.vmem %s12, %s458
      %p460 = scmp.lt.s32.totalorder %s25, 1
      %s461 = scalar_select %p460, %s25, 1
      %s462 = smul.addr %s461, 8
      %s463 = scalar_lea.vmem %s13, %s462
      %v465 = vld [vmem:[%s451] sm:$0xff]
      %v466 = vld [vmem:[%s455] sm:$0xff]
      %v467 = vadd.f32 %v465, %v466
      %vm468 = vcmask 261120
      %469 = vst.msk [vmem:[%s463] sm:$0xff] %vm468, %v467
      %v470 = vld [vmem:[%s2] sm:$0x1]
      %v471 = vld [vmem:[%s3] sm:$0x1]
      %v472 = vsel %vm468, %v467, 0.0
      %473 = vadd.xlane.f32.xlu0 %v472
      %v474 = vpop.xlane.xlu0 %473
      %v475 = vrcp.pop 32.0
      %v476 = vmul.f32 %v474, %v475
      %v477 = vsub.f32 %v467, %v476
      %v478 = vmul.f32 %v477, %v477
      %v479 = vsel %vm468, %v478, 0.0
      %480 = vadd.xlane.f32.xlu0 %v479
      %v481 = vpop.xlane.xlu0 %480
      %v482 = vmul.f32 %v481, %v475
      %v483 = vadd.f32 %v482, 1e-05
      %v484 = vrsqrt.pop %v483
      %v485 = vmul.f32 %v477, %v484
      %v487 = vlaneseq
      %v488 = vshrl.u32 %v487, 7
      %v489 = vsub.s32 0, %v488
      %v490 = vrot.slane %v470, %v489
      %v492 = vmul.f32 %v485, %v490
      %v494 = vlaneseq
      %v495 = vshrl.u32 %v494, 7
      %v496 = vsub.s32 0, %v495
      %v497 = vrot.slane %v471, %v496
      %v499 = vadd.f32 %v492, %v497
      %v500 = vld [vmem:[%s4] sm:$0xf]
      %v501 = vld [vmem:[%s4 + $0x4] sm:$0xf]
      %v502 = vld [vmem:[%s4 + $0x8] sm:$0xf]
      %v503 = vld [vmem:[%s4 + $0xc] sm:$0xf]
      %v504 = vpack.c.bf16 %v499, %v499
      %v509 = vunpack.c.l.b16 %v500
      %v510 = vunpack.c.l.b16 %v501
      %v511 = vunpack.c.l.b16 %v502
      %v512 = vunpack.c.l.b16 %v503
      %v513 = vpack.c.b16 %v510, %v509
      %v514 = vpack.c.b16 %v512, %v511
      %v518 = vsel %vm468, %v504, 0
      %520 = vmatprep.subr.bf16.mxu0 0
      %521 = vmatpush1.bf16.msra.mxu0 %v513
      %522 = vmatprep.subr.bf16.mxu0 0
      %523 = vmatpush1.bf16.msra.mxu0 %v514
      %524 = vmatprep.subr.bf16.mxu0 0
      %525 = vmatpush1.bf16.msra.mxu0 0
      %526 = vmatprep.subr.bf16.mxu0 0
      %527 = vmatpush1.bf16.msra.mxu0 0
      %528 = vmatprep.subr.bf16.mxu0 0
      %529 = vmatpush1.bf16.msra.mxu0 0
      %530 = vmatprep.subr.bf16.mxu0 0
      %531 = vmatpush1.bf16.msra.mxu0 0
      %532 = vmatprep.subr.bf16.mxu0 0
      %533 = vmatpush1.bf16.msra.mxu0 0
      %534 = vmatprep.subr.bf16.mxu0 0
      %535 = vmatpush1.bf16.msra.mxu0 0
      %536 = vmatprep.subr.bf16.mxu0 0
      %537 = vmatpush1.bf16.msra.mxu0 0
      %538 = vmatprep.subr.bf16.mxu0 0
      %539 = vmatpush1.bf16.msra.mxu0 0
      %540 = vmatprep.subr.bf16.mxu0 0
      %541 = vmatpush1.bf16.msra.mxu0 0
      %542 = vmatprep.subr.bf16.mxu0 0
      %543 = vmatpush1.bf16.msra.mxu0 0
      %544 = vmatprep.subr.bf16.mxu0 0
      %545 = vmatpush1.bf16.msra.mxu0 0
      %546 = vmatprep.subr.bf16.mxu0 0
      %547 = vmatpush1.bf16.msra.mxu0 0
      %548 = vmatprep.subr.bf16.mxu0 0
      %549 = vmatpush1.bf16.msra.mxu0 0
      %550 = vmatprep.subr.bf16.mxu0 0
      %551 = vmatpush1.bf16.msra.mxu0 0
      %552 = vmatprep.mubr.bf16.mxu0 0
      %553 = vmatmul.mubr.bf16.gmra.mrb[0].mxu0 %v518
      %v554 = vpop.f32.mrb[0].mxu0
      %v555 = vadd.f32 0.0, %v554
      %v556 = vpop.f32.mrb[0].mxu0
      %v557 = vpop.f32.mrb[0].mxu0
      %v558 = vpop.f32.mrb[0].mxu0
      %559 = vdwg.mxu0
      %v560 = vld [vmem:[%s5] sm:$0xf]
      %v562 = vrot.slane %v555, 5
      %vm564 = vcmask 1042432
      %v565 = vsel %vm564, 0.0, %v562
      %v566 = vld [vmem:[%s6] sm:$0x1]
      %v567 = vlaneseq
      %v568 = vshrl.u32 %v567, 7
      %v569 = vsub.s32 0, %v568
      %v570 = vrot.slane %v560, %v569
      %v571 = vmul.f32 %v565, %v570
      %v573 = vlaneseq
      %v574 = vshrl.u32 %v573, 7
      %v575 = vsub.s32 0, %v574
      %v576 = vrot.slane %v566, %v575
      %v578 = vadd.f32 %v576, %v571
      %v579 = vlaneseq
      %v580 = vshrl.u32 %v579, 7
      %v581 = vsub.s32 1, %v580
      %v582 = vrot.slane %v560, %v581
      %v583 = vmul.f32 %v565, %v582
      %v584 = vmul.f32 %v562, %v582
      %vm587 = vcmask 1046528
      %v588 = vrot.slane %v583, 1
      %v589 = vrot.slane %v584, 1
      %v590 = vsel %vm587, %v588, %v589
      %v592 = vadd.f32 %v578, %v590
      %v593 = vlaneseq
      %v594 = vshrl.u32 %v593, 7
      %v595 = vsub.s32 2, %v594
      %v596 = vrot.slane %v560, %v595
      %v597 = vmul.f32 %v565, %v596
      %v598 = vmul.f32 %v562, %v596
      %vm601 = vcmask 1045504
      %v602 = vrot.slane %v597, 2
      %v603 = vrot.slane %v598, 2
      %v604 = vsel %vm601, %v602, %v603
      %v606 = vadd.f32 %v592, %v604
      %v607 = vlaneseq
      %v608 = vshrl.u32 %v607, 7
      %v609 = vsub.s32 3, %v608
      %v610 = vrot.slane %v560, %v609
      %v611 = vmul.f32 %v565, %v610
      %v612 = vmul.f32 %v562, %v610
      %vm615 = vcmask 1044480
      %v616 = vrot.slane %v611, 3
      %v617 = vrot.slane %v612, 3
      %v618 = vsel %vm615, %v616, %v617
      %v620 = vadd.f32 %v606, %v618
      %v621 = vsub.f32 0.0, %v620
      %v622 = vmul.f32 %v621, 1.442695
      %v623 = vpow.pop %v622
      %v624 = vadd.f32 %v623, 1.0
      %v625 = vrcp.pop %v624
      %v626 = vmul.f32 1.0, %v625
      %v627 = vmul.f32 %v620, %v626
      %v628 = vld [vmem:[%s7] sm:$0xff]
      %v629 = vld [vmem:[%s7 + $0x8] sm:$0xff]
      %v630 = vld [vmem:[%s7 + $0x10] sm:$0xff]
      %v631 = vld [vmem:[%s7 + $0x18] sm:$0xff]
      %v632 = vld [vmem:[%s7 + $0x20] sm:$0xff]
      %v633 = vld [vmem:[%s7 + $0x28] sm:$0xff]
      %v634 = vld [vmem:[%s7 + $0x30] sm:$0xff]
      %v635 = vld [vmem:[%s7 + $0x38] sm:$0xff]
      %vm636 = vcmask 523264
      %v638 = vsel %vm636, %v627, 0
      %640 = vmatprep.subr.mxu0 0.0
      %641 = vmatpush1.msra.mxu0 %v628
      %642 = vmatprep.subr.mxu0 0.0
      %643 = vmatpush1.msra.mxu0 %v629
      %644 = vmatprep.subr.mxu0 0.0
      %645 = vmatpush1.msra.mxu0 %v630
      %646 = vmatprep.subr.mxu0 0.0
      %647 = vmatpush1.msra.mxu0 %v631
      %648 = vmatprep.subr.mxu0 0.0
      %649 = vmatpush1.msra.mxu0 %v632
      %650 = vmatprep.subr.mxu0 0.0
      %651 = vmatpush1.msra.mxu0 %v633
      %652 = vmatprep.subr.mxu0 0.0
      %653 = vmatpush1.msra.mxu0 %v634
      %654 = vmatprep.subr.mxu0 0.0
      %655 = vmatpush1.msra.mxu0 %v635
      %656 = vmatprep.subr.mxu0 0.0
      %657 = vmatpush1.msra.mxu0 0.0
      %658 = vmatprep.subr.mxu0 0.0
      %659 = vmatpush1.msra.mxu0 0.0
      %660 = vmatprep.subr.mxu0 0.0
      %661 = vmatpush1.msra.mxu0 0.0
      %662 = vmatprep.subr.mxu0 0.0
      %663 = vmatpush1.msra.mxu0 0.0
      %664 = vmatprep.subr.mxu0 0.0
      %665 = vmatpush1.msra.mxu0 0.0
      %666 = vmatprep.subr.mxu0 0.0
      %667 = vmatpush1.msra.mxu0 0.0
      %668 = vmatprep.subr.mxu0 0.0
      %669 = vmatpush1.msra.mxu0 0.0
      %670 = vmatprep.subr.mxu0 0.0
      %671 = vmatpush1.msra.mxu0 0.0
      %672 = vmatprep.subr.mxu0 0.0
      %673 = vmatpush1.msra.mxu0 0.0
      %674 = vmatprep.subr.mxu0 0.0
      %675 = vmatpush1.msra.mxu0 0.0
      %676 = vmatprep.subr.mxu0 0.0
      %677 = vmatpush1.msra.mxu0 0.0
      %678 = vmatprep.subr.mxu0 0.0
      %679 = vmatpush1.msra.mxu0 0.0
      %680 = vmatprep.subr.mxu0 0.0
      %681 = vmatpush1.msra.mxu0 0.0
      %682 = vmatprep.subr.mxu0 0.0
      %683 = vmatpush1.msra.mxu0 0.0
      %684 = vmatprep.subr.mxu0 0.0
      %685 = vmatpush1.msra.mxu0 0.0
      %686 = vmatprep.subr.mxu0 0.0
      %687 = vmatpush1.msra.mxu0 0.0
      %688 = vmatprep.subr.mxu0 0.0
      %689 = vmatpush1.msra.mxu0 0.0
      %690 = vmatprep.subr.mxu0 0.0
      %691 = vmatpush1.msra.mxu0 0.0
      %692 = vmatprep.subr.mxu0 0.0
      %693 = vmatpush1.msra.mxu0 0.0
      %694 = vmatprep.subr.mxu0 0.0
      %695 = vmatpush1.msra.mxu0 0.0
      %696 = vmatprep.subr.mxu0 0.0
      %697 = vmatpush1.msra.mxu0 0.0
      %698 = vmatprep.subr.mxu0 0.0
      %699 = vmatpush1.msra.mxu0 0.0
      %700 = vmatprep.subr.mxu0 0.0
      %701 = vmatpush1.msra.mxu0 0.0
      %702 = vmatprep.subr.mxu0 0.0
      %703 = vmatpush1.msra.mxu0 0.0
      %704 = vmatprep.mubr.f32.mxu0 0.0
      %705 = vmatmul.mubr.f32.gmra.mrb[0].mxu0 %v638
      %v706 = vpop.f32.mrb[0].mxu0
      %v707 = vadd.f32 0.0, %v706
      %v708 = vpop.f32.mrb[0].mxu0
      %709 = vdwg.mxu0
      %v710 = vld [vmem:[%s8] sm:$0x1]
      %v712 = vlaneseq
      %v713 = vshrl.u32 %v712, 7
      %v714 = vsub.s32 0, %v713
      %v715 = vrot.slane %v710, %v714
      %v717 = vadd.f32 %v707, %v715
      %v718 = vmax.f32 %v717, 0.0
      %v719 = vand.u32 2147483647, %v717
      %v720 = vsub.f32 0.0, %v719
      %v721 = vmul.f32 %v720, 1.442695
      %v722 = vpow.pop %v721
      %v723 = vadd.f32 %v722, 1.0
      %v724 = vlog2.pop %v723
      %v725 = vmul.f32 %v724, 0.6931472
      %v726 = vadd.f32 %v718, %v725
      %728 = vrot.lane.b32.xlu0 %v707, 64
      %v729 = vpop.permute.xlu0 %728
      %731 = vxpose.xlu0.b32.start [1/16] %v729, 128
      %732 = vxpose.xlu0.b32.cont [2/16] 0.0, 128
      %733 = vxpose.xlu0.b32.cont [3/16] 0.0, 128
      %734 = vxpose.xlu0.b32.cont [4/16] 0.0, 128
      %735 = vxpose.xlu0.b32.cont [5/16] 0.0, 128
      %736 = vxpose.xlu0.b32.cont [6/16] 0.0, 128
      %737 = vxpose.xlu0.b32.cont [7/16] 0.0, 128
      %738 = vxpose.xlu0.b32.cont [8/16] 0.0, 128
      %739 = vxpose.xlu0.b32.cont [9/16] 0.0, 128
      %740 = vxpose.xlu0.b32.cont [10/16] 0.0, 128
      %741 = vxpose.xlu0.b32.cont [11/16] 0.0, 128
      %742 = vxpose.xlu0.b32.cont [12/16] 0.0, 128
      %743 = vxpose.xlu0.b32.cont [13/16] 0.0, 128
      %744 = vxpose.xlu0.b32.cont [14/16] 0.0, 128
      %745 = vxpose.xlu0.b32.cont [15/16] 0.0, 128
      %746 = vxpose.xlu0.b32.end [16/16] 0.0, 128
      %v747 = vpop.trf.xlu0
      %v748 = vpop.trf.xlu0
      %v749 = vpop.trf.xlu0
      %v750 = vpop.trf.xlu0
      %v751 = vpop.trf.xlu0
      %v752 = vpop.trf.xlu0
      %v753 = vpop.trf.xlu0
      %v754 = vpop.trf.xlu0
      %v755 = vpop.trf.xlu0
      %v756 = vpop.trf.xlu0
      %v757 = vpop.trf.xlu0
      %v758 = vpop.trf.xlu0
      %v759 = vpop.trf.xlu0
      %v760 = vpop.trf.xlu0
      %v761 = vpop.trf.xlu0
      %v762 = vpop.trf.xlu0
      %763 = vrot.lane.b32.xlu0 %v707, 48
      %v764 = vpop.permute.xlu0 %763
      %766 = vxpose.xlu0.b32.start [1/16] %v764, 128
      %767 = vxpose.xlu0.b32.cont [2/16] 0.0, 128
      %768 = vxpose.xlu0.b32.cont [3/16] 0.0, 128
      %769 = vxpose.xlu0.b32.cont [4/16] 0.0, 128
      %770 = vxpose.xlu0.b32.cont [5/16] 0.0, 128
      %771 = vxpose.xlu0.b32.cont [6/16] 0.0, 128
      %772 = vxpose.xlu0.b32.cont [7/16] 0.0, 128
      %773 = vxpose.xlu0.b32.cont [8/16] 0.0, 128
      %774 = vxpose.xlu0.b32.cont [9/16] 0.0, 128
      %775 = vxpose.xlu0.b32.cont [10/16] 0.0, 128
      %776 = vxpose.xlu0.b32.cont [11/16] 0.0, 128
      %777 = vxpose.xlu0.b32.cont [12/16] 0.0, 128
      %778 = vxpose.xlu0.b32.cont [13/16] 0.0, 128
      %779 = vxpose.xlu0.b32.cont [14/16] 0.0, 128
      %780 = vxpose.xlu0.b32.cont [15/16] 0.0, 128
      %781 = vxpose.xlu0.b32.end [16/16] 0.0, 128
      %v782 = vpop.trf.xlu0
      %v783 = vpop.trf.xlu0
      %v784 = vpop.trf.xlu0
      %v785 = vpop.trf.xlu0
      %v786 = vpop.trf.xlu0
      %v787 = vpop.trf.xlu0
      %v788 = vpop.trf.xlu0
      %v789 = vpop.trf.xlu0
      %v790 = vpop.trf.xlu0
      %v791 = vpop.trf.xlu0
      %v792 = vpop.trf.xlu0
      %v793 = vpop.trf.xlu0
      %v794 = vpop.trf.xlu0
      %v795 = vpop.trf.xlu0
      %v796 = vpop.trf.xlu0
      %v797 = vpop.trf.xlu0
      %v798 = vld [vmem:[%s9] sm:$0xff]
      %v799 = vld [vmem:[%s9 + $0x8] sm:$0xff]
      %v800 = vmul.f32 %v726, %v627
      %v801 = vlaneseq
      %v802 = vshrl.u32 %v801, 7
      %v803 = vsub.s32 0, %v802
      %v804 = vrot.slane %v726, %v803
      %v805 = vmul.f32 %v804, %v798
      %v806 = vmul.f32 %v804, %v799
      %v807 = vmul.f32 %v805, 1.442695
      %v808 = vpow.pop %v807
      %v809 = vmul.f32 %v806, 1.442695
      %v810 = vpow.pop %v809
      %v811 = vmul.f32 %v808, 0.0
      %v812 = vmul.f32 %v810, 0.0
      %814 = vset.pattern.permute.xlu0 0
      %815 = vperm.xlu0 %814, %v747
      %v816 = vpop.permute.xlu0 %815
      %819 = vset.pattern.permute.xlu0 0
      %820 = vperm.xlu0 %819, %v748
      %v821 = vpop.permute.xlu0 %820
      %v823 = vlaneseq
      %v824 = vshrl.u32 %v823, 7
      %v825 = vsub.s32 0, %v824
      %v826 = vrot.slane %v800, %v825
      %v827 = vmul.f32 %v816, %v826
      %v828 = vmul.f32 %v821, %v826
      %v829 = vadd.f32 %v811, %v827
      %v830 = vadd.f32 %v812, %v828
      %832 = vset.pattern.permute.xlu0 0
      %833 = vperm.xlu0 %832, %v782
      %v834 = vpop.permute.xlu0 %833
      %837 = vset.pattern.permute.xlu0 0
      %838 = vperm.xlu0 %837, %v783
      %v839 = vpop.permute.xlu0 %838
      %v841 = vmul.f32 %v829, %v834
      %v842 = vmul.f32 %v830, %v839
      %v843 = vsel %vm636, %v841, 0.0
      %v844 = vsel %vm636, %v842, 0.0
      %v845 = vadd.f32 %v843, %v844
      %v846 = vrot.slane %v845, 4
      %v847 = vadd.f32 %v845, %v846
      %v848 = vrot.slane %v847, 2
      %v849 = vadd.f32 %v847, %v848
      %v850 = vrot.slane %v849, 1
      %v851 = vadd.f32 %v849, %v850
      %vm852 = vcmask 516096
      %853 = vst.msk [vmem:[#allocation2] sm:$0x1] %vm852, %v851
      %v854 = vlaneseq
      %v855 = vshrl.u32 %v854, 7
      %v856 = vsub.s32 1, %v855
      %v857 = vrot.slane %v726, %v856
      %v858 = vmul.f32 %v857, %v798
      %v859 = vmul.f32 %v857, %v799
      %v860 = vmul.f32 %v858, 1.442695
      %v861 = vpow.pop %v860
      %v862 = vmul.f32 %v859, 1.442695
      %v863 = vpow.pop %v862
      %v864 = vmul.f32 %v861, %v829
      %v865 = vmul.f32 %v863, %v830
      %866 = vset.pattern.permute.xlu0 1
      %867 = vperm.xlu0 %866, %v747
      %v868 = vpop.permute.xlu0 %867
      %870 = vset.pattern.permute.xlu0 1
      %871 = vperm.xlu0 %870, %v748
      %v872 = vpop.permute.xlu0 %871
      %v874 = vlaneseq
      %v875 = vshrl.u32 %v874, 7
      %v876 = vsub.s32 1, %v875
      %v877 = vrot.slane %v800, %v876
      %v878 = vmul.f32 %v868, %v877
      %v879 = vmul.f32 %v872, %v877
      %v880 = vadd.f32 %v864, %v878
      %v881 = vadd.f32 %v865, %v879
      %882 = vset.pattern.permute.xlu0 1
      %883 = vperm.xlu0 %882, %v782
      %v884 = vpop.permute.xlu0 %883
      %886 = vset.pattern.permute.xlu0 1
      %887 = vperm.xlu0 %886, %v783
      %v888 = vpop.permute.xlu0 %887
      %v890 = vmul.f32 %v880, %v884
      %v891 = vmul.f32 %v881, %v888
      %v892 = vsel %vm636, %v890, 0.0
      %v893 = vsel %vm636, %v891, 0.0
      %v894 = vadd.f32 %v892, %v893
      %v895 = vrot.slane %v894, 4
      %v896 = vadd.f32 %v894, %v895
      %v897 = vrot.slane %v896, 2
      %v898 = vadd.f32 %v896, %v897
      %v899 = vrot.slane %v898, 1
      %v900 = vadd.f32 %v898, %v899
      %901 = vst.msk [vmem:[#allocation2 + $0x1] sm:$0x1] %vm852, %v900
      %v902 = vlaneseq
      %v903 = vshrl.u32 %v902, 7
      %v904 = vsub.s32 2, %v903
      %v905 = vrot.slane %v726, %v904
      %v906 = vmul.f32 %v905, %v798
      %v907 = vmul.f32 %v905, %v799
      %v908 = vmul.f32 %v906, 1.442695
      %v909 = vpow.pop %v908
      %v910 = vmul.f32 %v907, 1.442695
      %v911 = vpow.pop %v910
      %v912 = vmul.f32 %v909, %v880
      %v913 = vmul.f32 %v911, %v881
      %914 = vset.pattern.permute.xlu0 2
      %915 = vperm.xlu0 %914, %v747
      %v916 = vpop.permute.xlu0 %915
      %918 = vset.pattern.permute.xlu0 2
      %919 = vperm.xlu0 %918, %v748
      %v920 = vpop.permute.xlu0 %919
      %v922 = vlaneseq
      %v923 = vshrl.u32 %v922, 7
      %v924 = vsub.s32 2, %v923
      %v925 = vrot.slane %v800, %v924
      %v926 = vmul.f32 %v916, %v925
      %v927 = vmul.f32 %v920, %v925
      %v928 = vadd.f32 %v912, %v926
      %v929 = vadd.f32 %v913, %v927
      %930 = vset.pattern.permute.xlu0 2
      %931 = vperm.xlu0 %930, %v782
      %v932 = vpop.permute.xlu0 %931
      %934 = vset.pattern.permute.xlu0 2
      %935 = vperm.xlu0 %934, %v783
      %v936 = vpop.permute.xlu0 %935
      %v938 = vmul.f32 %v928, %v932
      %v939 = vmul.f32 %v929, %v936
      %v940 = vsel %vm636, %v938, 0.0
      %v941 = vsel %vm636, %v939, 0.0
      %v942 = vadd.f32 %v940, %v941
      %v943 = vrot.slane %v942, 4
      %v944 = vadd.f32 %v942, %v943
      %v945 = vrot.slane %v944, 2
      %v946 = vadd.f32 %v944, %v945
      %v947 = vrot.slane %v946, 1
      %v948 = vadd.f32 %v946, %v947
      %949 = vst.msk [vmem:[#allocation2 + $0x2] sm:$0x1] %vm852, %v948
      %v950 = vlaneseq
      %v951 = vshrl.u32 %v950, 7
      %v952 = vsub.s32 3, %v951
      %v953 = vrot.slane %v726, %v952
      %v954 = vmul.f32 %v953, %v798
      %v955 = vmul.f32 %v953, %v799
      %v956 = vmul.f32 %v954, 1.442695
      %v957 = vpow.pop %v956
      %v958 = vmul.f32 %v955, 1.442695
      %v959 = vpow.pop %v958
      %v960 = vmul.f32 %v957, %v928
      %v961 = vmul.f32 %v959, %v929
      %962 = vset.pattern.permute.xlu0 3
      %963 = vperm.xlu0 %962, %v747
      %v964 = vpop.permute.xlu0 %963
      %966 = vset.pattern.permute.xlu0 3
      %967 = vperm.xlu0 %966, %v748
      %v968 = vpop.permute.xlu0 %967
      %v970 = vlaneseq
      %v971 = vshrl.u32 %v970, 7
      %v972 = vsub.s32 3, %v971
      %v973 = vrot.slane %v800, %v972
      %v974 = vmul.f32 %v964, %v973
      %v975 = vmul.f32 %v968, %v973
      %v976 = vadd.f32 %v960, %v974
      %v977 = vadd.f32 %v961, %v975
      %978 = vset.pattern.permute.xlu0 3
      %979 = vperm.xlu0 %978, %v782
      %v980 = vpop.permute.xlu0 %979
      %982 = vset.pattern.permute.xlu0 3
      %983 = vperm.xlu0 %982, %v783
      %v984 = vpop.permute.xlu0 %983
      %v986 = vmul.f32 %v976, %v980
      %v987 = vmul.f32 %v977, %v984
      %v988 = vsel %vm636, %v986, 0.0
      %v989 = vsel %vm636, %v987, 0.0
      %v990 = vadd.f32 %v988, %v989
      %v991 = vrot.slane %v990, 4
      %v992 = vadd.f32 %v990, %v991
      %v993 = vrot.slane %v992, 2
      %v994 = vadd.f32 %v992, %v993
      %v995 = vrot.slane %v994, 1
      %v996 = vadd.f32 %v994, %v995
      %997 = vst.msk [vmem:[#allocation2 + $0x3] sm:$0x1] %vm852, %v996
      %v998 = vlaneseq
      %v999 = vshrl.u32 %v998, 7
      %v1000 = vsub.s32 4, %v999
      %v1001 = vrot.slane %v726, %v1000
      %v1002 = vmul.f32 %v1001, %v798
      %v1003 = vmul.f32 %v1001, %v799
      %v1004 = vmul.f32 %v1002, 1.442695
      %v1005 = vpow.pop %v1004
      %v1006 = vmul.f32 %v1003, 1.442695
      %v1007 = vpow.pop %v1006
      %v1008 = vmul.f32 %v1005, %v976
      %v1009 = vmul.f32 %v1007, %v977
      %1010 = vset.pattern.permute.xlu0 4
      %1011 = vperm.xlu0 %1010, %v747
      %v1012 = vpop.permute.xlu0 %1011
      %1014 = vset.pattern.permute.xlu0 4
      %1015 = vperm.xlu0 %1014, %v748
      %v1016 = vpop.permute.xlu0 %1015
      %v1018 = vlaneseq
      %v1019 = vshrl.u32 %v1018, 7
      %v1020 = vsub.s32 4, %v1019
      %v1021 = vrot.slane %v800, %v1020
      %v1022 = vmul.f32 %v1012, %v1021
      %v1023 = vmul.f32 %v1016, %v1021
      %v1024 = vadd.f32 %v1008, %v1022
      %v1025 = vadd.f32 %v1009, %v1023
      %1026 = vset.pattern.permute.xlu0 4
      %1027 = vperm.xlu0 %1026, %v782
      %v1028 = vpop.permute.xlu0 %1027
      %1030 = vset.pattern.permute.xlu0 4
      %1031 = vperm.xlu0 %1030, %v783
      %v1032 = vpop.permute.xlu0 %1031
      %v1034 = vmul.f32 %v1024, %v1028
      %v1035 = vmul.f32 %v1025, %v1032
      %v1036 = vsel %vm636, %v1034, 0.0
      %v1037 = vsel %vm636, %v1035, 0.0
      %v1038 = vadd.f32 %v1036, %v1037
      %v1039 = vrot.slane %v1038, 4
      %v1040 = vadd.f32 %v1038, %v1039
      %v1041 = vrot.slane %v1040, 2
      %v1042 = vadd.f32 %v1040, %v1041
      %v1043 = vrot.slane %v1042, 1
      %v1044 = vadd.f32 %v1042, %v1043
      %1045 = vst.msk [vmem:[#allocation2 + $0x4] sm:$0x1] %vm852, %v1044
      %v1046 = vlaneseq
      %v1047 = vshrl.u32 %v1046, 7
      %v1048 = vsub.s32 5, %v1047
      %v1049 = vrot.slane %v726, %v1048
      %v1050 = vmul.f32 %v1049, %v798
      %v1051 = vmul.f32 %v1049, %v799
      %v1052 = vmul.f32 %v1050, 1.442695
      %v1053 = vpow.pop %v1052
      %v1054 = vmul.f32 %v1051, 1.442695
      %v1055 = vpow.pop %v1054
      %v1056 = vmul.f32 %v1053, %v1024
      %v1057 = vmul.f32 %v1055, %v1025
      %1058 = vset.pattern.permute.xlu0 5
      %1059 = vperm.xlu0 %1058, %v747
      %v1060 = vpop.permute.xlu0 %1059
      %1062 = vset.pattern.permute.xlu0 5
      %1063 = vperm.xlu0 %1062, %v748
      %v1064 = vpop.permute.xlu0 %1063
      %v1066 = vlaneseq
      %v1067 = vshrl.u32 %v1066, 7
      %v1068 = vsub.s32 5, %v1067
      %v1069 = vrot.slane %v800, %v1068
      %v1070 = vmul.f32 %v1060, %v1069
      %v1071 = vmul.f32 %v1064, %v1069
      %v1072 = vadd.f32 %v1056, %v1070
      %v1073 = vadd.f32 %v1057, %v1071
      %1074 = vset.pattern.permute.xlu0 5
      %1075 = vperm.xlu0 %1074, %v782
      %v1076 = vpop.permute.xlu0 %1075
      %1078 = vset.pattern.permute.xlu0 5
      %1079 = vperm.xlu0 %1078, %v783
      %v1080 = vpop.permute.xlu0 %1079
      %v1082 = vmul.f32 %v1072, %v1076
      %v1083 = vmul.f32 %v1073, %v1080
      %v1084 = vsel %vm636, %v1082, 0.0
      %v1085 = vsel %vm636, %v1083, 0.0
      %v1086 = vadd.f32 %v1084, %v1085
      %v1087 = vrot.slane %v1086, 4
      %v1088 = vadd.f32 %v1086, %v1087
      %v1089 = vrot.slane %v1088, 2
      %v1090 = vadd.f32 %v1088, %v1089
      %v1091 = vrot.slane %v1090, 1
      %v1092 = vadd.f32 %v1090, %v1091
      %1093 = vst.msk [vmem:[#allocation2 + $0x5] sm:$0x1] %vm852, %v1092
      %v1094 = vlaneseq
      %v1095 = vshrl.u32 %v1094, 7
      %v1096 = vsub.s32 6, %v1095
      %v1097 = vrot.slane %v726, %v1096
      %v1098 = vmul.f32 %v1097, %v798
      %v1099 = vmul.f32 %v1097, %v799
      %v1100 = vmul.f32 %v1098, 1.442695
      %v1101 = vpow.pop %v1100
      %v1102 = vmul.f32 %v1099, 1.442695
      %v1103 = vpow.pop %v1102
      %v1104 = vmul.f32 %v1101, %v1072
      %v1105 = vmul.f32 %v1103, %v1073
      %1106 = vset.pattern.permute.xlu0 6
      %1107 = vperm.xlu0 %1106, %v747
      %v1108 = vpop.permute.xlu0 %1107
      %1110 = vset.pattern.permute.xlu0 6
      %1111 = vperm.xlu0 %1110, %v748
      %v1112 = vpop.permute.xlu0 %1111
      %v1114 = vlaneseq
      %v1115 = vshrl.u32 %v1114, 7
      %v1116 = vsub.s32 6, %v1115
      %v1117 = vrot.slane %v800, %v1116
      %v1118 = vmul.f32 %v1108, %v1117
      %v1119 = vmul.f32 %v1112, %v1117
      %v1120 = vadd.f32 %v1104, %v1118
      %v1121 = vadd.f32 %v1105, %v1119
      %1122 = vset.pattern.permute.xlu0 6
      %1123 = vperm.xlu0 %1122, %v782
      %v1124 = vpop.permute.xlu0 %1123
      %1126 = vset.pattern.permute.xlu0 6
      %1127 = vperm.xlu0 %1126, %v783
      %v1128 = vpop.permute.xlu0 %1127
      %v1130 = vmul.f32 %v1120, %v1124
      %v1131 = vmul.f32 %v1121, %v1128
      %v1132 = vsel %vm636, %v1130, 0.0
      %v1133 = vsel %vm636, %v1131, 0.0
      %v1134 = vadd.f32 %v1132, %v1133
      %v1135 = vrot.slane %v1134, 4
      %v1136 = vadd.f32 %v1134, %v1135
      %v1137 = vrot.slane %v1136, 2
      %v1138 = vadd.f32 %v1136, %v1137
      %v1139 = vrot.slane %v1138, 1
      %v1140 = vadd.f32 %v1138, %v1139
      %1141 = vst.msk [vmem:[#allocation2 + $0x6] sm:$0x1] %vm852, %v1140
      %v1142 = vlaneseq
      %v1143 = vshrl.u32 %v1142, 7
      %v1144 = vsub.s32 7, %v1143
      %v1145 = vrot.slane %v726, %v1144
      %v1146 = vmul.f32 %v1145, %v798
      %v1147 = vmul.f32 %v1145, %v799
      %v1148 = vmul.f32 %v1146, 1.442695
      %v1149 = vpow.pop %v1148
      %v1150 = vmul.f32 %v1147, 1.442695
      %v1151 = vpow.pop %v1150
      %v1152 = vmul.f32 %v1149, %v1120
      %v1153 = vmul.f32 %v1151, %v1121
      %1154 = vset.pattern.permute.xlu0 7
      %1155 = vperm.xlu0 %1154, %v747
      %v1156 = vpop.permute.xlu0 %1155
      %1158 = vset.pattern.permute.xlu0 7
      %1159 = vperm.xlu0 %1158, %v748
      %v1160 = vpop.permute.xlu0 %1159
      %v1162 = vlaneseq
      %v1163 = vshrl.u32 %v1162, 7
      %v1164 = vsub.s32 7, %v1163
      %v1165 = vrot.slane %v800, %v1164
      %v1166 = vmul.f32 %v1156, %v1165
      %v1167 = vmul.f32 %v1160, %v1165
      %v1168 = vadd.f32 %v1152, %v1166
      %v1169 = vadd.f32 %v1153, %v1167
      %1170 = vset.pattern.permute.xlu0 7
      %1171 = vperm.xlu0 %1170, %v782
      %v1172 = vpop.permute.xlu0 %1171
      %1174 = vset.pattern.permute.xlu0 7
      %1175 = vperm.xlu0 %1174, %v783
      %v1176 = vpop.permute.xlu0 %1175
      %v1178 = vmul.f32 %v1168, %v1172
      %v1179 = vmul.f32 %v1169, %v1176
      %v1180 = vsel %vm636, %v1178, 0.0
      %v1181 = vsel %vm636, %v1179, 0.0
      %v1182 = vadd.f32 %v1180, %v1181
      %v1183 = vrot.slane %v1182, 4
      %v1184 = vadd.f32 %v1182, %v1183
      %v1185 = vrot.slane %v1184, 2
      %v1186 = vadd.f32 %v1184, %v1185
      %v1187 = vrot.slane %v1186, 1
      %v1188 = vadd.f32 %v1186, %v1187
      %1189 = vst.msk [vmem:[#allocation2 + $0x7] sm:$0x1] %vm852, %v1188
      %v1190 = vld [vmem:[#allocation2] sm:$0xff]
      %v1191 = vld [vmem:[%s10] sm:$0x1]
      %v1193 = vlaneseq
      %v1194 = vshrl.u32 %v1193, 7
      %v1195 = vsub.s32 0, %v1194
      %v1196 = vrot.slane %v1191, %v1195
      %v1198 = vmul.f32 %v627, %v1196
      %v1199 = vadd.f32 %v1190, %v1198
      %v1200 = vsub.f32 0.0, %v555
      %v1201 = vmul.f32 %v1200, 1.442695
      %v1202 = vpow.pop %v1201
      %v1203 = vadd.f32 %v1202, 1.0
      %v1204 = vrcp.pop %v1203
      %v1205 = vmul.f32 1.0, %v1204
      %v1206 = vmul.f32 %v555, %v1205
      %1208 = vrot.lane.b32.xlu0 %v1206, 64
      %v1209 = vpop.permute.xlu0 %1208
      %v1211 = vmul.f32 %v1199, %v1209
      %v1212 = vld [vmem:[%s11] sm:$0xf]
      %v1213 = vld [vmem:[%s11 + $0x4] sm:$0xf]
      %v1214 = vld [vmem:[%s11 + $0x8] sm:$0xf]
      %v1215 = vld [vmem:[%s11 + $0xc] sm:$0xf]
      %v1216 = vld [vmem:[%s11 + $0x10] sm:$0xf]
      %v1217 = vld [vmem:[%s11 + $0x14] sm:$0xf]
      %v1218 = vld [vmem:[%s11 + $0x18] sm:$0xf]
      %v1219 = vld [vmem:[%s11 + $0x1c] sm:$0xf]
      %v1220 = vpack.c.bf16 %v1211, %v1211
      %v1229 = vunpack.c.l.b16 %v1212
      %v1230 = vunpack.c.l.b16 %v1213
      %v1231 = vunpack.c.l.b16 %v1214
      %v1232 = vunpack.c.l.b16 %v1215
      %v1233 = vunpack.c.l.b16 %v1216
      %v1234 = vunpack.c.l.b16 %v1217
      %v1235 = vunpack.c.l.b16 %v1218
      %v1236 = vunpack.c.l.b16 %v1219
      %v1237 = vpack.c.b16 %v1230, %v1229
      %v1238 = vpack.c.b16 %v1232, %v1231
      %v1239 = vpack.c.b16 %v1234, %v1233
      %v1240 = vpack.c.b16 %v1236, %v1235
      %v1246 = vsel %vm636, %v1220, 0
      %1248 = vmatprep.subr.bf16.mxu0 0
      %1249 = vmatpush1.bf16.msra.mxu0 %v1237
      %1250 = vmatprep.subr.bf16.mxu0 0
      %1251 = vmatpush1.bf16.msra.mxu0 %v1238
      %1252 = vmatprep.subr.bf16.mxu0 0
      %1253 = vmatpush1.bf16.msra.mxu0 %v1239
      %1254 = vmatprep.subr.bf16.mxu0 0
      %1255 = vmatpush1.bf16.msra.mxu0 %v1240
      %1256 = vmatprep.subr.bf16.mxu0 0
      %1257 = vmatpush1.bf16.msra.mxu0 0
      %1258 = vmatprep.subr.bf16.mxu0 0
      %1259 = vmatpush1.bf16.msra.mxu0 0
      %1260 = vmatprep.subr.bf16.mxu0 0
      %1261 = vmatpush1.bf16.msra.mxu0 0
      %1262 = vmatprep.subr.bf16.mxu0 0
      %1263 = vmatpush1.bf16.msra.mxu0 0
      %1264 = vmatprep.subr.bf16.mxu0 0
      %1265 = vmatpush1.bf16.msra.mxu0 0
      %1266 = vmatprep.subr.bf16.mxu0 0
      %1267 = vmatpush1.bf16.msra.mxu0 0
      %1268 = vmatprep.subr.bf16.mxu0 0
      %1269 = vmatpush1.bf16.msra.mxu0 0
      %1270 = vmatprep.subr.bf16.mxu0 0
      %1271 = vmatpush1.bf16.msra.mxu0 0
      %1272 = vmatprep.subr.bf16.mxu0 0
      %1273 = vmatpush1.bf16.msra.mxu0 0
      %1274 = vmatprep.subr.bf16.mxu0 0
      %1275 = vmatpush1.bf16.msra.mxu0 0
      %1276 = vmatprep.subr.bf16.mxu0 0
      %1277 = vmatpush1.bf16.msra.mxu0 0
      %1278 = vmatprep.subr.bf16.mxu0 0
      %1279 = vmatpush1.bf16.msra.mxu0 0
      %1280 = vmatprep.mubr.bf16.mxu0 0
      %1281 = vmatmul.mubr.bf16.gmra.mrb[0].mxu0 %v1246
      %v1282 = vpop.f32.mrb[0].mxu0
      %v1283 = vadd.f32 0.0, %v1282
      %v1284 = vpop.f32.mrb[0].mxu0
      %v1285 = vpop.f32.mrb[0].mxu0
      %v1286 = vpop.f32.mrb[0].mxu0
      %1287 = vdwg.mxu0
      %1288 = vst.msk [vmem:[%s459] sm:$0xff] %vm468, %v1283
      %p1289 = scmp.lt.s32.totalorder %s25, 1
      %s1290 = scalar_select %p1289, %s25, 1
      %s1291 = smul.addr %s1290, 8
      %s1292 = scalar_lea.vmem %s12, %s1291
      %p1293 = scmp.lt.s32.totalorder %s25, 1
      %s1294 = scalar_select %p1293, %s25, 1
      %s1295 = smul.addr %s1294, 8
      %s1296 = scalar_lea.vmem %s13, %s1295
      // Predicated region
      $region69: #{mask_mamba_forward.5} parent=67 // pred_check
        %p1297 = pneg %p305
      $region70: #{mask_mamba_forward.5} parent=67 // pred_check_branch
        %1299 = sbr.rel (%p1297) target = $region72
      $region71: #{mask_mamba_forward.5} parent=67 // pred_region
        _
      $region72: #{mask_mamba_forward.5} parent=67 // pred_fallthru
        _
      // Predicated region
      $region73: #{mask_mamba_forward.5} parent=67 // pred_check
        %p1300 = pneg %p331
      $region74: #{mask_mamba_forward.5} parent=67 // pred_check_branch
        %1302 = sbr.rel (%p1300) target = $region76
      $region75: #{mask_mamba_forward.5} parent=67 // pred_region
        _
      $region76: #{mask_mamba_forward.5} parent=67 // pred_fallthru
        _
    $region68: #{mask_mamba_forward.5} parent=5 // pred_fallthru
      _
    %p1303 = scmp.le.s32.totalorder 2, %s20
    // Predicated region
    $region77: #{mask_mamba_forward.5} parent=5 // pred_check
      %p1304 = pneg %p1303
    $region78: #{mask_mamba_forward.5} parent=5 // pred_check_branch
      %1306 = sbr.rel (%p1304) target = $region80
    $region79: #{mask_mamba_forward.5} parent=5 // pred_region
      %s1307 = ssub.s32 %s20, 2
      // Predicated region
      $region81: #{mask_mamba_forward.5} parent=79 // pred_check
        %p1308 = pneg %p311
      $region82: #{mask_mamba_forward.5} parent=79 // pred_check_branch
        %1310 = sbr.rel (%p1308) target = $region84
      $region83: #{mask_mamba_forward.5} parent=79 // pred_region
        %p1311 = scmp.lt.s32.totalorder %s26, 1
        %s1312 = scalar_select %p1311, %s26, 1
        %s1313 = smul.addr %s1312, 8
        %s1314 = scalar_lea.vmem %s12, %s1313
      $region84: #{mask_mamba_forward.5} parent=79 // pred_fallthru
        _
      // Predicated region
      $region85: #{mask_mamba_forward.5} parent=79 // pred_check
        %p1315 = pneg %p337
      $region86: #{mask_mamba_forward.5} parent=79 // pred_check_branch
        %1317 = sbr.rel (%p1315) target = $region88
      $region87: #{mask_mamba_forward.5} parent=79 // pred_region
        %p1318 = scmp.lt.s32.totalorder %s26, 1
        %s1319 = scalar_select %p1318, %s26, 1
        %s1320 = smul.addr %s1319, 8
        %s1321 = scalar_lea.vmem %s13, %s1320
      $region88: #{mask_mamba_forward.5} parent=79 // pred_fallthru
        _
    $region80: #{mask_mamba_forward.5} parent=5 // pred_fallthru
      _
  $region6: #{mask_mamba_forward.5} parent=0 // loop_footer
    %s24 = sadd.s32 1, %s20
  $region7: #{mask_mamba_forward.5} parent=0 // loop_footer_branch
    %19 = sbr.rel target = $region3
  $region8: #{mask_mamba_forward.5} parent=0 // loop_exit
    _

// kernel: mask_mamba_forward.4
$region0: #{mask_mamba_forward.4}
  #allocation0 [shape = 'u32[]', space=smem, size = 0x4, offset = 0x4, fixed_abs, tag = 'smem constant byte address 0x4 - core index']
  #allocation1 [shape = 'u32[144,128]{1,0:T(1,128)}', space=vmem, size = 0x12000, scoped, tag = 'internal scratch']
  %s0 = inlined_call_operand.vmem [shape: f32[2,16,8,384], index: 0, kind: input, shape index: {}]
  %s1 = inlined_call_operand.hbm [shape: bf16[768,768], index: 1, kind: input, shape index: {}]
  %s2 = inlined_call_operand.hbm [shape: f32[1,768], index: 2, kind: input, shape index: {}]
  %s3 = inlined_call_operand.vmem [shape: bf16[768,32], index: 3, kind: input, shape index: {}]
  %s4 = inlined_call_operand.hbm [shape: f32[1,32], index: 4, kind: input, shape index: {}]
  %s5 = inlined_call_operand.vmem [shape: f32[2,16,32], index: 5, kind: output, shape index: {}]
  %s6 = sld [smem:[#allocation0]]
  $region65: #{mask_mamba_forward.4} parent=0
    _
  %s8 = ssub.s32 1, %s6
  %s9 = scalar_select 0, %s8, %s6
  $region1: #{mask_mamba_forward.4} parent=0
    #allocation2 [shape = 'u8[1179648]{0}', space=vmem, size = 0x120000, scoped, tag = 'input window, operand 1, single buffered']
    #allocation3 [shape = 's32[2]{0}', space=sflag, size = 0x8, scoped, tag = 'scoped memory for mask_mamba_forward.4']
    #allocation4 [shape = 'u8[3072]{0}', space=vmem, size = 0xc00, scoped, tag = 'input window, operand 2, single buffered']
    #allocation5 [shape = 's32[1]{0}', space=sflag, size = 0x4, scoped, tag = 'scoped memory for mask_mamba_forward.4']
    #allocation6 [shape = 'u8[512]{0}', space=vmem, size = 0x400, scoped, tag = 'input window, operand 4, single buffered']
    %10 = vsyncpa [#allocation3], 0
    %11 = vsyncpa [#allocation5], 0
    loop: start=0, step=1, limit=4
    $region2: #{mask_mamba_forward.4} parent=1 // loop_pre_header
      _
    $region3: #{mask_mamba_forward.4} parent=1 // loop_header
      %s13 = sphi 0, %s17
      %p14 = scmp.ge.s32.totalorder %s13, 4
      %s23 = sphi 0, %s25
      %s26 = sphi 0, %s23
      %s27 = sphi 0, %s26
      %s43 = sphi 0, %s27
      %s47 = sphi 0, %s47
      %s49 = sphi 0, %s47
      %s50 = sphi 0, %s49
      %s64 = sphi 0, %s50
      %s68 = sphi 0, %s68
      %s70 = sphi 0, %s68
      %s71 = sphi 0, %s70
      %s85 = sphi 0, %s71
      %s89 = sphi 0, %s89
      %s91 = sphi 0, %s89
      %s92 = sphi 0, %s91
      %s106 = sphi 0, %s92
      %s110 = sphi 0, %s110
      %s112 = sphi 0, %s110
      %s113 = sphi 0, %s112
      %s127 = sphi 0, %s113
      %s133 = sphi 0, %s135
      %s136 = sphi 0, %s133
      %s137 = sphi 0, %s136
      %s153 = sphi 0, %s137
    $region4: #{mask_mamba_forward.4} parent=1 // loop_header_branch
      %16 = sbr.rel (%p14) target = $region8
    $region5: #{mask_mamba_forward.4} parent=1 // loop_body
      %s18 = ssub.s32 %s13, 1
      %s19 = ssub.s32 %s13, 2
      %s20 = sadd.s32 %s13, 1
      %s21 = ssub.s32 %s13, %s20
      %p22 = scmp.eq.s32.totalorder %s21, 0
      %s24 = sadd.s32 %s23, 1
      %s25 = scalar_select %p22, %s23, %s24
      %p28 = pneg %p22
      %p29 = scmp.eq.s32.totalorder %s13, 1
      %p30 = por %p28, %p29
      %p31 = scmp.ne.s32.totalorder %s23, %s26
      %p32 = scmp.eq.s32.totalorder %s13, 0
      %p33 = por %p31, %p32
      %p34 = scmp.ne.s32.totalorder %s23, %s26
      %p35 = scmp.eq.s32.totalorder %s18, 1
      %p36 = por %p34, %p35
      %p37 = scmp.ne.s32.totalorder %s26, %s27
      %p38 = scmp.eq.s32.totalorder %s18, 0
      %p39 = por %p37, %p38
      %p40 = scmp.ne.s32.totalorder %s26, %s27
      %p41 = scmp.eq.s32.totalorder %s19, 1
      %p42 = por %p40, %p41
      %p44 = scmp.ne.s32.totalorder %s27, %s43
      %p45 = scmp.eq.s32.totalorder %s19, 0
      %p46 = por %p44, %p45
      %s48 = sadd.s32 %s47, 1
      %p51 = scmp.eq.s32.totalorder %s13, 1
      %p52 = scmp.ne.s32.totalorder %s47, %s49
      %p53 = scmp.eq.s32.totalorder %s13, 0
      %p54 = por %p52, %p53
      %p55 = scmp.ne.s32.totalorder %s47, %s49
      %p56 = scmp.eq.s32.totalorder %s18, 1
      %p57 = por %p55, %p56
      %p58 = scmp.ne.s32.totalorder %s49, %s50
      %p59 = scmp.eq.s32.totalorder %s18, 0
      %p60 = por %p58, %p59
      %p61 = scmp.ne.s32.totalorder %s49, %s50
      %p62 = scmp.eq.s32.totalorder %s19, 1
      %p63 = por %p61, %p62
      %p65 = scmp.ne.s32.totalorder %s50, %s64
      %p66 = scmp.eq.s32.totalorder %s19, 0
      %p67 = por %p65, %p66
      %s69 = sadd.s32 %s68, 1
      %p72 = scmp.eq.s32.totalorder %s13, 1
      %p73 = scmp.ne.s32.totalorder %s68, %s70
      %p74 = scmp.eq.s32.totalorder %s13, 0
      %p75 = por %p73, %p74
      %p76 = scmp.ne.s32.totalorder %s68, %s70
      %p77 = scmp.eq.s32.totalorder %s18, 1
      %p78 = por %p76, %p77
      %p79 = scmp.ne.s32.totalorder %s70, %s71
      %p80 = scmp.eq.s32.totalorder %s18, 0
      %p81 = por %p79, %p80
      %p82 = scmp.ne.s32.totalorder %s70, %s71
      %p83 = scmp.eq.s32.totalorder %s19, 1
      %p84 = por %p82, %p83
      %p86 = scmp.ne.s32.totalorder %s71, %s85
      %p87 = scmp.eq.s32.totalorder %s19, 0
      %p88 = por %p86, %p87
      %s90 = sadd.s32 %s89, 1
      %p93 = scmp.eq.s32.totalorder %s13, 1
      %p94 = scmp.ne.s32.totalorder %s89, %s91
      %p95 = scmp.eq.s32.totalorder %s13, 0
      %p96 = por %p94, %p95
      %p97 = scmp.ne.s32.totalorder %s89, %s91
      %p98 = scmp.eq.s32.totalorder %s18, 1
      %p99 = por %p97, %p98
      %p100 = scmp.ne.s32.totalorder %s91, %s92
      %p101 = scmp.eq.s32.totalorder %s18, 0
      %p102 = por %p100, %p101
      %p103 = scmp.ne.s32.totalorder %s91, %s92
      %p104 = scmp.eq.s32.totalorder %s19, 1
      %p105 = por %p103, %p104
      %p107 = scmp.ne.s32.totalorder %s92, %s106
      %p108 = scmp.eq.s32.totalorder %s19, 0
      %p109 = por %p107, %p108
      %s111 = sadd.s32 %s110, 1
      %p114 = scmp.eq.s32.totalorder %s13, 1
      %p115 = scmp.ne.s32.totalorder %s110, %s112
      %p116 = scmp.eq.s32.totalorder %s13, 0
      %p117 = por %p115, %p116
      %p118 = scmp.ne.s32.totalorder %s110, %s112
      %p119 = scmp.eq.s32.totalorder %s18, 1
      %p120 = por %p118, %p119
      %p121 = scmp.ne.s32.totalorder %s112, %s113
      %p122 = scmp.eq.s32.totalorder %s18, 0
      %p123 = por %p121, %p122
      %p124 = scmp.ne.s32.totalorder %s112, %s113
      %p125 = scmp.eq.s32.totalorder %s19, 1
      %p126 = por %p124, %p125
      %p128 = scmp.ne.s32.totalorder %s113, %s127
      %p129 = scmp.eq.s32.totalorder %s19, 0
      %p130 = por %p128, %p129
      %s131 = ssub.s32 %s13, %s20
      %p132 = scmp.eq.s32.totalorder %s131, 0
      %s134 = sadd.s32 %s133, 1
      %s135 = scalar_select %p132, %s133, %s134
      %p138 = pneg %p132
      %p139 = scmp.eq.s32.totalorder %s13, 1
      %p140 = por %p138, %p139
      %p141 = scmp.ne.s32.totalorder %s133, %s136
      %p142 = scmp.eq.s32.totalorder %s13, 0
      %p143 = por %p141, %p142
      %p144 = scmp.ne.s32.totalorder %s133, %s136
      %p145 = scmp.eq.s32.totalorder %s18, 1
      %p146 = por %p144, %p145
      %p147 = scmp.ne.s32.totalorder %s136, %s137
      %p148 = scmp.eq.s32.totalorder %s18, 0
      %p149 = por %p147, %p148
      %p150 = scmp.ne.s32.totalorder %s136, %s137
      %p151 = scmp.eq.s32.totalorder %s19, 1
      %p152 = por %p150, %p151
      %p154 = scmp.ne.s32.totalorder %s137, %s153
      %p155 = scmp.eq.s32.totalorder %s19, 0
      %p156 = por %p154, %p155
      %p157 = scmp.le.s32.totalorder 1, %s13
      %p158 = scmp.lt.s32.totalorder %s13, 3
      %p159 = pnand %p157, %p158
      %p160 = pneg %p159
      // Predicated region
      $region9: #{mask_mamba_forward.4} parent=5 // pred_check
        _
      $region10: #{mask_mamba_forward.4} parent=5 // pred_check_branch
        %162 = sbr.rel (%p159) target = $region12
      $region11: #{mask_mamba_forward.4} parent=5 // pred_region
        %s163 = ssub.s32 %s13, 1
        // Predicated region
        $region13: #{mask_mamba_forward.4} parent=11 // pred_check
          %p164 = pneg %p60
        $region14: #{mask_mamba_forward.4} parent=11 // pred_check_branch
          %166 = sbr.rel (%p164) target = $region16
        $region15: #{mask_mamba_forward.4} parent=11 // pred_region
          %s168 = ssub.s32 36864, 36864
          %169 = vsyncadd [#allocation3], %s168
          %s170 = sshll.u32 [#allocation2], 4
          %s171 = int_to_ptr.vmem [resolvable:$true] %s170
          %176 = dma.hbm_to_vmem [thread:$0]  %s1, 36864, %s171, [#allocation3], 384, 384, 24
        $region16: #{mask_mamba_forward.4} parent=11 // pred_fallthru
          _
        // Predicated region
        $region17: #{mask_mamba_forward.4} parent=11 // pred_check
          %p177 = pneg %p81
        $region18: #{mask_mamba_forward.4} parent=11 // pred_check_branch
          %179 = sbr.rel (%p177) target = $region20
        $region19: #{mask_mamba_forward.4} parent=11 // pred_region
          %s181 = ssub.s32 96, 96
          %182 = vsyncadd [#allocation5], %s181
          %s184 = sshll.u32 [#allocation4], 4
          %s185 = int_to_ptr.vmem [resolvable:$true] %s184
          %187 = dma.hbm_to_vmem [thread:$0]  %s2, 96, %s185, [#allocation5]
        $region20: #{mask_mamba_forward.4} parent=11 // pred_fallthru
          _
        // Predicated region
        $region21: #{mask_mamba_forward.4} parent=11 // pred_check
          %p188 = pneg %p102
        $region22: #{mask_mamba_forward.4} parent=11 // pred_check_branch
          %190 = sbr.rel (%p188) target = $region24
        $region23: #{mask_mamba_forward.4} parent=11 // pred_region
          _
        $region24: #{mask_mamba_forward.4} parent=11 // pred_fallthru
          _
        // Predicated region
        $region25: #{mask_mamba_forward.4} parent=11 // pred_check
          %p191 = pneg %p123
        $region26: #{mask_mamba_forward.4} parent=11 // pred_check_branch
          %193 = sbr.rel (%p191) target = $region28
        $region27: #{mask_mamba_forward.4} parent=11 // pred_region
          %s195 = ssub.s32 16, 16
          %196 = vsyncadd [#allocation5], %s195
          %s198 = sshll.u32 [#allocation6], 4
          %s199 = int_to_ptr.vmem [resolvable:$true] %s198
          %201 = dma.hbm_to_vmem [thread:$0]  %s4, 16, %s199, [#allocation5]
        $region28: #{mask_mamba_forward.4} parent=11 // pred_fallthru
          _
      $region12: #{mask_mamba_forward.4} parent=5 // pred_fallthru
        _
      %p202 = scmp.lt.s32.totalorder %s13, 2
      // Predicated region
      $region29: #{mask_mamba_forward.4} parent=5 // pred_check
        %p203 = pneg %p202
      $region30: #{mask_mamba_forward.4} parent=5 // pred_check_branch
        %205 = sbr.rel (%p203) target = $region32
      $region31: #{mask_mamba_forward.4} parent=5 // pred_region
        // Predicated region
        $region33: #{mask_mamba_forward.4} parent=31 // pred_check
          %p206 = pneg %p33
        $region34: #{mask_mamba_forward.4} parent=31 // pred_check_branch
          %208 = sbr.rel (%p206) target = $region36
        $region35: #{mask_mamba_forward.4} parent=31 // pred_region
          %p209 = scmp.lt.s32.totalorder %s13, 1
          %s210 = scalar_select %p209, %s13, 1
          %s211 = smul.addr %s210, 48
          %s212 = smul.addr %s211, 8
          %s213 = scalar_lea.vmem %s0, %s212
        $region36: #{mask_mamba_forward.4} parent=31 // pred_fallthru
          _
      $region32: #{mask_mamba_forward.4} parent=5 // pred_fallthru
        _
      %p214 = scmp.le.s32.totalorder 1, %s13
      %p215 = scmp.lt.s32.totalorder %s13, 3
      %p216 = pnand %p214, %p215
      %p217 = pneg %p216
      // Predicated region
      $region37: #{mask_mamba_forward.4} parent=5 // pred_check
        _
      $region38: #{mask_mamba_forward.4} parent=5 // pred_check_branch
        %219 = sbr.rel (%p216) target = $region40
      $region39: #{mask_mamba_forward.4} parent=5 // pred_region
        %s220 = ssub.s32 %s13, 1
        // Predicated region
        $region41: #{mask_mamba_forward.4} parent=39 // pred_check
          %p221 = pneg %p60
        $region42: #{mask_mamba_forward.4} parent=39 // pred_check_branch
          %223 = sbr.rel (%p221) target = $region44
        $region43: #{mask_mamba_forward.4} parent=39 // pred_region
          %224 = dma.done [#allocation3], 36864
        $region44: #{mask_mamba_forward.4} parent=39 // pred_fallthru
          _
        // Predicated region
        $region45: #{mask_mamba_forward.4} parent=39 // pred_check
          %p225 = pneg %p81
        $region46: #{mask_mamba_forward.4} parent=39 // pred_check_branch
          %227 = sbr.rel (%p225) target = $region48
        $region47: #{mask_mamba_forward.4} parent=39 // pred_region
          %228 = dma.done [#allocation5], 96
        $region48: #{mask_mamba_forward.4} parent=39 // pred_fallthru
          _
        // Predicated region
        $region49: #{mask_mamba_forward.4} parent=39 // pred_check
          %p229 = pneg %p123
        $region50: #{mask_mamba_forward.4} parent=39 // pred_check_branch
          %231 = sbr.rel (%p229) target = $region52
        $region51: #{mask_mamba_forward.4} parent=39 // pred_region
          %232 = dma.done [#allocation5], 16
        $region52: #{mask_mamba_forward.4} parent=39 // pred_fallthru
          _
        %p233 = scmp.lt.s32.totalorder %s18, 1
        %s234 = scalar_select %p233, %s18, 1
        %s235 = smul.addr %s234, 48
        %s236 = smul.addr %s235, 8
        %s237 = scalar_lea.vmem %s0, %s236
        %p238 = pneg %p39
        %p239 = pneg %p36
        %p240 = pneg %p60
        %p241 = pneg %p57
        %p242 = pneg %p81
        %p243 = pneg %p78
        %p244 = pneg %p102
        %p245 = pneg %p99
        %p246 = pneg %p123
        %p247 = pneg %p120
        %p248 = pneg %p149
        %p249 = pneg %p146
        %p250 = scmp.lt.s32.totalorder %s18, 1
        %s251 = scalar_select %p250, %s18, 1
        %s252 = smul.addr %s251, 2
        %s253 = smul.addr %s252, 8
        %s254 = scalar_lea.vmem %s5, %s253
        %p255 = scmp.lt.s32.totalorder %s18, 1
        %s256 = scalar_select %p255, %s18, 1
        %s257 = smul.addr %s256, 48
        %s258 = smul.addr %s257, 8
        %s259 = scalar_lea.vmem %s0, %s258
        %p260 = scmp.lt.s32.totalorder %s18, 1
        %s261 = scalar_select %p260, %s18, 1
        %s262 = smul.addr %s261, 2
        %s263 = smul.addr %s262, 8
        %s264 = scalar_lea.vmem %s5, %s263
        %v266 = vld [vmem:[%s259] sm:$0xff]
        %v267 = vld [vmem:[%s259 + $0x8] sm:$0xff]
        %v268 = vld [vmem:[%s259 + $0x10] sm:$0xff]
        %v269 = vld [vmem:[%s259 + $0x18] sm:$0xff]
        %v270 = vld [vmem:[%s259 + $0x20] sm:$0xff]
        %v271 = vld [vmem:[%s259 + $0x28] sm:$0xff]
        %v272 = vld [vmem:[%s259 + $0x30] sm:$0xff]
        %v273 = vld [vmem:[%s259 + $0x38] sm:$0xff]
        %v274 = vld [vmem:[%s259 + $0x40] sm:$0xff]
        %v275 = vld [vmem:[%s259 + $0x48] sm:$0xff]
        %v276 = vld [vmem:[%s259 + $0x50] sm:$0xff]
        %v277 = vld [vmem:[%s259 + $0x58] sm:$0xff]
        %v278 = vld [vmem:[%s259 + $0x60] sm:$0xff]
        %v279 = vld [vmem:[%s259 + $0x68] sm:$0xff]
        %v280 = vld [vmem:[%s259 + $0x70] sm:$0xff]
        %v281 = vld [vmem:[%s259 + $0x78] sm:$0xff]
        %v282 = vld [vmem:[%s259 + $0x80] sm:$0xff]
        %v283 = vld [vmem:[%s259 + $0x88] sm:$0xff]
        %v284 = vld [vmem:[%s259 + $0x90] sm:$0xff]
        %v285 = vld [vmem:[%s259 + $0x98] sm:$0xff]
        %v286 = vld [vmem:[%s259 + $0xa0] sm:$0xff]
        %v287 = vld [vmem:[%s259 + $0xa8] sm:$0xff]
        %v288 = vld [vmem:[%s259 + $0xb0] sm:$0xff]
        %v289 = vld [vmem:[%s259 + $0xb8] sm:$0xff]
        %v290 = vld [vmem:[%s259 + $0xc0] sm:$0xff]
        %v291 = vld [vmem:[%s259 + $0xc8] sm:$0xff]
        %v292 = vld [vmem:[%s259 + $0xd0] sm:$0xff]
        %v293 = vld [vmem:[%s259 + $0xd8] sm:$0xff]
        %v294 = vld [vmem:[%s259 + $0xe0] sm:$0xff]
        %v295 = vld [vmem:[%s259 + $0xe8] sm:$0xff]
        %v296 = vld [vmem:[%s259 + $0xf0] sm:$0xff]
        %v297 = vld [vmem:[%s259 + $0xf8] sm:$0xff]
        %v298 = vld [vmem:[%s259 + $0x100] sm:$0xff]
        %v299 = vld [vmem:[%s259 + $0x108] sm:$0xff]
        %v300 = vld [vmem:[%s259 + $0x110] sm:$0xff]
        %v301 = vld [vmem:[%s259 + $0x118] sm:$0xff]
        %v302 = vld [vmem:[%s259 + $0x120] sm:$0xff]
        %v303 = vld [vmem:[%s259 + $0x128] sm:$0xff]
        %v304 = vld [vmem:[%s259 + $0x130] sm:$0xff]
        %v305 = vld [vmem:[%s259 + $0x138] sm:$0xff]
        %v306 = vld [vmem:[%s259 + $0x140] sm:$0xff]
        %v307 = vld [vmem:[%s259 + $0x148] sm:$0xff]
        %v308 = vld [vmem:[%s259 + $0x150] sm:$0xff]
        %v309 = vld [vmem:[%s259 + $0x158] sm:$0xff]
        %v310 = vld [vmem:[%s259 + $0x160] sm:$0xff]
        %v311 = vld [vmem:[%s259 + $0x168] sm:$0xff]
        %v312 = vld [vmem:[%s259 + $0x170] sm:$0xff]
        %v313 = vld [vmem:[%s259 + $0x178] sm:$0xff]
        %v314 = vrot.slane %v266, 4
        %v315 = vmax.f32 %v266, %v314
        %v316 = vrot.slane %v315, 2
        %v317 = vmax.f32 %v315, %v316
        %v318 = vrot.slane %v317, 1
        %v319 = vmax.f32 %v317, %v318
        %v320 = vrot.slane %v267, 4
        %v321 = vmax.f32 %v267, %v320
        %v322 = vrot.slane %v321, 2
        %v323 = vmax.f32 %v321, %v322
        %v324 = vrot.slane %v323, 1
        %v325 = vmax.f32 %v323, %v324
        %v326 = vrot.slane %v268, 4
        %v327 = vmax.f32 %v268, %v326
        %v328 = vrot.slane %v327, 2
        %v329 = vmax.f32 %v327, %v328
        %v330 = vrot.slane %v329, 1
        %v331 = vmax.f32 %v329, %v330
        %v332 = vrot.slane %v269, 4
        %v333 = vmax.f32 %v269, %v332
        %v334 = vrot.slane %v333, 2
        %v335 = vmax.f32 %v333, %v334
        %v336 = vrot.slane %v335, 1
        %v337 = vmax.f32 %v335, %v336
        %v338 = vrot.slane %v270, 4
        %v339 = vmax.f32 %v270, %v338
        %v340 = vrot.slane %v339, 2
        %v341 = vmax.f32 %v339, %v340
        %v342 = vrot.slane %v341, 1
        %v343 = vmax.f32 %v341, %v342
        %v344 = vrot.slane %v271, 4
        %v345 = vmax.f32 %v271, %v344
        %v346 = vrot.slane %v345, 2
        %v347 = vmax.f32 %v345, %v346
        %v348 = vrot.slane %v347, 1
        %v349 = vmax.f32 %v347, %v348
        %v350 = vrot.slane %v272, 4
        %v351 = vmax.f32 %v272, %v350
        %v352 = vrot.slane %v351, 2
        %v353 = vmax.f32 %v351, %v352
        %v354 = vrot.slane %v353, 1
        %v355 = vmax.f32 %v353, %v354
        %v356 = vrot.slane %v273, 4
        %v357 = vmax.f32 %v273, %v356
        %v358 = vrot.slane %v357, 2
        %v359 = vmax.f32 %v357, %v358
        %v360 = vrot.slane %v359, 1
        %v361 = vmax.f32 %v359, %v360
        %v362 = vrot.slane %v274, 4
        %v363 = vmax.f32 %v274, %v362
        %v364 = vrot.slane %v363, 2
        %v365 = vmax.f32 %v363, %v364
        %v366 = vrot.slane %v365, 1
        %v367 = vmax.f32 %v365, %v366
        %v368 = vrot.slane %v275, 4
        %v369 = vmax.f32 %v275, %v368
        %v370 = vrot.slane %v369, 2
        %v371 = vmax.f32 %v369, %v370
        %v372 = vrot.slane %v371, 1
        %v373 = vmax.f32 %v371, %v372
        %v374 = vrot.slane %v276, 4
        %v375 = vmax.f32 %v276, %v374
        %v376 = vrot.slane %v375, 2
        %v377 = vmax.f32 %v375, %v376
        %v378 = vrot.slane %v377, 1
        %v379 = vmax.f32 %v377, %v378
        %v380 = vrot.slane %v277, 4
        %v381 = vmax.f32 %v277, %v380
        %v382 = vrot.slane %v381, 2
        %v383 = vmax.f32 %v381, %v382
        %v384 = vrot.slane %v383, 1
        %v385 = vmax.f32 %v383, %v384
        %v386 = vrot.slane %v278, 4
        %v387 = vmax.f32 %v278, %v386
        %v388 = vrot.slane %v387, 2
        %v389 = vmax.f32 %v387, %v388
        %v390 = vrot.slane %v389, 1
        %v391 = vmax.f32 %v389, %v390
        %v392 = vrot.slane %v279, 4
        %v393 = vmax.f32 %v279, %v392
        %v394 = vrot.slane %v393, 2
        %v395 = vmax.f32 %v393, %v394
        %v396 = vrot.slane %v395, 1
        %v397 = vmax.f32 %v395, %v396
        %v398 = vrot.slane %v280, 4
        %v399 = vmax.f32 %v280, %v398
        %v400 = vrot.slane %v399, 2
        %v401 = vmax.f32 %v399, %v400
        %v402 = vrot.slane %v401, 1
        %v403 = vmax.f32 %v401, %v402
        %v404 = vrot.slane %v281, 4
        %v405 = vmax.f32 %v281, %v404
        %v406 = vrot.slane %v405, 2
        %v407 = vmax.f32 %v405, %v406
        %v408 = vrot.slane %v407, 1
        %v409 = vmax.f32 %v407, %v408
        %v410 = vrot.slane %v282, 4
        %v411 = vmax.f32 %v282, %v410
        %v412 = vrot.slane %v411, 2
        %v413 = vmax.f32 %v411, %v412
        %v414 = vrot.slane %v413, 1
        %v415 = vmax.f32 %v413, %v414
        %v416 = vrot.slane %v283, 4
        %v417 = vmax.f32 %v283, %v416
        %v418 = vrot.slane %v417, 2
        %v419 = vmax.f32 %v417, %v418
        %v420 = vrot.slane %v419, 1
        %v421 = vmax.f32 %v419, %v420
        %v422 = vrot.slane %v284, 4
        %v423 = vmax.f32 %v284, %v422
        %v424 = vrot.slane %v423, 2
        %v425 = vmax.f32 %v423, %v424
        %v426 = vrot.slane %v425, 1
        %v427 = vmax.f32 %v425, %v426
        %v428 = vrot.slane %v285, 4
        %v429 = vmax.f32 %v285, %v428
        %v430 = vrot.slane %v429, 2
        %v431 = vmax.f32 %v429, %v430
        %v432 = vrot.slane %v431, 1
        %v433 = vmax.f32 %v431, %v432
        %v434 = vrot.slane %v286, 4
        %v435 = vmax.f32 %v286, %v434
        %v436 = vrot.slane %v435, 2
        %v437 = vmax.f32 %v435, %v436
        %v438 = vrot.slane %v437, 1
        %v439 = vmax.f32 %v437, %v438
        %v440 = vrot.slane %v287, 4
        %v441 = vmax.f32 %v287, %v440
        %v442 = vrot.slane %v441, 2
        %v443 = vmax.f32 %v441, %v442
        %v444 = vrot.slane %v443, 1
        %v445 = vmax.f32 %v443, %v444
        %v446 = vrot.slane %v288, 4
        %v447 = vmax.f32 %v288, %v446
        %v448 = vrot.slane %v447, 2
        %v449 = vmax.f32 %v447, %v448
        %v450 = vrot.slane %v449, 1
        %v451 = vmax.f32 %v449, %v450
        %v452 = vrot.slane %v289, 4
        %v453 = vmax.f32 %v289, %v452
        %v454 = vrot.slane %v453, 2
        %v455 = vmax.f32 %v453, %v454
        %v456 = vrot.slane %v455, 1
        %v457 = vmax.f32 %v455, %v456
        %v458 = vrot.slane %v290, 4
        %v459 = vmax.f32 %v290, %v458
        %v460 = vrot.slane %v459, 2
        %v461 = vmax.f32 %v459, %v460
        %v462 = vrot.slane %v461, 1
        %v463 = vmax.f32 %v461, %v462
        %v464 = vrot.slane %v291, 4
        %v465 = vmax.f32 %v291, %v464
        %v466 = vrot.slane %v465, 2
        %v467 = vmax.f32 %v465, %v466
        %v468 = vrot.slane %v467, 1
        %v469 = vmax.f32 %v467, %v468
        %v470 = vrot.slane %v292, 4
        %v471 = vmax.f32 %v292, %v470
        %v472 = vrot.slane %v471, 2
        %v473 = vmax.f32 %v471, %v472
        %v474 = vrot.slane %v473, 1
        %v475 = vmax.f32 %v473, %v474
        %v476 = vrot.slane %v293, 4
        %v477 = vmax.f32 %v293, %v476
        %v478 = vrot.slane %v477, 2
        %v479 = vmax.f32 %v477, %v478
        %v480 = vrot.slane %v479, 1
        %v481 = vmax.f32 %v479, %v480
        %v482 = vrot.slane %v294, 4
        %v483 = vmax.f32 %v294, %v482
        %v484 = vrot.slane %v483, 2
        %v485 = vmax.f32 %v483, %v484
        %v486 = vrot.slane %v485, 1
        %v487 = vmax.f32 %v485, %v486
        %v488 = vrot.slane %v295, 4
        %v489 = vmax.f32 %v295, %v488
        %v490 = vrot.slane %v489, 2
        %v491 = vmax.f32 %v489, %v490
        %v492 = vrot.slane %v491, 1
        %v493 = vmax.f32 %v491, %v492
        %v494 = vrot.slane %v296, 4
        %v495 = vmax.f32 %v296, %v494
        %v496 = vrot.slane %v495, 2
        %v497 = vmax.f32 %v495, %v496
        %v498 = vrot.slane %v497, 1
        %v499 = vmax.f32 %v497, %v498
        %v500 = vrot.slane %v297, 4
        %v501 = vmax.f32 %v297, %v500
        %v502 = vrot.slane %v501, 2
        %v503 = vmax.f32 %v501, %v502
        %v504 = vrot.slane %v503, 1
        %v505 = vmax.f32 %v503, %v504
        %v506 = vrot.slane %v298, 4
        %v507 = vmax.f32 %v298, %v506
        %v508 = vrot.slane %v507, 2
        %v509 = vmax.f32 %v507, %v508
        %v510 = vrot.slane %v509, 1
        %v511 = vmax.f32 %v509, %v510
        %v512 = vrot.slane %v299, 4
        %v513 = vmax.f32 %v299, %v512
        %v514 = vrot.slane %v513, 2
        %v515 = vmax.f32 %v513, %v514
        %v516 = vrot.slane %v515, 1
        %v517 = vmax.f32 %v515, %v516
        %v518 = vrot.slane %v300, 4
        %v519 = vmax.f32 %v300, %v518
        %v520 = vrot.slane %v519, 2
        %v521 = vmax.f32 %v519, %v520
        %v522 = vrot.slane %v521, 1
        %v523 = vmax.f32 %v521, %v522
        %v524 = vrot.slane %v301, 4
        %v525 = vmax.f32 %v301, %v524
        %v526 = vrot.slane %v525, 2
        %v527 = vmax.f32 %v525, %v526
        %v528 = vrot.slane %v527, 1
        %v529 = vmax.f32 %v527, %v528
        %v530 = vrot.slane %v302, 4
        %v531 = vmax.f32 %v302, %v530
        %v532 = vrot.slane %v531, 2
        %v533 = vmax.f32 %v531, %v532
        %v534 = vrot.slane %v533, 1
        %v535 = vmax.f32 %v533, %v534
        %v536 = vrot.slane %v303, 4
        %v537 = vmax.f32 %v303, %v536
        %v538 = vrot.slane %v537, 2
        %v539 = vmax.f32 %v537, %v538
        %v540 = vrot.slane %v539, 1
        %v541 = vmax.f32 %v539, %v540
        %v542 = vrot.slane %v304, 4
        %v543 = vmax.f32 %v304, %v542
        %v544 = vrot.slane %v543, 2
        %v545 = vmax.f32 %v543, %v544
        %v546 = vrot.slane %v545, 1
        %v547 = vmax.f32 %v545, %v546
        %v548 = vrot.slane %v305, 4
        %v549 = vmax.f32 %v305, %v548
        %v550 = vrot.slane %v549, 2
        %v551 = vmax.f32 %v549, %v550
        %v552 = vrot.slane %v551, 1
        %v553 = vmax.f32 %v551, %v552
        %v554 = vrot.slane %v306, 4
        %v555 = vmax.f32 %v306, %v554
        %v556 = vrot.slane %v555, 2
        %v557 = vmax.f32 %v555, %v556
        %v558 = vrot.slane %v557, 1
        %v559 = vmax.f32 %v557, %v558
        %v560 = vrot.slane %v307, 4
        %v561 = vmax.f32 %v307, %v560
        %v562 = vrot.slane %v561, 2
        %v563 = vmax.f32 %v561, %v562
        %v564 = vrot.slane %v563, 1
        %v565 = vmax.f32 %v563, %v564
        %v566 = vrot.slane %v308, 4
        %v567 = vmax.f32 %v308, %v566
        %v568 = vrot.slane %v567, 2
        %v569 = vmax.f32 %v567, %v568
        %v570 = vrot.slane %v569, 1
        %v571 = vmax.f32 %v569, %v570
        %v572 = vrot.slane %v309, 4
        %v573 = vmax.f32 %v309, %v572
        %v574 = vrot.slane %v573, 2
        %v575 = vmax.f32 %v573, %v574
        %v576 = vrot.slane %v575, 1
        %v577 = vmax.f32 %v575, %v576
        %v578 = vrot.slane %v310, 4
        %v579 = vmax.f32 %v310, %v578
        %v580 = vrot.slane %v579, 2
        %v581 = vmax.f32 %v579, %v580
        %v582 = vrot.slane %v581, 1
        %v583 = vmax.f32 %v581, %v582
        %v584 = vrot.slane %v311, 4
        %v585 = vmax.f32 %v311, %v584
        %v586 = vrot.slane %v585, 2
        %v587 = vmax.f32 %v585, %v586
        %v588 = vrot.slane %v587, 1
        %v589 = vmax.f32 %v587, %v588
        %v590 = vrot.slane %v312, 4
        %v591 = vmax.f32 %v312, %v590
        %v592 = vrot.slane %v591, 2
        %v593 = vmax.f32 %v591, %v592
        %v594 = vrot.slane %v593, 1
        %v595 = vmax.f32 %v593, %v594
        %v596 = vrot.slane %v313, 4
        %v597 = vmax.f32 %v313, %v596
        %v598 = vrot.slane %v597, 2
        %v599 = vmax.f32 %v597, %v598
        %v600 = vrot.slane %v599, 1
        %v601 = vmax.f32 %v599, %v600
        %v602 = vld [vmem:[#allocation2] sm:$0xff]
        %v603 = vld [vmem:[#allocation2 + $0x8] sm:$0xff]
        %v604 = vld [vmem:[#allocation2 + $0x10] sm:$0xff]
        %v605 = vld [vmem:[#allocation2 + $0x18] sm:$0xff]
        %v606 = vld [vmem:[#allocation2 + $0x20] sm:$0xff]
        %v607 = vld [vmem:[#allocation2 + $0x28] sm:$0xff]
        %v608 = vld [vmem:[#allocation2 + $0x30] sm:$0xff]
        %v609 = vld [vmem:[#allocation2 + $0x38] sm:$0xff]
        %v610 = vld [vmem:[#allocation2 + $0x40] sm:$0xff]
        %v611 = vld [vmem:[#allocation2 + $0x48] sm:$0xff]
        %v612 = vld [vmem:[#allocation2 + $0x50] sm:$0xff]
        %v613 = vld [vmem:[#allocation2 + $0x58] sm:$0xff]
        %v614 = vld [vmem:[#allocation2 + $0x60] sm:$0xff]
        %v615 = vld [vmem:[#allocation2 + $0x68] sm:$0xff]
        %v616 = vld [vmem:[#allocation2 + $0x70] sm:$0xff]
        %v617 = vld [vmem:[#allocation2 + $0x78] sm:$0xff]
        %v618 = vld [vmem:[#allocation2 + $0x80] sm:$0xff]
        %v619 = vld [vmem:[#allocation2 + $0x88] sm:$0xff]
        %v620 = vld [vmem:[#allocation2 + $0x90] sm:$0xff]
        %v621 = vld [vmem:[#allocation2 + $0x98] sm:$0xff]
        %v622 = vld [vmem:[#allocation2 + $0xa0] sm:$0xff]
        %v623 = vld [vmem:[#allocation2 + $0xa8] sm:$0xff]
        %v624 = vld [vmem:[#allocation2 + $0xb0] sm:$0xff]
        %v625 = vld [vmem:[#allocation2 + $0xb8] sm:$0xff]
        %v626 = vld [vmem:[#allocation2 + $0xc0] sm:$0xff]
        %v627 = vld [vmem:[#allocation2 + $0xc8] sm:$0xff]
        %v628 = vld [vmem:[#allocation2 + $0xd0] sm:$0xff]
        %v629 = vld [vmem:[#allocation2 + $0xd8] sm:$0xff]
        %v630 = vld [vmem:[#allocation2 + $0xe0] sm:$0xff]
        %v631 = vld [vmem:[#allocation2 + $0xe8] sm:$0xff]
        %v632 = vld [vmem:[#allocation2 + $0xf0] sm:$0xff]
        %v633 = vld [vmem:[#allocation2 + $0xf8] sm:$0xff]
        %v634 = vld [vmem:[#allocation2 + $0x100] sm:$0xff]
        %v635 = vld [vmem:[#allocation2 + $0x108] sm:$0xff]
        %v636 = vld [vmem:[#allocation2 + $0x110] sm:$0xff]
        %v637 = vld [vmem:[#allocation2 + $0x118] sm:$0xff]
        %v638 = vld [vmem:[#allocation2 + $0x120] sm:$0xff]
        %v639 = vld [vmem:[#allocation2 + $0x128] sm:$0xff]
        %v640 = vld [vmem:[#allocation2 + $0x130] sm:$0xff]
        %v641 = vld [vmem:[#allocation2 + $0x138] sm:$0xff]
        %v642 = vld [vmem:[#allocation2 + $0x140] sm:$0xff]
        %v643 = vld [vmem:[#allocation2 + $0x148] sm:$0xff]
        %v644 = vld [vmem:[#allocation2 + $0x150] sm:$0xff]
        %v645 = vld [vmem:[#allocation2 + $0x158] sm:$0xff]
        %v646 = vld [vmem:[#allocation2 + $0x160] sm:$0xff]
        %v647 = vld [vmem:[#allocation2 + $0x168] sm:$0xff]
        %v648 = vld [vmem:[#allocation2 + $0x170] sm:$0xff]
        %v649 = vld [vmem:[#allocation2 + $0x178] sm:$0xff]
        %v650 = vld [vmem:[#allocation2 + $0x180] sm:$0xff]
        %v651 = vld [vmem:[#allocation2 + $0x188] sm:$0xff]
        %v652 = vld [vmem:[#allocation2 + $0x190] sm:$0xff]
        %v653 = vld [vmem:[#allocation2 + $0x198] sm:$0xff]
        %v654 = vld [vmem:[#allocation2 + $0x1a0] sm:$0xff]
        %v655 = vld [vmem:[#allocation2 + $0x1a8] sm:$0xff]
        %v656 = vld [vmem:[#allocation2 + $0x1b0] sm:$0xff]
        %v657 = vld [vmem:[#allocation2 + $0x1b8] sm:$0xff]
        %v658 = vld [vmem:[#allocation2 + $0x1c0] sm:$0xff]
        %v659 = vld [vmem:[#allocation2 + $0x1c8] sm:$0xff]
        %v660 = vld [vmem:[#allocation2 + $0x1d0] sm:$0xff]
        %v661 = vld [vmem:[#allocation2 + $0x1d8] sm:$0xff]
        %v662 = vld [vmem:[#allocation2 + $0x1e0] sm:$0xff]
        %v663 = vld [vmem:[#allocation2 + $0x1e8] sm:$0xff]
        %v664 = vld [vmem:[#allocation2 + $0x1f0] sm:$0xff]
        %v665 = vld [vmem:[#allocation2 + $0x1f8] sm:$0xff]
        %v666 = vld [vmem:[#allocation2 + $0x200] sm:$0xff]
        %v667 = vld [vmem:[#allocation2 + $0x208] sm:$0xff]
        %v668 = vld [vmem:[#allocation2 + $0x210] sm:$0xff]
        %v669 = vld [vmem:[#allocation2 + $0x218] sm:$0xff]
        %v670 = vld [vmem:[#allocation2 + $0x220] sm:$0xff]
        %v671 = vld [vmem:[#allocation2 + $0x228] sm:$0xff]
        %v672 = vld [vmem:[#allocation2 + $0x230] sm:$0xff]
        %v673 = vld [vmem:[#allocation2 + $0x238] sm:$0xff]
        %v674 = vld [vmem:[#allocation2 + $0x240] sm:$0xff]
        %v675 = vld [vmem:[#allocation2 + $0x248] sm:$0xff]
        %v676 = vld [vmem:[#allocation2 + $0x250] sm:$0xff]
        %v677 = vld [vmem:[#allocation2 + $0x258] sm:$0xff]
        %v678 = vld [vmem:[#allocation2 + $0x260] sm:$0xff]
        %v679 = vld [vmem:[#allocation2 + $0x268] sm:$0xff]
        %v680 = vld [vmem:[#allocation2 + $0x270] sm:$0xff]
        %v681 = vld [vmem:[#allocation2 + $0x278] sm:$0xff]
        %v682 = vld [vmem:[#allocation2 + $0x280] sm:$0xff]
        %v683 = vld [vmem:[#allocation2 + $0x288] sm:$0xff]
        %v684 = vld [vmem:[#allocation2 + $0x290] sm:$0xff]
        %v685 = vld [vmem:[#allocation2 + $0x298] sm:$0xff]
        %v686 = vld [vmem:[#allocation2 + $0x2a0] sm:$0xff]
        %v687 = vld [vmem:[#allocation2 + $0x2a8] sm:$0xff]
        %v688 = vld [vmem:[#allocation2 + $0x2b0] sm:$0xff]
        %v689 = vld [vmem:[#allocation2 + $0x2b8] sm:$0xff]
        %v690 = vld [vmem:[#allocation2 + $0x2c0] sm:$0xff]
        %v691 = vld [vmem:[#allocation2 + $0x2c8] sm:$0xff]
        %v692 = vld [vmem:[#allocation2 + $0x2d0] sm:$0xff]
        %v693 = vld [vmem:[#allocation2 + $0x2d8] sm:$0xff]
        %v694 = vld [vmem:[#allocation2 + $0x2e0] sm:$0xff]
        %v695 = vld [vmem:[#allocation2 + $0x2e8] sm:$0xff]
        %v696 = vld [vmem:[#allocation2 + $0x2f0] sm:$0xff]
        %v697 = vld [vmem:[#allocation2 + $0x2f8] sm:$0xff]
        %v698 = vld [vmem:[#allocation2 + $0x300] sm:$0xff]
        %v699 = vld [vmem:[#allocation2 + $0x308] sm:$0xff]
        %v700 = vld [vmem:[#allocation2 + $0x310] sm:$0xff]
        %v701 = vld [vmem:[#allocation2 + $0x318] sm:$0xff]
        %v702 = vld [vmem:[#allocation2 + $0x320] sm:$0xff]
        %v703 = vld [vmem:[#allocation2 + $0x328] sm:$0xff]
        %v704 = vld [vmem:[#allocation2 + $0x330] sm:$0xff]
        %v705 = vld [vmem:[#allocation2 + $0x338] sm:$0xff]
        %v706 = vld [vmem:[#allocation2 + $0x340] sm:$0xff]
        %v707 = vld [vmem:[#allocation2 + $0x348] sm:$0xff]
        %v708 = vld [vmem:[#allocation2 + $0x350] sm:$0xff]
        %v709 = vld [vmem:[#allocation2 + $0x358] sm:$0xff]
        %v710 = vld [vmem:[#allocation2 + $0x360] sm:$0xff]
        %v711 = vld [vmem:[#allocation2 + $0x368] sm:$0xff]
        %v712 = vld [vmem:[#allocation2 + $0x370] sm:$0xff]
        %v713 = vld [vmem:[#allocation2 + $0x378] sm:$0xff]
        %v714 = vld [vmem:[#allocation2 + $0x380] sm:$0xff]
        %v715 = vld [vmem:[#allocation2 + $0x388] sm:$0xff]
        %v716 = vld [vmem:[#allocation2 + $0x390] sm:$0xff]
        %v717 = vld [vmem:[#allocation2 + $0x398] sm:$0xff]
        %v718 = vld [vmem:[#allocation2 + $0x3a0] sm:$0xff]
        %v719 = vld [vmem:[#allocation2 + $0x3a8] sm:$0xff]
        %v720 = vld [vmem:[#allocation2 + $0x3b0] sm:$0xff]
        %v721 = vld [vmem:[#allocation2 + $0x3b8] sm:$0xff]
        %v722 = vld [vmem:[#allocation2 + $0x3c0] sm:$0xff]
        %v723 = vld [vmem:[#allocation2 + $0x3c8] sm:$0xff]
        %v724 = vld [vmem:[#allocation2 + $0x3d0] sm:$0xff]
        %v725 = vld [vmem:[#allocation2 + $0x3d8] sm:$0xff]
        %v726 = vld [vmem:[#allocation2 + $0x3e0] sm:$0xff]
        %v727 = vld [vmem:[#allocation2 + $0x3e8] sm:$0xff]
        %v728 = vld [vmem:[#allocation2 + $0x3f0] sm:$0xff]
        %v729 = vld [vmem:[#allocation2 + $0x3f8] sm:$0xff]
        %v730 = vld [vmem:[#allocation2 + $0x400] sm:$0xff]
        %v731 = vld [vmem:[#allocation2 + $0x408] sm:$0xff]
        %v732 = vld [vmem:[#allocation2 + $0x410] sm:$0xff]
        %v733 = vld [vmem:[#allocation2 + $0x418] sm:$0xff]
        %v734 = vld [vmem:[#allocation2 + $0x420] sm:$0xff]
        %v735 = vld [vmem:[#allocation2 + $0x428] sm:$0xff]
        %v736 = vld [vmem:[#allocation2 + $0x430] sm:$0xff]
        %v737 = vld [vmem:[#allocation2 + $0x438] sm:$0xff]
        %v738 = vld [vmem:[#allocation2 + $0x440] sm:$0xff]
        %v739 = vld [vmem:[#allocation2 + $0x448] sm:$0xff]
        %v740 = vld [vmem:[#allocation2 + $0x450] sm:$0xff]
        %v741 = vld [vmem:[#allocation2 + $0x458] sm:$0xff]
        %v742 = vld [vmem:[#allocation2 + $0x460] sm:$0xff]
        %v743 = vld [vmem:[#allocation2 + $0x468] sm:$0xff]
        %v744 = vld [vmem:[#allocation2 + $0x470] sm:$0xff]
        %v745 = vld [vmem:[#allocation2 + $0x478] sm:$0xff]
        %v746 = vld [vmem:[#allocation2 + $0x480] sm:$0xff]
        %v747 = vld [vmem:[#allocation2 + $0x488] sm:$0xff]
        %v748 = vld [vmem:[#allocation2 + $0x490] sm:$0xff]
        %v749 = vld [vmem:[#allocation2 + $0x498] sm:$0xff]
        %v750 = vld [vmem:[#allocation2 + $0x4a0] sm:$0xff]
        %v751 = vld [vmem:[#allocation2 + $0x4a8] sm:$0xff]
        %v752 = vld [vmem:[#allocation2 + $0x4b0] sm:$0xff]
        %v753 = vld [vmem:[#allocation2 + $0x4b8] sm:$0xff]
        %v754 = vld [vmem:[#allocation2 + $0x4c0] sm:$0xff]
        %v755 = vld [vmem:[#allocation2 + $0x4c8] sm:$0xff]
        %v756 = vld [vmem:[#allocation2 + $0x4d0] sm:$0xff]
        %v757 = vld [vmem:[#allocation2 + $0x4d8] sm:$0xff]
        %v758 = vld [vmem:[#allocation2 + $0x4e0] sm:$0xff]
        %v759 = vld [vmem:[#allocation2 + $0x4e8] sm:$0xff]
        %v760 = vld [vmem:[#allocation2 + $0x4f0] sm:$0xff]
        %v761 = vld [vmem:[#allocation2 + $0x4f8] sm:$0xff]
        %v762 = vld [vmem:[#allocation2 + $0x500] sm:$0xff]
        %v763 = vld [vmem:[#allocation2 + $0x508] sm:$0xff]
        %v764 = vld [vmem:[#allocation2 + $0x510] sm:$0xff]
        %v765 = vld [vmem:[#allocation2 + $0x518] sm:$0xff]
        %v766 = vld [vmem:[#allocation2 + $0x520] sm:$0xff]
        %v767 = vld [vmem:[#allocation2 + $0x528] sm:$0xff]
        %v768 = vld [vmem:[#allocation2 + $0x530] sm:$0xff]
        %v769 = vld [vmem:[#allocation2 + $0x538] sm:$0xff]
        %v770 = vld [vmem:[#allocation2 + $0x540] sm:$0xff]
        %v771 = vld [vmem:[#allocation2 + $0x548] sm:$0xff]
        %v772 = vld [vmem:[#allocation2 + $0x550] sm:$0xff]
        %v773 = vld [vmem:[#allocation2 + $0x558] sm:$0xff]
        %v774 = vld [vmem:[#allocation2 + $0x560] sm:$0xff]
        %v775 = vld [vmem:[#allocation2 + $0x568] sm:$0xff]
        %v776 = vld [vmem:[#allocation2 + $0x570] sm:$0xff]
        %v777 = vld [vmem:[#allocation2 + $0x578] sm:$0xff]
        %v778 = vld [vmem:[#allocation2 + $0x580] sm:$0xff]
        %v779 = vld [vmem:[#allocation2 + $0x588] sm:$0xff]
        %v780 = vld [vmem:[#allocation2 + $0x590] sm:$0xff]
        %v781 = vld [vmem:[#allocation2 + $0x598] sm:$0xff]
        %v782 = vld [vmem:[#allocation2 + $0x5a0] sm:$0xff]
        %v783 = vld [vmem:[#allocation2 + $0x5a8] sm:$0xff]
        %v784 = vld [vmem:[#allocation2 + $0x5b0] sm:$0xff]
        %v785 = vld [vmem:[#allocation2 + $0x5b8] sm:$0xff]
        %v786 = vld [vmem:[#allocation2 + $0x5c0] sm:$0xff]
        %v787 = vld [vmem:[#allocation2 + $0x5c8] sm:$0xff]
        %v788 = vld [vmem:[#allocation2 + $0x5d0] sm:$0xff]
        %v789 = vld [vmem:[#allocation2 + $0x5d8] sm:$0xff]
        %v790 = vld [vmem:[#allocation2 + $0x5e0] sm:$0xff]
        %v791 = vld [vmem:[#allocation2 + $0x5e8] sm:$0xff]
        %v792 = vld [vmem:[#allocation2 + $0x5f0] sm:$0xff]
        %v793 = vld [vmem:[#allocation2 + $0x5f8] sm:$0xff]
        %v794 = vld [vmem:[#allocation2 + $0x600] sm:$0xff]
        %v795 = vld [vmem:[#allocation2 + $0x608] sm:$0xff]
        %v796 = vld [vmem:[#allocation2 + $0x610] sm:$0xff]
        %v797 = vld [vmem:[#allocation2 + $0x618] sm:$0xff]
        %v798 = vld [vmem:[#allocation2 + $0x620] sm:$0xff]
        %v799 = vld [vmem:[#allocation2 + $0x628] sm:$0xff]
        %v800 = vld [vmem:[#allocation2 + $0x630] sm:$0xff]
        %v801 = vld [vmem:[#allocation2 + $0x638] sm:$0xff]
        %v802 = vld [vmem:[#allocation2 + $0x640] sm:$0xff]
        %v803 = vld [vmem:[#allocation2 + $0x648] sm:$0xff]
        %v804 = vld [vmem:[#allocation2 + $0x650] sm:$0xff]
        %v805 = vld [vmem:[#allocation2 + $0x658] sm:$0xff]
        %v806 = vld [vmem:[#allocation2 + $0x660] sm:$0xff]
        %v807 = vld [vmem:[#allocation2 + $0x668] sm:$0xff]
        %v808 = vld [vmem:[#allocation2 + $0x670] sm:$0xff]
        %v809 = vld [vmem:[#allocation2 + $0x678] sm:$0xff]
        %v810 = vld [vmem:[#allocation2 + $0x680] sm:$0xff]
        %v811 = vld [vmem:[#allocation2 + $0x688] sm:$0xff]
        %v812 = vld [vmem:[#allocation2 + $0x690] sm:$0xff]
        %v813 = vld [vmem:[#allocation2 + $0x698] sm:$0xff]
        %v814 = vld [vmem:[#allocation2 + $0x6a0] sm:$0xff]
        %v815 = vld [vmem:[#allocation2 + $0x6a8] sm:$0xff]
        %v816 = vld [vmem:[#allocation2 + $0x6b0] sm:$0xff]
        %v817 = vld [vmem:[#allocation2 + $0x6b8] sm:$0xff]
        %v818 = vld [vmem:[#allocation2 + $0x6c0] sm:$0xff]
        %v819 = vld [vmem:[#allocation2 + $0x6c8] sm:$0xff]
        %v820 = vld [vmem:[#allocation2 + $0x6d0] sm:$0xff]
        %v821 = vld [vmem:[#allocation2 + $0x6d8] sm:$0xff]
        %v822 = vld [vmem:[#allocation2 + $0x6e0] sm:$0xff]
        %v823 = vld [vmem:[#allocation2 + $0x6e8] sm:$0xff]
        %v824 = vld [vmem:[#allocation2 + $0x6f0] sm:$0xff]
        %v825 = vld [vmem:[#allocation2 + $0x6f8] sm:$0xff]
        %v826 = vld [vmem:[#allocation2 + $0x700] sm:$0xff]
        %v827 = vld [vmem:[#allocation2 + $0x708] sm:$0xff]
        %v828 = vld [vmem:[#allocation2 + $0x710] sm:$0xff]
        %v829 = vld [vmem:[#allocation2 + $0x718] sm:$0xff]
        %v830 = vld [vmem:[#allocation2 + $0x720] sm:$0xff]
        %v831 = vld [vmem:[#allocation2 + $0x728] sm:$0xff]
        %v832 = vld [vmem:[#allocation2 + $0x730] sm:$0xff]
        %v833 = vld [vmem:[#allocation2 + $0x738] sm:$0xff]
        %v834 = vld [vmem:[#allocation2 + $0x740] sm:$0xff]
        %v835 = vld [vmem:[#allocation2 + $0x748] sm:$0xff]
        %v836 = vld [vmem:[#allocation2 + $0x750] sm:$0xff]
        %v837 = vld [vmem:[#allocation2 + $0x758] sm:$0xff]
        %v838 = vld [vmem:[#allocation2 + $0x760] sm:$0xff]
        %v839 = vld [vmem:[#allocation2 + $0x768] sm:$0xff]
        %v840 = vld [vmem:[#allocation2 + $0x770] sm:$0xff]
        %v841 = vld [vmem:[#allocation2 + $0x778] sm:$0xff]
        %v842 = vld [vmem:[#allocation2 + $0x780] sm:$0xff]
        %v843 = vld [vmem:[#allocation2 + $0x788] sm:$0xff]
        %v844 = vld [vmem:[#allocation2 + $0x790] sm:$0xff]
        %v845 = vld [vmem:[#allocation2 + $0x798] sm:$0xff]
        %v846 = vld [vmem:[#allocation2 + $0x7a0] sm:$0xff]
        %v847 = vld [vmem:[#allocation2 + $0x7a8] sm:$0xff]
        %v848 = vld [vmem:[#allocation2 + $0x7b0] sm:$0xff]
        %v849 = vld [vmem:[#allocation2 + $0x7b8] sm:$0xff]
        %v850 = vld [vmem:[#allocation2 + $0x7c0] sm:$0xff]
        %v851 = vld [vmem:[#allocation2 + $0x7c8] sm:$0xff]
        %v852 = vld [vmem:[#allocation2 + $0x7d0] sm:$0xff]
        %v853 = vld [vmem:[#allocation2 + $0x7d8] sm:$0xff]
        %v854 = vld [vmem:[#allocation2 + $0x7e0] sm:$0xff]
        %v855 = vld [vmem:[#allocation2 + $0x7e8] sm:$0xff]
        %v856 = vld [vmem:[#allocation2 + $0x7f0] sm:$0xff]
        %v857 = vld [vmem:[#allocation2 + $0x7f8] sm:$0xff]
        %v858 = vld [vmem:[#allocation2 + $0x800] sm:$0xff]
        %v859 = vld [vmem:[#allocation2 + $0x808] sm:$0xff]
        %v860 = vld [vmem:[#allocation2 + $0x810] sm:$0xff]
        %v861 = vld [vmem:[#allocation2 + $0x818] sm:$0xff]
        %v862 = vld [vmem:[#allocation2 + $0x820] sm:$0xff]
        %v863 = vld [vmem:[#allocation2 + $0x828] sm:$0xff]
        %v864 = vld [vmem:[#allocation2 + $0x830] sm:$0xff]
        %v865 = vld [vmem:[#allocation2 + $0x838] sm:$0xff]
        %v866 = vld [vmem:[#allocation2 + $0x840] sm:$0xff]
        %v867 = vld [vmem:[#allocation2 + $0x848] sm:$0xff]
        %v868 = vld [vmem:[#allocation2 + $0x850] sm:$0xff]
        %v869 = vld [vmem:[#allocation2 + $0x858] sm:$0xff]
        %v870 = vld [vmem:[#allocation2 + $0x860] sm:$0xff]
        %v871 = vld [vmem:[#allocation2 + $0x868] sm:$0xff]
        %v872 = vld [vmem:[#allocation2 + $0x870] sm:$0xff]
        %v873 = vld [vmem:[#allocation2 + $0x878] sm:$0xff]
        %v874 = vld [vmem:[#allocation2 + $0x880] sm:$0xff]
        %v875 = vld [vmem:[#allocation2 + $0x888] sm:$0xff]
        %v876 = vld [vmem:[#allocation2 + $0x890] sm:$0xff]
        %v877 = vld [vmem:[#allocation2 + $0x898] sm:$0xff]
        %v878 = vld [vmem:[#allocation2 + $0x8a0] sm:$0xff]
        %v879 = vld [vmem:[#allocation2 + $0x8a8] sm:$0xff]
        %v880 = vld [vmem:[#allocation2 + $0x8b0] sm:$0xff]
        %v881 = vld [vmem:[#allocation2 + $0x8b8] sm:$0xff]
        %v882 = vld [vmem:[#allocation2 + $0x8c0] sm:$0xff]
        %v883 = vld [vmem:[#allocation2 + $0x8c8] sm:$0xff]
        %v884 = vld [vmem:[#allocation2 + $0x8d0] sm:$0xff]
        %v885 = vld [vmem:[#allocation2 + $0x8d8] sm:$0xff]
        %v886 = vld [vmem:[#allocation2 + $0x8e0] sm:$0xff]
        %v887 = vld [vmem:[#allocation2 + $0x8e8] sm:$0xff]
        %v888 = vld [vmem:[#allocation2 + $0x8f0] sm:$0xff]
        %v889 = vld [vmem:[#allocation2 + $0x8f8] sm:$0xff]
        %v890 = vpack.c.bf16 %v337, %v319
        %v891 = vpack.c.bf16 %v343, %v325
        %v892 = vpack.c.bf16 %v349, %v331
        %v893 = vpack.c.bf16 %v269, %v266
        %v894 = vpack.c.bf16 %v270, %v267
        %v895 = vpack.c.bf16 %v271, %v268
        %v896 = vpack.c.bf16 %v373, %v355
        %v897 = vpack.c.bf16 %v379, %v361
        %v898 = vpack.c.bf16 %v385, %v367
        %v899 = vpack.c.bf16 %v275, %v272
        %v900 = vpack.c.bf16 %v276, %v273
        %v901 = vpack.c.bf16 %v277, %v274
        %v902 = vpack.c.bf16 %v409, %v391
        %v903 = vpack.c.bf16 %v415, %v397
        %v904 = vpack.c.bf16 %v421, %v403
        %v905 = vpack.c.bf16 %v281, %v278
        %v906 = vpack.c.bf16 %v282, %v279
        %v907 = vpack.c.bf16 %v283, %v280
        %v908 = vpack.c.bf16 %v445, %v427
        %v909 = vpack.c.bf16 %v451, %v433
        %v910 = vpack.c.bf16 %v457, %v439
        %v911 = vpack.c.bf16 %v287, %v284
        %v912 = vpack.c.bf16 %v288, %v285
        %v913 = vpack.c.bf16 %v289, %v286
        %v914 = vpack.c.bf16 %v481, %v463
        %v915 = vpack.c.bf16 %v487, %v469
        %v916 = vpack.c.bf16 %v493, %v475
        %v917 = vpack.c.bf16 %v293, %v290
        %v918 = vpack.c.bf16 %v294, %v291
        %v919 = vpack.c.bf16 %v295, %v292
        %v920 = vpack.c.bf16 %v517, %v499
        %v921 = vpack.c.bf16 %v523, %v505
        %v922 = vpack.c.bf16 %v529, %v511
        %v923 = vpack.c.bf16 %v299, %v296
        %v924 = vpack.c.bf16 %v300, %v297
        %v925 = vpack.c.bf16 %v301, %v298
        %v926 = vpack.c.bf16 %v553, %v535
        %v927 = vpack.c.bf16 %v559, %v541
        %v928 = vpack.c.bf16 %v565, %v547
        %v929 = vpack.c.bf16 %v305, %v302
        %v930 = vpack.c.bf16 %v306, %v303
        %v931 = vpack.c.bf16 %v307, %v304
        %v932 = vpack.c.bf16 %v589, %v571
        %v933 = vpack.c.bf16 %v595, %v577
        %v934 = vpack.c.bf16 %v601, %v583
        %v935 = vpack.c.bf16 %v311, %v308
        %v936 = vpack.c.bf16 %v312, %v309
        %v937 = vpack.c.bf16 %v313, %v310
        %v938 = vld [vmem:[#allocation4] sm:$0x3f]
        %v940 = vlaneseq
        %v941 = vshrl.u32 %v940, 7
        %v942 = vsub.s32 0, %v941
        %v943 = vrot.slane %v938, %v942
        %v944 = vlaneseq
        %v945 = vshrl.u32 %v944, 7
        %v946 = vsub.s32 1, %v945
        %v947 = vrot.slane %v938, %v946
        %v948 = vlaneseq
        %v949 = vshrl.u32 %v948, 7
        %v950 = vsub.s32 2, %v949
        %v951 = vrot.slane %v938, %v950
        %v952 = vlaneseq
        %v953 = vshrl.u32 %v952, 7
        %v954 = vsub.s32 3, %v953
        %v955 = vrot.slane %v938, %v954
        %v956 = vlaneseq
        %v957 = vshrl.u32 %v956, 7
        %v958 = vsub.s32 4, %v957
        %v959 = vrot.slane %v938, %v958
        %v960 = vlaneseq
        %v961 = vshrl.u32 %v960, 7
        %v962 = vsub.s32 5, %v961
        %v963 = vrot.slane %v938, %v962
        %v1258 = vunpack.c.l.b16 %v602
        %v1259 = vunpack.c.h.b16 %v602
        %v1260 = vunpack.c.l.b16 %v603
        %v1261 = vunpack.c.h.b16 %v603
        %v1262 = vunpack.c.l.b16 %v604
        %v1263 = vunpack.c.h.b16 %v604
        %v1264 = vunpack.c.l.b16 %v605
        %v1265 = vunpack.c.h.b16 %v605
        %v1266 = vunpack.c.l.b16 %v606
        %v1267 = vunpack.c.h.b16 %v606
        %v1268 = vunpack.c.l.b16 %v607
        %v1269 = vunpack.c.h.b16 %v607
        %v1270 = vunpack.c.l.b16 %v608
        %v1271 = vunpack.c.h.b16 %v608
        %v1272 = vunpack.c.l.b16 %v609
        %v1273 = vunpack.c.h.b16 %v609
        %v1274 = vunpack.c.l.b16 %v610
        %v1275 = vunpack.c.h.b16 %v610
        %v1276 = vunpack.c.l.b16 %v611
        %v1277 = vunpack.c.h.b16 %v611
        %v1278 = vunpack.c.l.b16 %v612
        %v1279 = vunpack.c.h.b16 %v612
        %v1280 = vunpack.c.l.b16 %v613
        %v1281 = vunpack.c.h.b16 %v613
        %v1282 = vunpack.c.l.b16 %v614
        %v1283 = vunpack.c.h.b16 %v614
        %v1284 = vunpack.c.l.b16 %v615
        %v1285 = vunpack.c.h.b16 %v615
        %v1286 = vunpack.c.l.b16 %v616
        %v1287 = vunpack.c.h.b16 %v616
        %v1288 = vunpack.c.l.b16 %v617
        %v1289 = vunpack.c.h.b16 %v617
        %v1290 = vunpack.c.l.b16 %v618
        %v1291 = vunpack.c.h.b16 %v618
        %v1292 = vunpack.c.l.b16 %v619
        %v1293 = vunpack.c.h.b16 %v619
        %v1294 = vunpack.c.l.b16 %v620
        %v1295 = vunpack.c.h.b16 %v620
        %v1296 = vunpack.c.l.b16 %v621
        %v1297 = vunpack.c.h.b16 %v621
        %v1298 = vunpack.c.l.b16 %v622
        %v1299 = vunpack.c.h.b16 %v622
        %v1300 = vunpack.c.l.b16 %v623
        %v1301 = vunpack.c.h.b16 %v623
        %v1302 = vunpack.c.l.b16 %v624
        %v1303 = vunpack.c.h.b16 %v624
        %v1304 = vunpack.c.l.b16 %v625
        %v1305 = vunpack.c.h.b16 %v625
        %v1306 = vunpack.c.l.b16 %v626
        %v1307 = vunpack.c.h.b16 %v626
        %v1308 = vunpack.c.l.b16 %v627
        %v1309 = vunpack.c.h.b16 %v627
        %v1310 = vunpack.c.l.b16 %v628
        %v1311 = vunpack.c.h.b16 %v628
        %v1312 = vunpack.c.l.b16 %v629
        %v1313 = vunpack.c.h.b16 %v629
        %v1314 = vunpack.c.l.b16 %v630
        %v1315 = vunpack.c.h.b16 %v630
        %v1316 = vunpack.c.l.b16 %v631
        %v1317 = vunpack.c.h.b16 %v631
        %v1318 = vunpack.c.l.b16 %v632
        %v1319 = vunpack.c.h.b16 %v632
        %v1320 = vunpack.c.l.b16 %v633
        %v1321 = vunpack.c.h.b16 %v633
        %v1322 = vunpack.c.l.b16 %v634
        %v1323 = vunpack.c.h.b16 %v634
        %v1324 = vunpack.c.l.b16 %v635
        %v1325 = vunpack.c.h.b16 %v635
        %v1326 = vunpack.c.l.b16 %v636
        %v1327 = vunpack.c.h.b16 %v636
        %v1328 = vunpack.c.l.b16 %v637
        %v1329 = vunpack.c.h.b16 %v637
        %v1330 = vunpack.c.l.b16 %v638
        %v1331 = vunpack.c.h.b16 %v638
        %v1332 = vunpack.c.l.b16 %v639
        %v1333 = vunpack.c.h.b16 %v639
        %v1334 = vunpack.c.l.b16 %v640
        %v1335 = vunpack.c.h.b16 %v640
        %v1336 = vunpack.c.l.b16 %v641
        %v1337 = vunpack.c.h.b16 %v641
        %v1338 = vunpack.c.l.b16 %v642
        %v1339 = vunpack.c.h.b16 %v642
        %v1340 = vunpack.c.l.b16 %v643
        %v1341 = vunpack.c.h.b16 %v643
        %v1342 = vunpack.c.l.b16 %v644
        %v1343 = vunpack.c.h.b16 %v644
        %v1344 = vunpack.c.l.b16 %v645
        %v1345 = vunpack.c.h.b16 %v645
        %v1346 = vunpack.c.l.b16 %v646
        %v1347 = vunpack.c.h.b16 %v646
        %v1348 = vunpack.c.l.b16 %v647
        %v1349 = vunpack.c.h.b16 %v647
        %v1350 = vunpack.c.l.b16 %v648
        %v1351 = vunpack.c.h.b16 %v648
        %v1352 = vunpack.c.l.b16 %v649
        %v1353 = vunpack.c.h.b16 %v649
        %v1354 = vunpack.c.l.b16 %v650
        %v1355 = vunpack.c.h.b16 %v650
        %v1356 = vunpack.c.l.b16 %v651
        %v1357 = vunpack.c.h.b16 %v651
        %v1358 = vunpack.c.l.b16 %v652
        %v1359 = vunpack.c.h.b16 %v652
        %v1360 = vunpack.c.l.b16 %v653
        %v1361 = vunpack.c.h.b16 %v653
        %v1362 = vunpack.c.l.b16 %v654
        %v1363 = vunpack.c.h.b16 %v654
        %v1364 = vunpack.c.l.b16 %v655
        %v1365 = vunpack.c.h.b16 %v655
        %v1366 = vunpack.c.l.b16 %v656
        %v1367 = vunpack.c.h.b16 %v656
        %v1368 = vunpack.c.l.b16 %v657
        %v1369 = vunpack.c.h.b16 %v657
        %v1370 = vunpack.c.l.b16 %v658
        %v1371 = vunpack.c.h.b16 %v658
        %v1372 = vunpack.c.l.b16 %v659
        %v1373 = vunpack.c.h.b16 %v659
        %v1374 = vunpack.c.l.b16 %v660
        %v1375 = vunpack.c.h.b16 %v660
        %v1376 = vunpack.c.l.b16 %v661
        %v1377 = vunpack.c.h.b16 %v661
        %v1378 = vunpack.c.l.b16 %v662
        %v1379 = vunpack.c.h.b16 %v662
        %v1380 = vunpack.c.l.b16 %v663
        %v1381 = vunpack.c.h.b16 %v663
        %v1382 = vunpack.c.l.b16 %v664
        %v1383 = vunpack.c.h.b16 %v664
        %v1384 = vunpack.c.l.b16 %v665
        %v1385 = vunpack.c.h.b16 %v665
        %v1386 = vunpack.c.l.b16 %v666
        %v1387 = vunpack.c.h.b16 %v666
        %v1388 = vunpack.c.l.b16 %v667
        %v1389 = vunpack.c.h.b16 %v667
        %v1390 = vunpack.c.l.b16 %v668
        %v1391 = vunpack.c.h.b16 %v668
        %v1392 = vunpack.c.l.b16 %v669
        %v1393 = vunpack.c.h.b16 %v669
        %v1394 = vunpack.c.l.b16 %v670
        %v1395 = vunpack.c.h.b16 %v670
        %v1396 = vunpack.c.l.b16 %v671
        %v1397 = vunpack.c.h.b16 %v671
        %v1398 = vunpack.c.l.b16 %v672
        %v1399 = vunpack.c.h.b16 %v672
        %v1400 = vunpack.c.l.b16 %v673
        %v1401 = vunpack.c.h.b16 %v673
        %v1402 = vunpack.c.l.b16 %v674
        %v1403 = vunpack.c.h.b16 %v674
        %v1404 = vunpack.c.l.b16 %v675
        %v1405 = vunpack.c.h.b16 %v675
        %v1406 = vunpack.c.l.b16 %v676
        %v1407 = vunpack.c.h.b16 %v676
        %v1408 = vunpack.c.l.b16 %v677
        %v1409 = vunpack.c.h.b16 %v677
        %v1410 = vunpack.c.l.b16 %v678
        %v1411 = vunpack.c.h.b16 %v678
        %v1412 = vunpack.c.l.b16 %v679
        %v1413 = vunpack.c.h.b16 %v679
        %v1414 = vunpack.c.l.b16 %v680
        %v1415 = vunpack.c.h.b16 %v680
        %v1416 = vunpack.c.l.b16 %v681
        %v1417 = vunpack.c.h.b16 %v681
        %v1418 = vunpack.c.l.b16 %v682
        %v1419 = vunpack.c.h.b16 %v682
        %v1420 = vunpack.c.l.b16 %v683
        %v1421 = vunpack.c.h.b16 %v683
        %v1422 = vunpack.c.l.b16 %v684
        %v1423 = vunpack.c.h.b16 %v684
        %v1424 = vunpack.c.l.b16 %v685
        %v1425 = vunpack.c.h.b16 %v685
        %v1426 = vunpack.c.l.b16 %v686
        %v1427 = vunpack.c.h.b16 %v686
        %v1428 = vunpack.c.l.b16 %v687
        %v1429 = vunpack.c.h.b16 %v687
        %v1430 = vunpack.c.l.b16 %v688
        %v1431 = vunpack.c.h.b16 %v688
        %v1432 = vunpack.c.l.b16 %v689
        %v1433 = vunpack.c.h.b16 %v689
        %v1434 = vunpack.c.l.b16 %v690
        %v1435 = vunpack.c.h.b16 %v690
        %v1436 = vunpack.c.l.b16 %v691
        %v1437 = vunpack.c.h.b16 %v691
        %v1438 = vunpack.c.l.b16 %v692
        %v1439 = vunpack.c.h.b16 %v692
        %v1440 = vunpack.c.l.b16 %v693
        %v1441 = vunpack.c.h.b16 %v693
        %v1442 = vunpack.c.l.b16 %v694
        %v1443 = vunpack.c.h.b16 %v694
        %v1444 = vunpack.c.l.b16 %v695
        %v1445 = vunpack.c.h.b16 %v695
        %v1446 = vunpack.c.l.b16 %v696
        %v1447 = vunpack.c.h.b16 %v696
        %v1448 = vunpack.c.l.b16 %v697
        %v1449 = vunpack.c.h.b16 %v697
        %v1450 = vunpack.c.l.b16 %v698
        %v1451 = vunpack.c.h.b16 %v698
        %v1452 = vunpack.c.l.b16 %v699
        %v1453 = vunpack.c.h.b16 %v699
        %v1454 = vunpack.c.l.b16 %v700
        %v1455 = vunpack.c.h.b16 %v700
        %v1456 = vunpack.c.l.b16 %v701
        %v1457 = vunpack.c.h.b16 %v701
        %v1458 = vunpack.c.l.b16 %v702
        %v1459 = vunpack.c.h.b16 %v702
        %v1460 = vunpack.c.l.b16 %v703
        %v1461 = vunpack.c.h.b16 %v703
        %v1462 = vunpack.c.l.b16 %v704
        %v1463 = vunpack.c.h.b16 %v704
        %v1464 = vunpack.c.l.b16 %v705
        %v1465 = vunpack.c.h.b16 %v705
        %v1466 = vunpack.c.l.b16 %v706
        %v1467 = vunpack.c.h.b16 %v706
        %v1468 = vunpack.c.l.b16 %v707
        %v1469 = vunpack.c.h.b16 %v707
        %v1470 = vunpack.c.l.b16 %v708
        %v1471 = vunpack.c.h.b16 %v708
        %v1472 = vunpack.c.l.b16 %v709
        %v1473 = vunpack.c.h.b16 %v709
        %v1474 = vunpack.c.l.b16 %v710
        %v1475 = vunpack.c.h.b16 %v710
        %v1476 = vunpack.c.l.b16 %v711
        %v1477 = vunpack.c.h.b16 %v711
        %v1478 = vunpack.c.l.b16 %v712
        %v1479 = vunpack.c.h.b16 %v712
        %v1480 = vunpack.c.l.b16 %v713
        %v1481 = vunpack.c.h.b16 %v713
        %v1482 = vunpack.c.l.b16 %v714
        %v1483 = vunpack.c.h.b16 %v714
        %v1484 = vunpack.c.l.b16 %v715
        %v1485 = vunpack.c.h.b16 %v715
        %v1486 = vunpack.c.l.b16 %v716
        %v1487 = vunpack.c.h.b16 %v716
        %v1488 = vunpack.c.l.b16 %v717
        %v1489 = vunpack.c.h.b16 %v717
        %v1490 = vunpack.c.l.b16 %v718
        %v1491 = vunpack.c.h.b16 %v718
        %v1492 = vunpack.c.l.b16 %v719
        %v1493 = vunpack.c.h.b16 %v719
        %v1494 = vunpack.c.l.b16 %v720
        %v1495 = vunpack.c.h.b16 %v720
        %v1496 = vunpack.c.l.b16 %v721
        %v1497 = vunpack.c.h.b16 %v721
        %v1498 = vunpack.c.l.b16 %v722
        %v1499 = vunpack.c.h.b16 %v722
        %v1500 = vunpack.c.l.b16 %v723
        %v1501 = vunpack.c.h.b16 %v723
        %v1502 = vunpack.c.l.b16 %v724
        %v1503 = vunpack.c.h.b16 %v724
        %v1504 = vunpack.c.l.b16 %v725
        %v1505 = vunpack.c.h.b16 %v725
        %v1506 = vunpack.c.l.b16 %v726
        %v1507 = vunpack.c.h.b16 %v726
        %v1508 = vunpack.c.l.b16 %v727
        %v1509 = vunpack.c.h.b16 %v727
        %v1510 = vunpack.c.l.b16 %v728
        %v1511 = vunpack.c.h.b16 %v728
        %v1512 = vunpack.c.l.b16 %v729
        %v1513 = vunpack.c.h.b16 %v729
        %v1514 = vunpack.c.l.b16 %v730
        %v1515 = vunpack.c.h.b16 %v730
        %v1516 = vunpack.c.l.b16 %v731
        %v1517 = vunpack.c.h.b16 %v731
        %v1518 = vunpack.c.l.b16 %v732
        %v1519 = vunpack.c.h.b16 %v732
        %v1520 = vunpack.c.l.b16 %v733
        %v1521 = vunpack.c.h.b16 %v733
        %v1522 = vunpack.c.l.b16 %v734
        %v1523 = vunpack.c.h.b16 %v734
        %v1524 = vunpack.c.l.b16 %v735
        %v1525 = vunpack.c.h.b16 %v735
        %v1526 = vunpack.c.l.b16 %v736
        %v1527 = vunpack.c.h.b16 %v736
        %v1528 = vunpack.c.l.b16 %v737
        %v1529 = vunpack.c.h.b16 %v737
        %v1530 = vunpack.c.l.b16 %v738
        %v1531 = vunpack.c.h.b16 %v738
        %v1532 = vunpack.c.l.b16 %v739
        %v1533 = vunpack.c.h.b16 %v739
        %v1534 = vunpack.c.l.b16 %v740
        %v1535 = vunpack.c.h.b16 %v740
        %v1536 = vunpack.c.l.b16 %v741
        %v1537 = vunpack.c.h.b16 %v741
        %v1538 = vunpack.c.l.b16 %v742
        %v1539 = vunpack.c.h.b16 %v742
        %v1540 = vunpack.c.l.b16 %v743
        %v1541 = vunpack.c.h.b16 %v743
        %v1542 = vunpack.c.l.b16 %v744
        %v1543 = vunpack.c.h.b16 %v744
        %v1544 = vunpack.c.l.b16 %v745
        %v1545 = vunpack.c.h.b16 %v745
        %v1546 = vunpack.c.l.b16 %v746
        %v1547 = vunpack.c.h.b16 %v746
        %v1548 = vunpack.c.l.b16 %v747
        %v1549 = vunpack.c.h.b16 %v747
        %v1550 = vunpack.c.l.b16 %v748
        %v1551 = vunpack.c.h.b16 %v748
        %v1552 = vunpack.c.l.b16 %v749
        %v1553 = vunpack.c.h.b16 %v749
        %v1554 = vunpack.c.l.b16 %v750
        %v1555 = vunpack.c.h.b16 %v750
        %v1556 = vunpack.c.l.b16 %v751
        %v1557 = vunpack.c.h.b16 %v751
        %v1558 = vunpack.c.l.b16 %v752
        %v1559 = vunpack.c.h.b16 %v752
        %v1560 = vunpack.c.l.b16 %v753
        %v1561 = vunpack.c.h.b16 %v753
        %v1562 = vunpack.c.l.b16 %v754
        %v1563 = vunpack.c.h.b16 %v754
        %v1564 = vunpack.c.l.b16 %v755
        %v1565 = vunpack.c.h.b16 %v755
        %v1566 = vunpack.c.l.b16 %v756
        %v1567 = vunpack.c.h.b16 %v756
        %v1568 = vunpack.c.l.b16 %v757
        %v1569 = vunpack.c.h.b16 %v757
        %v1570 = vunpack.c.l.b16 %v758
        %v1571 = vunpack.c.h.b16 %v758
        %v1572 = vunpack.c.l.b16 %v759
        %v1573 = vunpack.c.h.b16 %v759
        %v1574 = vunpack.c.l.b16 %v760
        %v1575 = vunpack.c.h.b16 %v760
        %v1576 = vunpack.c.l.b16 %v761
        %v1577 = vunpack.c.h.b16 %v761
        %v1578 = vunpack.c.l.b16 %v762
        %v1579 = vunpack.c.h.b16 %v762
        %v1580 = vunpack.c.l.b16 %v763
        %v1581 = vunpack.c.h.b16 %v763
        %v1582 = vunpack.c.l.b16 %v764
        %v1583 = vunpack.c.h.b16 %v764
        %v1584 = vunpack.c.l.b16 %v765
        %v1585 = vunpack.c.h.b16 %v765
        %v1586 = vunpack.c.l.b16 %v766
        %v1587 = vunpack.c.h.b16 %v766
        %v1588 = vunpack.c.l.b16 %v767
        %v1589 = vunpack.c.h.b16 %v767
        %v1590 = vunpack.c.l.b16 %v768
        %v1591 = vunpack.c.h.b16 %v768
        %v1592 = vunpack.c.l.b16 %v769
        %v1593 = vunpack.c.h.b16 %v769
        %v1594 = vunpack.c.l.b16 %v770
        %v1595 = vunpack.c.h.b16 %v770
        %v1596 = vunpack.c.l.b16 %v771
        %v1597 = vunpack.c.h.b16 %v771
        %v1598 = vunpack.c.l.b16 %v772
        %v1599 = vunpack.c.h.b16 %v772
        %v1600 = vunpack.c.l.b16 %v773
        %v1601 = vunpack.c.h.b16 %v773
        %v1602 = vunpack.c.l.b16 %v774
        %v1603 = vunpack.c.h.b16 %v774
        %v1604 = vunpack.c.l.b16 %v775
        %v1605 = vunpack.c.h.b16 %v775
        %v1606 = vunpack.c.l.b16 %v776
        %v1607 = vunpack.c.h.b16 %v776
        %v1608 = vunpack.c.l.b16 %v777
        %v1609 = vunpack.c.h.b16 %v777
        %v1610 = vunpack.c.l.b16 %v778
        %v1611 = vunpack.c.h.b16 %v778
        %v1612 = vunpack.c.l.b16 %v779
        %v1613 = vunpack.c.h.b16 %v779
        %v1614 = vunpack.c.l.b16 %v780
        %v1615 = vunpack.c.h.b16 %v780
        %v1616 = vunpack.c.l.b16 %v781
        %v1617 = vunpack.c.h.b16 %v781
        %v1618 = vunpack.c.l.b16 %v782
        %v1619 = vunpack.c.h.b16 %v782
        %v1620 = vunpack.c.l.b16 %v783
        %v1621 = vunpack.c.h.b16 %v783
        %v1622 = vunpack.c.l.b16 %v784
        %v1623 = vunpack.c.h.b16 %v784
        %v1624 = vunpack.c.l.b16 %v785
        %v1625 = vunpack.c.h.b16 %v785
        %v1626 = vunpack.c.l.b16 %v786
        %v1627 = vunpack.c.h.b16 %v786
        %v1628 = vunpack.c.l.b16 %v787
        %v1629 = vunpack.c.h.b16 %v787
        %v1630 = vunpack.c.l.b16 %v788
        %v1631 = vunpack.c.h.b16 %v788
        %v1632 = vunpack.c.l.b16 %v789
        %v1633 = vunpack.c.h.b16 %v789
        %v1634 = vunpack.c.l.b16 %v790
        %v1635 = vunpack.c.h.b16 %v790
        %v1636 = vunpack.c.l.b16 %v791
        %v1637 = vunpack.c.h.b16 %v791
        %v1638 = vunpack.c.l.b16 %v792
        %v1639 = vunpack.c.h.b16 %v792
        %v1640 = vunpack.c.l.b16 %v793
        %v1641 = vunpack.c.h.b16 %v793
        %v1642 = vunpack.c.l.b16 %v794
        %v1643 = vunpack.c.h.b16 %v794
        %v1644 = vunpack.c.l.b16 %v795
        %v1645 = vunpack.c.h.b16 %v795
        %v1646 = vunpack.c.l.b16 %v796
        %v1647 = vunpack.c.h.b16 %v796
        %v1648 = vunpack.c.l.b16 %v797
        %v1649 = vunpack.c.h.b16 %v797
        %v1650 = vunpack.c.l.b16 %v798
        %v1651 = vunpack.c.h.b16 %v798
        %v1652 = vunpack.c.l.b16 %v799
        %v1653 = vunpack.c.h.b16 %v799
        %v1654 = vunpack.c.l.b16 %v800
        %v1655 = vunpack.c.h.b16 %v800
        %v1656 = vunpack.c.l.b16 %v801
        %v1657 = vunpack.c.h.b16 %v801
        %v1658 = vunpack.c.l.b16 %v802
        %v1659 = vunpack.c.h.b16 %v802
        %v1660 = vunpack.c.l.b16 %v803
        %v1661 = vunpack.c.h.b16 %v803
        %v1662 = vunpack.c.l.b16 %v804
        %v1663 = vunpack.c.h.b16 %v804
        %v1664 = vunpack.c.l.b16 %v805
        %v1665 = vunpack.c.h.b16 %v805
        %v1666 = vunpack.c.l.b16 %v806
        %v1667 = vunpack.c.h.b16 %v806
        %v1668 = vunpack.c.l.b16 %v807
        %v1669 = vunpack.c.h.b16 %v807
        %v1670 = vunpack.c.l.b16 %v808
        %v1671 = vunpack.c.h.b16 %v808
        %v1672 = vunpack.c.l.b16 %v809
        %v1673 = vunpack.c.h.b16 %v809
        %v1674 = vunpack.c.l.b16 %v810
        %v1675 = vunpack.c.h.b16 %v810
        %v1676 = vunpack.c.l.b16 %v811
        %v1677 = vunpack.c.h.b16 %v811
        %v1678 = vunpack.c.l.b16 %v812
        %v1679 = vunpack.c.h.b16 %v812
        %v1680 = vunpack.c.l.b16 %v813
        %v1681 = vunpack.c.h.b16 %v813
        %v1682 = vunpack.c.l.b16 %v814
        %v1683 = vunpack.c.h.b16 %v814
        %v1684 = vunpack.c.l.b16 %v815
        %v1685 = vunpack.c.h.b16 %v815
        %v1686 = vunpack.c.l.b16 %v816
        %v1687 = vunpack.c.h.b16 %v816
        %v1688 = vunpack.c.l.b16 %v817
        %v1689 = vunpack.c.h.b16 %v817
        %v1690 = vunpack.c.l.b16 %v818
        %v1691 = vunpack.c.h.b16 %v818
        %v1692 = vunpack.c.l.b16 %v819
        %v1693 = vunpack.c.h.b16 %v819
        %v1694 = vunpack.c.l.b16 %v820
        %v1695 = vunpack.c.h.b16 %v820
        %v1696 = vunpack.c.l.b16 %v821
        %v1697 = vunpack.c.h.b16 %v821
        %v1698 = vunpack.c.l.b16 %v822
        %v1699 = vunpack.c.h.b16 %v822
        %v1700 = vunpack.c.l.b16 %v823
        %v1701 = vunpack.c.h.b16 %v823
        %v1702 = vunpack.c.l.b16 %v824
        %v1703 = vunpack.c.h.b16 %v824
        %v1704 = vunpack.c.l.b16 %v825
        %v1705 = vunpack.c.h.b16 %v825
        %v1706 = vunpack.c.l.b16 %v826
        %v1707 = vunpack.c.h.b16 %v826
        %v1708 = vunpack.c.l.b16 %v827
        %v1709 = vunpack.c.h.b16 %v827
        %v1710 = vunpack.c.l.b16 %v828
        %v1711 = vunpack.c.h.b16 %v828
        %v1712 = vunpack.c.l.b16 %v829
        %v1713 = vunpack.c.h.b16 %v829
        %v1714 = vunpack.c.l.b16 %v830
        %v1715 = vunpack.c.h.b16 %v830
        %v1716 = vunpack.c.l.b16 %v831
        %v1717 = vunpack.c.h.b16 %v831
        %v1718 = vunpack.c.l.b16 %v832
        %v1719 = vunpack.c.h.b16 %v832
        %v1720 = vunpack.c.l.b16 %v833
        %v1721 = vunpack.c.h.b16 %v833
        %v1722 = vunpack.c.l.b16 %v834
        %v1723 = vunpack.c.h.b16 %v834
        %v1724 = vunpack.c.l.b16 %v835
        %v1725 = vunpack.c.h.b16 %v835
        %v1726 = vunpack.c.l.b16 %v836
        %v1727 = vunpack.c.h.b16 %v836
        %v1728 = vunpack.c.l.b16 %v837
        %v1729 = vunpack.c.h.b16 %v837
        %v1730 = vunpack.c.l.b16 %v838
        %v1731 = vunpack.c.h.b16 %v838
        %v1732 = vunpack.c.l.b16 %v839
        %v1733 = vunpack.c.h.b16 %v839
        %v1734 = vunpack.c.l.b16 %v840
        %v1735 = vunpack.c.h.b16 %v840
        %v1736 = vunpack.c.l.b16 %v841
        %v1737 = vunpack.c.h.b16 %v841
        %v1738 = vunpack.c.l.b16 %v842
        %v1739 = vunpack.c.h.b16 %v842
        %v1740 = vunpack.c.l.b16 %v843
        %v1741 = vunpack.c.h.b16 %v843
        %v1742 = vunpack.c.l.b16 %v844
        %v1743 = vunpack.c.h.b16 %v844
        %v1744 = vunpack.c.l.b16 %v845
        %v1745 = vunpack.c.h.b16 %v845
        %v1746 = vunpack.c.l.b16 %v846
        %v1747 = vunpack.c.h.b16 %v846
        %v1748 = vunpack.c.l.b16 %v847
        %v1749 = vunpack.c.h.b16 %v847
        %v1750 = vunpack.c.l.b16 %v848
        %v1751 = vunpack.c.h.b16 %v848
        %v1752 = vunpack.c.l.b16 %v849
        %v1753 = vunpack.c.h.b16 %v849
        %v1754 = vunpack.c.l.b16 %v850
        %v1755 = vunpack.c.h.b16 %v850
        %v1756 = vunpack.c.l.b16 %v851
        %v1757 = vunpack.c.h.b16 %v851
        %v1758 = vunpack.c.l.b16 %v852
        %v1759 = vunpack.c.h.b16 %v852
        %v1760 = vunpack.c.l.b16 %v853
        %v1761 = vunpack.c.h.b16 %v853
        %v1762 = vunpack.c.l.b16 %v854
        %v1763 = vunpack.c.h.b16 %v854
        %v1764 = vunpack.c.l.b16 %v855
        %v1765 = vunpack.c.h.b16 %v855
        %v1766 = vunpack.c.l.b16 %v856
        %v1767 = vunpack.c.h.b16 %v856
        %v1768 = vunpack.c.l.b16 %v857
        %v1769 = vunpack.c.h.b16 %v857
        %v1770 = vunpack.c.l.b16 %v858
        %v1771 = vunpack.c.h.b16 %v858
        %v1772 = vunpack.c.l.b16 %v859
        %v1773 = vunpack.c.h.b16 %v859
        %v1774 = vunpack.c.l.b16 %v860
        %v1775 = vunpack.c.h.b16 %v860
        %v1776 = vunpack.c.l.b16 %v861
        %v1777 = vunpack.c.h.b16 %v861
        %v1778 = vunpack.c.l.b16 %v862
        %v1779 = vunpack.c.h.b16 %v862
        %v1780 = vunpack.c.l.b16 %v863
        %v1781 = vunpack.c.h.b16 %v863
        %v1782 = vunpack.c.l.b16 %v864
        %v1783 = vunpack.c.h.b16 %v864
        %v1784 = vunpack.c.l.b16 %v865
        %v1785 = vunpack.c.h.b16 %v865
        %v1786 = vunpack.c.l.b16 %v866
        %v1787 = vunpack.c.h.b16 %v866
        %v1788 = vunpack.c.l.b16 %v867
        %v1789 = vunpack.c.h.b16 %v867
        %v1790 = vunpack.c.l.b16 %v868
        %v1791 = vunpack.c.h.b16 %v868
        %v1792 = vunpack.c.l.b16 %v869
        %v1793 = vunpack.c.h.b16 %v869
        %v1794 = vunpack.c.l.b16 %v870
        %v1795 = vunpack.c.h.b16 %v870
        %v1796 = vunpack.c.l.b16 %v871
        %v1797 = vunpack.c.h.b16 %v871
        %v1798 = vunpack.c.l.b16 %v872
        %v1799 = vunpack.c.h.b16 %v872
        %v1800 = vunpack.c.l.b16 %v873
        %v1801 = vunpack.c.h.b16 %v873
        %v1802 = vunpack.c.l.b16 %v874
        %v1803 = vunpack.c.h.b16 %v874
        %v1804 = vunpack.c.l.b16 %v875
        %v1805 = vunpack.c.h.b16 %v875
        %v1806 = vunpack.c.l.b16 %v876
        %v1807 = vunpack.c.h.b16 %v876
        %v1808 = vunpack.c.l.b16 %v877
        %v1809 = vunpack.c.h.b16 %v877
        %v1810 = vunpack.c.l.b16 %v878
        %v1811 = vunpack.c.h.b16 %v878
        %v1812 = vunpack.c.l.b16 %v879
        %v1813 = vunpack.c.h.b16 %v879
        %v1814 = vunpack.c.l.b16 %v880
        %v1815 = vunpack.c.h.b16 %v880
        %v1816 = vunpack.c.l.b16 %v881
        %v1817 = vunpack.c.h.b16 %v881
        %v1818 = vunpack.c.l.b16 %v882
        %v1819 = vunpack.c.h.b16 %v882
        %v1820 = vunpack.c.l.b16 %v883
        %v1821 = vunpack.c.h.b16 %v883
        %v1822 = vunpack.c.l.b16 %v884
        %v1823 = vunpack.c.h.b16 %v884
        %v1824 = vunpack.c.l.b16 %v885
        %v1825 = vunpack.c.h.b16 %v885
        %v1826 = vunpack.c.l.b16 %v886
        %v1827 = vunpack.c.h.b16 %v886
        %v1828 = vunpack.c.l.b16 %v887
        %v1829 = vunpack.c.h.b16 %v887
        %v1830 = vunpack.c.l.b16 %v888
        %v1831 = vunpack.c.h.b16 %v888
        %v1832 = vunpack.c.l.b16 %v889
        %v1833 = vunpack.c.h.b16 %v889
        %v1834 = vpack.c.b16 %v1264, %v1258
        %v1835 = vpack.c.b16 %v1265, %v1259
        %v1836 = vpack.c.b16 %v1266, %v1260
        %v1837 = vpack.c.b16 %v1267, %v1261
        %v1838 = vpack.c.b16 %v1268, %v1262
        %v1839 = vpack.c.b16 %v1269, %v1263
        %v1840 = vpack.c.b16 %v1276, %v1270
        %v1841 = vpack.c.b16 %v1277, %v1271
        %v1842 = vpack.c.b16 %v1278, %v1272
        %v1843 = vpack.c.b16 %v1279, %v1273
        %v1844 = vpack.c.b16 %v1280, %v1274
        %v1845 = vpack.c.b16 %v1281, %v1275
        %v1846 = vpack.c.b16 %v1288, %v1282
        %v1847 = vpack.c.b16 %v1289, %v1283
        %v1848 = vpack.c.b16 %v1290, %v1284
        %v1849 = vpack.c.b16 %v1291, %v1285
        %v1850 = vpack.c.b16 %v1292, %v1286
        %v1851 = vpack.c.b16 %v1293, %v1287
        %v1852 = vpack.c.b16 %v1300, %v1294
        %v1853 = vpack.c.b16 %v1301, %v1295
        %v1854 = vpack.c.b16 %v1302, %v1296
        %v1855 = vpack.c.b16 %v1303, %v1297
        %v1856 = vpack.c.b16 %v1304, %v1298
        %v1857 = vpack.c.b16 %v1305, %v1299
        %v1858 = vpack.c.b16 %v1312, %v1306
        %v1859 = vpack.c.b16 %v1313, %v1307
        %v1860 = vpack.c.b16 %v1314, %v1308
        %v1861 = vpack.c.b16 %v1315, %v1309
        %v1862 = vpack.c.b16 %v1316, %v1310
        %v1863 = vpack.c.b16 %v1317, %v1311
        %v1864 = vpack.c.b16 %v1324, %v1318
        %v1865 = vpack.c.b16 %v1325, %v1319
        %v1866 = vpack.c.b16 %v1326, %v1320
        %v1867 = vpack.c.b16 %v1327, %v1321
        %v1868 = vpack.c.b16 %v1328, %v1322
        %v1869 = vpack.c.b16 %v1329, %v1323
        %v1870 = vpack.c.b16 %v1336, %v1330
        %v1871 = vpack.c.b16 %v1337, %v1331
        %v1872 = vpack.c.b16 %v1338, %v1332
        %v1873 = vpack.c.b16 %v1339, %v1333
        %v1874 = vpack.c.b16 %v1340, %v1334
        %v1875 = vpack.c.b16 %v1341, %v1335
        %v1876 = vpack.c.b16 %v1348, %v1342
        %v1877 = vpack.c.b16 %v1349, %v1343
        %v1878 = vpack.c.b16 %v1350, %v1344
        %v1879 = vpack.c.b16 %v1351, %v1345
        %v1880 = vpack.c.b16 %v1352, %v1346
        %v1881 = vpack.c.b16 %v1353, %v1347
        %v1882 = vpack.c.b16 %v1360, %v1354
        %v1883 = vpack.c.b16 %v1361, %v1355
        %v1884 = vpack.c.b16 %v1362, %v1356
        %v1885 = vpack.c.b16 %v1363, %v1357
        %v1886 = vpack.c.b16 %v1364, %v1358
        %v1887 = vpack.c.b16 %v1365, %v1359
        %v1888 = vpack.c.b16 %v1372, %v1366
        %v1889 = vpack.c.b16 %v1373, %v1367
        %v1890 = vpack.c.b16 %v1374, %v1368
        %v1891 = vpack.c.b16 %v1375, %v1369
        %v1892 = vpack.c.b16 %v1376, %v1370
        %v1893 = vpack.c.b16 %v1377, %v1371
        %v1894 = vpack.c.b16 %v1384, %v1378
        %v1895 = vpack.c.b16 %v1385, %v1379
        %v1896 = vpack.c.b16 %v1386, %v1380
        %v1897 = vpack.c.b16 %v1387, %v1381
        %v1898 = vpack.c.b16 %v1388, %v1382
        %v1899 = vpack.c.b16 %v1389, %v1383
        %v1900 = vpack.c.b16 %v1396, %v1390
        %v1901 = vpack.c.b16 %v1397, %v1391
        %v1902 = vpack.c.b16 %v1398, %v1392
        %v1903 = vpack.c.b16 %v1399, %v1393
        %v1904 = vpack.c.b16 %v1400, %v1394
        %v1905 = vpack.c.b16 %v1401, %v1395
        %v1906 = vpack.c.b16 %v1408, %v1402
        %v1907 = vpack.c.b16 %v1409, %v1403
        %v1908 = vpack.c.b16 %v1410, %v1404
        %v1909 = vpack.c.b16 %v1411, %v1405
        %v1910 = vpack.c.b16 %v1412, %v1406
        %v1911 = vpack.c.b16 %v1413, %v1407
        %v1912 = vpack.c.b16 %v1420, %v1414
        %v1913 = vpack.c.b16 %v1421, %v1415
        %v1914 = vpack.c.b16 %v1422, %v1416
        %v1915 = vpack.c.b16 %v1423, %v1417
        %v1916 = vpack.c.b16 %v1424, %v1418
        %v1917 = vpack.c.b16 %v1425, %v1419
        %v1918 = vpack.c.b16 %v1432, %v1426
        %v1919 = vpack.c.b16 %v1433, %v1427
        %v1920 = vpack.c.b16 %v1434, %v1428
        %v1921 = vpack.c.b16 %v1435, %v1429
        %v1922 = vpack.c.b16 %v1436, %v1430
        %v1923 = vpack.c.b16 %v1437, %v1431
        %v1924 = vpack.c.b16 %v1444, %v1438
        %v1925 = vpack.c.b16 %v1445, %v1439
        %v1926 = vpack.c.b16 %v1446, %v1440
        %v1927 = vpack.c.b16 %v1447, %v1441
        %v1928 = vpack.c.b16 %v1448, %v1442
        %v1929 = vpack.c.b16 %v1449, %v1443
        %v1930 = vpack.c.b16 %v1456, %v1450
        %v1931 = vpack.c.b16 %v1457, %v1451
        %v1932 = vpack.c.b16 %v1458, %v1452
        %v1933 = vpack.c.b16 %v1459, %v1453
        %v1934 = vpack.c.b16 %v1460, %v1454
        %v1935 = vpack.c.b16 %v1461, %v1455
        %v1936 = vpack.c.b16 %v1468, %v1462
        %v1937 = vpack.c.b16 %v1469, %v1463
        %v1938 = vpack.c.b16 %v1470, %v1464
        %v1939 = vpack.c.b16 %v1471, %v1465
        %v1940 = vpack.c.b16 %v1472, %v1466
        %v1941 = vpack.c.b16 %v1473, %v1467
        %v1942 = vpack.c.b16 %v1480, %v1474
        %v1943 = vpack.c.b16 %v1481, %v1475
        %v1944 = vpack.c.b16 %v1482, %v1476
        %v1945 = vpack.c.b16 %v1483, %v1477
        %v1946 = vpack.c.b16 %v1484, %v1478
        %v1947 = vpack.c.b16 %v1485, %v1479
        %v1948 = vpack.c.b16 %v1492, %v1486
        %v1949 = vpack.c.b16 %v1493, %v1487
        %v1950 = vpack.c.b16 %v1494, %v1488
        %v1951 = vpack.c.b16 %v1495, %v1489
        %v1952 = vpack.c.b16 %v1496, %v1490
        %v1953 = vpack.c.b16 %v1497, %v1491
        %v1954 = vpack.c.b16 %v1504, %v1498
        %v1955 = vpack.c.b16 %v1505, %v1499
        %v1956 = vpack.c.b16 %v1506, %v1500
        %v1957 = vpack.c.b16 %v1507, %v1501
        %v1958 = vpack.c.b16 %v1508, %v1502
        %v1959 = vpack.c.b16 %v1509, %v1503
        %v1960 = vpack.c.b16 %v1516, %v1510
        %v1961 = vpack.c.b16 %v1517, %v1511
        %v1962 = vpack.c.b16 %v1518, %v1512
        %v1963 = vpack.c.b16 %v1519, %v1513
        %v1964 = vpack.c.b16 %v1520, %v1514
        %v1965 = vpack.c.b16 %v1521, %v1515
        %v1966 = vpack.c.b16 %v1528, %v1522
        %v1967 = vpack.c.b16 %v1529, %v1523
        %v1968 = vpack.c.b16 %v1530, %v1524
        %v1969 = vpack.c.b16 %v1531, %v1525
        %v1970 = vpack.c.b16 %v1532, %v1526
        %v1971 = vpack.c.b16 %v1533, %v1527
        %v1972 = vpack.c.b16 %v1540, %v1534
        %v1973 = vpack.c.b16 %v1541, %v1535
        %v1974 = vpack.c.b16 %v1542, %v1536
        %v1975 = vpack.c.b16 %v1543, %v1537
        %v1976 = vpack.c.b16 %v1544, %v1538
        %v1977 = vpack.c.b16 %v1545, %v1539
        %v1978 = vpack.c.b16 %v1552, %v1546
        %v1979 = vpack.c.b16 %v1553, %v1547
        %v1980 = vpack.c.b16 %v1554, %v1548
        %v1981 = vpack.c.b16 %v1555, %v1549
        %v1982 = vpack.c.b16 %v1556, %v1550
        %v1983 = vpack.c.b16 %v1557, %v1551
        %v1984 = vpack.c.b16 %v1564, %v1558
        %v1985 = vpack.c.b16 %v1565, %v1559
        %v1986 = vpack.c.b16 %v1566, %v1560
        %v1987 = vpack.c.b16 %v1567, %v1561
        %v1988 = vpack.c.b16 %v1568, %v1562
        %v1989 = vpack.c.b16 %v1569, %v1563
        %v1990 = vpack.c.b16 %v1576, %v1570
        %v1991 = vpack.c.b16 %v1577, %v1571
        %v1992 = vpack.c.b16 %v1578, %v1572
        %v1993 = vpack.c.b16 %v1579, %v1573
        %v1994 = vpack.c.b16 %v1580, %v1574
        %v1995 = vpack.c.b16 %v1581, %v1575
        %v1996 = vpack.c.b16 %v1588, %v1582
        %v1997 = vpack.c.b16 %v1589, %v1583
        %v1998 = vpack.c.b16 %v1590, %v1584
        %v1999 = vpack.c.b16 %v1591, %v1585
        %v2000 = vpack.c.b16 %v1592, %v1586
        %v2001 = vpack.c.b16 %v1593, %v1587
        %v2002 = vpack.c.b16 %v1600, %v1594
        %v2003 = vpack.c.b16 %v1601, %v1595
        %v2004 = vpack.c.b16 %v1602, %v1596
        %v2005 = vpack.c.b16 %v1603, %v1597
        %v2006 = vpack.c.b16 %v1604, %v1598
        %v2007 = vpack.c.b16 %v1605, %v1599
        %v2008 = vpack.c.b16 %v1612, %v1606
        %v2009 = vpack.c.b16 %v1613, %v1607
        %v2010 = vpack.c.b16 %v1614, %v1608
        %v2011 = vpack.c.b16 %v1615, %v1609
        %v2012 = vpack.c.b16 %v1616, %v1610
        %v2013 = vpack.c.b16 %v1617, %v1611
        %v2014 = vpack.c.b16 %v1624, %v1618
        %v2015 = vpack.c.b16 %v1625, %v1619
        %v2016 = vpack.c.b16 %v1626, %v1620
        %v2017 = vpack.c.b16 %v1627, %v1621
        %v2018 = vpack.c.b16 %v1628, %v1622
        %v2019 = vpack.c.b16 %v1629, %v1623
        %v2020 = vpack.c.b16 %v1636, %v1630
        %v2021 = vpack.c.b16 %v1637, %v1631
        %v2022 = vpack.c.b16 %v1638, %v1632
        %v2023 = vpack.c.b16 %v1639, %v1633
        %v2024 = vpack.c.b16 %v1640, %v1634
        %v2025 = vpack.c.b16 %v1641, %v1635
        %v2026 = vpack.c.b16 %v1648, %v1642
        %v2027 = vpack.c.b16 %v1649, %v1643
        %v2028 = vpack.c.b16 %v1650, %v1644
        %v2029 = vpack.c.b16 %v1651, %v1645
        %v2030 = vpack.c.b16 %v1652, %v1646
        %v2031 = vpack.c.b16 %v1653, %v1647
        %v2032 = vpack.c.b16 %v1660, %v1654
        %v2033 = vpack.c.b16 %v1661, %v1655
        %v2034 = vpack.c.b16 %v1662, %v1656
        %v2035 = vpack.c.b16 %v1663, %v1657
        %v2036 = vpack.c.b16 %v1664, %v1658
        %v2037 = vpack.c.b16 %v1665, %v1659
        %v2038 = vpack.c.b16 %v1672, %v1666
        %v2039 = vpack.c.b16 %v1673, %v1667
        %v2040 = vpack.c.b16 %v1674, %v1668
        %v2041 = vpack.c.b16 %v1675, %v1669
        %v2042 = vpack.c.b16 %v1676, %v1670
        %v2043 = vpack.c.b16 %v1677, %v1671
        %v2044 = vpack.c.b16 %v1684, %v1678
        %v2045 = vpack.c.b16 %v1685, %v1679
        %v2046 = vpack.c.b16 %v1686, %v1680
        %v2047 = vpack.c.b16 %v1687, %v1681
        %v2048 = vpack.c.b16 %v1688, %v1682
        %v2049 = vpack.c.b16 %v1689, %v1683
        %v2050 = vpack.c.b16 %v1696, %v1690
        %v2051 = vpack.c.b16 %v1697, %v1691
        %v2052 = vpack.c.b16 %v1698, %v1692
        %v2053 = vpack.c.b16 %v1699, %v1693
        %v2054 = vpack.c.b16 %v1700, %v1694
        %v2055 = vpack.c.b16 %v1701, %v1695
        %v2056 = vpack.c.b16 %v1708, %v1702
        %v2057 = vpack.c.b16 %v1709, %v1703
        %v2058 = vpack.c.b16 %v1710, %v1704
        %v2059 = vpack.c.b16 %v1711, %v1705
        %v2060 = vpack.c.b16 %v1712, %v1706
        %v2061 = vpack.c.b16 %v1713, %v1707
        %v2062 = vpack.c.b16 %v1720, %v1714
        %v2063 = vpack.c.b16 %v1721, %v1715
        %v2064 = vpack.c.b16 %v1722, %v1716
        %v2065 = vpack.c.b16 %v1723, %v1717
        %v2066 = vpack.c.b16 %v1724, %v1718
        %v2067 = vpack.c.b16 %v1725, %v1719
        %v2068 = vpack.c.b16 %v1732, %v1726
        %v2069 = vpack.c.b16 %v1733, %v1727
        %v2070 = vpack.c.b16 %v1734, %v1728
        %v2071 = vpack.c.b16 %v1735, %v1729
        %v2072 = vpack.c.b16 %v1736, %v1730
        %v2073 = vpack.c.b16 %v1737, %v1731
        %v2074 = vpack.c.b16 %v1744, %v1738
        %v2075 = vpack.c.b16 %v1745, %v1739
        %v2076 = vpack.c.b16 %v1746, %v1740
        %v2077 = vpack.c.b16 %v1747, %v1741
        %v2078 = vpack.c.b16 %v1748, %v1742
        %v2079 = vpack.c.b16 %v1749, %v1743
        %v2080 = vpack.c.b16 %v1756, %v1750
        %v2081 = vpack.c.b16 %v1757, %v1751
        %v2082 = vpack.c.b16 %v1758, %v1752
        %v2083 = vpack.c.b16 %v1759, %v1753
        %v2084 = vpack.c.b16 %v1760, %v1754
        %v2085 = vpack.c.b16 %v1761, %v1755
        %v2086 = vpack.c.b16 %v1768, %v1762
        %v2087 = vpack.c.b16 %v1769, %v1763
        %v2088 = vpack.c.b16 %v1770, %v1764
        %v2089 = vpack.c.b16 %v1771, %v1765
        %v2090 = vpack.c.b16 %v1772, %v1766
        %v2091 = vpack.c.b16 %v1773, %v1767
        %v2092 = vpack.c.b16 %v1780, %v1774
        %v2093 = vpack.c.b16 %v1781, %v1775
        %v2094 = vpack.c.b16 %v1782, %v1776
        %v2095 = vpack.c.b16 %v1783, %v1777
        %v2096 = vpack.c.b16 %v1784, %v1778
        %v2097 = vpack.c.b16 %v1785, %v1779
        %v2098 = vpack.c.b16 %v1792, %v1786
        %v2099 = vpack.c.b16 %v1793, %v1787
        %v2100 = vpack.c.b16 %v1794, %v1788
        %v2101 = vpack.c.b16 %v1795, %v1789
        %v2102 = vpack.c.b16 %v1796, %v1790
        %v2103 = vpack.c.b16 %v1797, %v1791
        %v2104 = vpack.c.b16 %v1804, %v1798
        %v2105 = vpack.c.b16 %v1805, %v1799
        %v2106 = vpack.c.b16 %v1806, %v1800
        %v2107 = vpack.c.b16 %v1807, %v1801
        %v2108 = vpack.c.b16 %v1808, %v1802
        %v2109 = vpack.c.b16 %v1809, %v1803
        %v2110 = vpack.c.b16 %v1816, %v1810
        %v2111 = vpack.c.b16 %v1817, %v1811
        %v2112 = vpack.c.b16 %v1818, %v1812
        %v2113 = vpack.c.b16 %v1819, %v1813
        %v2114 = vpack.c.b16 %v1820, %v1814
        %v2115 = vpack.c.b16 %v1821, %v1815
        %v2116 = vpack.c.b16 %v1828, %v1822
        %v2117 = vpack.c.b16 %v1829, %v1823
        %v2118 = vpack.c.b16 %v1830, %v1824
        %v2119 = vpack.c.b16 %v1831, %v1825
        %v2120 = vpack.c.b16 %v1832, %v1826
        %v2121 = vpack.c.b16 %v1833, %v1827
        %2410 = vmatprep.subr.bf16.mxu0 %v1835
        %2411 = vmatpush1.bf16.msra.mxu0 %v1834
        %2412 = vmatprep.subr.bf16.mxu0 %v1841
        %2413 = vmatpush1.bf16.msra.mxu0 %v1840
        %2414 = vmatprep.subr.bf16.mxu0 %v1847
        %2415 = vmatpush1.bf16.msra.mxu0 %v1846
        %2416 = vmatprep.subr.bf16.mxu0 %v1853
        %2417 = vmatpush1.bf16.msra.mxu0 %v1852
        %2418 = vmatprep.subr.bf16.mxu0 %v1859
        %2419 = vmatpush1.bf16.msra.mxu0 %v1858
        %2420 = vmatprep.subr.bf16.mxu0 %v1865
        %2421 = vmatpush1.bf16.msra.mxu0 %v1864
        %2422 = vmatprep.subr.bf16.mxu0 %v1871
        %2423 = vmatpush1.bf16.msra.mxu0 %v1870
        %2424 = vmatprep.subr.bf16.mxu0 %v1877
        %2425 = vmatpush1.bf16.msra.mxu0 %v1876
        %2426 = vmatprep.subr.bf16.mxu0 %v1883
        %2427 = vmatpush1.bf16.msra.mxu0 %v1882
        %2428 = vmatprep.subr.bf16.mxu0 %v1889
        %2429 = vmatpush1.bf16.msra.mxu0 %v1888
        %2430 = vmatprep.subr.bf16.mxu0 %v1895
        %2431 = vmatpush1.bf16.msra.mxu0 %v1894
        %2432 = vmatprep.subr.bf16.mxu0 %v1901
        %2433 = vmatpush1.bf16.msra.mxu0 %v1900
        %2434 = vmatprep.subr.bf16.mxu0 %v1907
        %2435 = vmatpush1.bf16.msra.mxu0 %v1906
        %2436 = vmatprep.subr.bf16.mxu0 %v1913
        %2437 = vmatpush1.bf16.msra.mxu0 %v1912
        %2438 = vmatprep.subr.bf16.mxu0 %v1919
        %2439 = vmatpush1.bf16.msra.mxu0 %v1918
        %2440 = vmatprep.subr.bf16.mxu0 %v1925
        %2441 = vmatpush1.bf16.msra.mxu0 %v1924
        %2442 = vmatprep.mubr.bf16.mxu0 %v891
        %2443 = vmatmul.mubr.bf16.gmra.mrb[0].mxu0 %v890
        %v2444 = vpop.f32.mrb[0].mxu0
        %v2445 = vadd.f32 %v943, %v2444
        %v2446 = vpop.f32.mrb[0].mxu0
        %v2447 = vadd.f32 %v947, %v2446
        %v2448 = vpop.f32.mrb[0].mxu0
        %v2449 = vadd.f32 %v943, %v2448
        %v2450 = vpop.f32.mrb[0].mxu0
        %v2451 = vadd.f32 %v947, %v2450
        %2452 = vmatprep.mubr.bf16.mxu0 %v897
        %2453 = vmatmul.mubr.bf16.gmra.mrb[0].mxu0 %v896
        %v2454 = vpop.f32.mrb[0].mxu0
        %v2455 = vadd.f32 %v943, %v2454
        %v2456 = vpop.f32.mrb[0].mxu0
        %v2457 = vadd.f32 %v947, %v2456
        %v2458 = vpop.f32.mrb[0].mxu0
        %v2459 = vadd.f32 %v943, %v2458
        %v2460 = vpop.f32.mrb[0].mxu0
        %v2461 = vadd.f32 %v947, %v2460
        %2462 = vmatprep.mubr.bf16.mxu0 %v903
        %2463 = vmatmul.mubr.bf16.gmra.mrb[0].mxu0 %v902
        %v2464 = vpop.f32.mrb[0].mxu0
        %v2465 = vadd.f32 %v943, %v2464
        %v2466 = vpop.f32.mrb[0].mxu0
        %v2467 = vadd.f32 %v947, %v2466
        %v2468 = vpop.f32.mrb[0].mxu0
        %v2469 = vadd.f32 %v943, %v2468
        %v2470 = vpop.f32.mrb[0].mxu0
        %v2471 = vadd.f32 %v947, %v2470
        %2472 = vmatprep.mubr.bf16.mxu0 %v909
        %2473 = vmatmul.mubr.bf16.gmra.mrb[0].mxu0 %v908
        %v2474 = vpop.f32.mrb[0].mxu0
        %v2475 = vadd.f32 %v943, %v2474
        %v2476 = vpop.f32.mrb[0].mxu0
        %v2477 = vadd.f32 %v947, %v2476
        %v2478 = vpop.f32.mrb[0].mxu0
        %v2479 = vadd.f32 %v943, %v2478
        %v2480 = vpop.f32.mrb[0].mxu0
        %v2481 = vadd.f32 %v947, %v2480
        %2482 = vmatprep.mubr.bf16.mxu0 %v915
        %2483 = vmatmul.mubr.bf16.gmra.mrb[0].mxu0 %v914
        %v2484 = vpop.f32.mrb[0].mxu0
        %v2485 = vadd.f32 %v943, %v2484
        %v2486 = vpop.f32.mrb[0].mxu0
        %v2487 = vadd.f32 %v947, %v2486
        %v2488 = vpop.f32.mrb[0].mxu0
        %v2489 = vadd.f32 %v943, %v2488
        %v2490 = vpop.f32.mrb[0].mxu0
        %v2491 = vadd.f32 %v947, %v2490
        %2492 = vmatprep.mubr.bf16.mxu0 %v921
        %2493 = vmatmul.mubr.bf16.gmra.mrb[0].mxu0 %v920
        %v2494 = vpop.f32.mrb[0].mxu0
        %v2495 = vadd.f32 %v943, %v2494
        %v2496 = vpop.f32.mrb[0].mxu0
        %v2497 = vadd.f32 %v947, %v2496
        %v2498 = vpop.f32.mrb[0].mxu0
        %v2499 = vadd.f32 %v943, %v2498
        %v2500 = vpop.f32.mrb[0].mxu0
        %v2501 = vadd.f32 %v947, %v2500
        %2502 = vmatprep.mubr.bf16.mxu0 %v927
        %2503 = vmatmul.mubr.bf16.gmra.mrb[0].mxu0 %v926
        %v2504 = vpop.f32.mrb[0].mxu0
        %v2505 = vadd.f32 %v943, %v2504
        %v2506 = vpop.f32.mrb[0].mxu0
        %v2507 = vadd.f32 %v947, %v2506
        %v2508 = vpop.f32.mrb[0].mxu0
        %v2509 = vadd.f32 %v943, %v2508
        %v2510 = vpop.f32.mrb[0].mxu0
        %v2511 = vadd.f32 %v947, %v2510
        %2512 = vmatprep.mubr.bf16.mxu0 %v933
        %2513 = vmatmul.mubr.bf16.gmra.mrb[0].mxu0 %v932
        %v2514 = vpop.f32.mrb[0].mxu0
        %v2515 = vadd.f32 %v943, %v2514
        %v2516 = vpop.f32.mrb[0].mxu0
        %v2517 = vadd.f32 %v947, %v2516
        %v2518 = vpop.f32.mrb[0].mxu0
        %v2519 = vadd.f32 %v943, %v2518
        %v2520 = vpop.f32.mrb[0].mxu0
        %v2521 = vadd.f32 %v947, %v2520
        %2522 = vdwg.mxu0
        %2523 = vmatprep.subr.bf16.mxu0 %v1931
        %2524 = vmatpush1.bf16.msra.mxu0 %v1930
        %2525 = vmatprep.subr.bf16.mxu0 %v1937
        %2526 = vmatpush1.bf16.msra.mxu0 %v1936
        %2527 = vmatprep.subr.bf16.mxu0 %v1943
        %2528 = vmatpush1.bf16.msra.mxu0 %v1942
        %2529 = vmatprep.subr.bf16.mxu0 %v1949
        %2530 = vmatpush1.bf16.msra.mxu0 %v1948
        %2531 = vmatprep.subr.bf16.mxu0 %v1955
        %2532 = vmatpush1.bf16.msra.mxu0 %v1954
        %2533 = vmatprep.subr.bf16.mxu0 %v1961
        %2534 = vmatpush1.bf16.msra.mxu0 %v1960
        %2535 = vmatprep.subr.bf16.mxu0 %v1967
        %2536 = vmatpush1.bf16.msra.mxu0 %v1966
        %2537 = vmatprep.subr.bf16.mxu0 %v1973
        %2538 = vmatpush1.bf16.msra.mxu0 %v1972
        %2539 = vmatprep.subr.bf16.mxu0 %v1979
        %2540 = vmatpush1.bf16.msra.mxu0 %v1978
        %2541 = vmatprep.subr.bf16.mxu0 %v1985
        %2542 = vmatpush1.bf16.msra.mxu0 %v1984
        %2543 = vmatprep.subr.bf16.mxu0 %v1991
        %2544 = vmatpush1.bf16.msra.mxu0 %v1990
        %2545 = vmatprep.subr.bf16.mxu0 %v1997
        %2546 = vmatpush1.bf16.msra.mxu0 %v1996
        %2547 = vmatprep.subr.bf16.mxu0 %v2003
        %2548 = vmatpush1.bf16.msra.mxu0 %v2002
        %2549 = vmatprep.subr.bf16.mxu0 %v2009
        %2550 = vmatpush1.bf16.msra.mxu0 %v2008
        %2551 = vmatprep.subr.bf16.mxu0 %v2015
        %2552 = vmatpush1.bf16.msra.mxu0 %v2014
        %2553 = vmatprep.subr.bf16.mxu0 %v2021
        %2554 = vmatpush1.bf16.msra.mxu0 %v2020
        %2555 = vmatprep.mubr.bf16.mxu0 %v893
        %2556 = vmatmul.mubr.bf16.gmra.mrb[0].mxu0 %v892
        %v2557 = vpop.f32.mrb[0].mxu0
        %v2558 = vadd.f32 %v2445, %v2557
        %v2559 = vpop.f32.mrb[0].mxu0
        %v2560 = vadd.f32 %v2447, %v2559
        %v2561 = vpop.f32.mrb[0].mxu0
        %v2562 = vadd.f32 %v2449, %v2561
        %v2563 = vpop.f32.mrb[0].mxu0
        %v2564 = vadd.f32 %v2451, %v2563
        %2565 = vmatprep.mubr.bf16.mxu0 %v899
        %2566 = vmatmul.mubr.bf16.gmra.mrb[0].mxu0 %v898
        %v2567 = vpop.f32.mrb[0].mxu0
        %v2568 = vadd.f32 %v2455, %v2567
        %v2569 = vpop.f32.mrb[0].mxu0
        %v2570 = vadd.f32 %v2457, %v2569
        %v2571 = vpop.f32.mrb[0].mxu0
        %v2572 = vadd.f32 %v2459, %v2571
        %v2573 = vpop.f32.mrb[0].mxu0
        %v2574 = vadd.f32 %v2461, %v2573
        %2575 = vmatprep.mubr.bf16.mxu0 %v905
        %2576 = vmatmul.mubr.bf16.gmra.mrb[0].mxu0 %v904
        %v2577 = vpop.f32.mrb[0].mxu0
        %v2578 = vadd.f32 %v2465, %v2577
        %v2579 = vpop.f32.mrb[0].mxu0
        %v2580 = vadd.f32 %v2467, %v2579
        %v2581 = vpop.f32.mrb[0].mxu0
        %v2582 = vadd.f32 %v2469, %v2581
        %v2583 = vpop.f32.mrb[0].mxu0
        %v2584 = vadd.f32 %v2471, %v2583
        %2585 = vmatprep.mubr.bf16.mxu0 %v911
        %2586 = vmatmul.mubr.bf16.gmra.mrb[0].mxu0 %v910
        %v2587 = vpop.f32.mrb[0].mxu0
        %v2588 = vadd.f32 %v2475, %v2587
        %v2589 = vpop.f32.mrb[0].mxu0
        %v2590 = vadd.f32 %v2477, %v2589
        %v2591 = vpop.f32.mrb[0].mxu0
        %v2592 = vadd.f32 %v2479, %v2591
        %v2593 = vpop.f32.mrb[0].mxu0
        %v2594 = vadd.f32 %v2481, %v2593
        %2595 = vmatprep.mubr.bf16.mxu0 %v917
        %2596 = vmatmul.mubr.bf16.gmra.mrb[0].mxu0 %v916
        %v2597 = vpop.f32.mrb[0].mxu0
        %v2598 = vadd.f32 %v2485, %v2597
        %v2599 = vpop.f32.mrb[0].mxu0
        %v2600 = vadd.f32 %v2487, %v2599
        %v2601 = vpop.f32.mrb[0].mxu0
        %v2602 = vadd.f32 %v2489, %v2601
        %v2603 = vpop.f32.mrb[0].mxu0
        %v2604 = vadd.f32 %v2491, %v2603
        %2605 = vmatprep.mubr.bf16.mxu0 %v923
        %2606 = vmatmul.mubr.bf16.gmra.mrb[0].mxu0 %v922
        %v2607 = vpop.f32.mrb[0].mxu0
        %v2608 = vadd.f32 %v2495, %v2607
        %v2609 = vpop.f32.mrb[0].mxu0
        %v2610 = vadd.f32 %v2497, %v2609
        %v2611 = vpop.f32.mrb[0].mxu0
        %v2612 = vadd.f32 %v2499, %v2611
        %v2613 = vpop.f32.mrb[0].mxu0
        %v2614 = vadd.f32 %v2501, %v2613
        %2615 = vmatprep.mubr.bf16.mxu0 %v929
        %2616 = vmatmul.mubr.bf16.gmra.mrb[0].mxu0 %v928
        %v2617 = vpop.f32.mrb[0].mxu0
        %v2618 = vadd.f32 %v2505, %v2617
        %v2619 = vpop.f32.mrb[0].mxu0
        %v2620 = vadd.f32 %v2507, %v2619
        %v2621 = vpop.f32.mrb[0].mxu0
        %v2622 = vadd.f32 %v2509, %v2621
        %v2623 = vpop.f32.mrb[0].mxu0
        %v2624 = vadd.f32 %v2511, %v2623
        %2625 = vmatprep.mubr.bf16.mxu0 %v935
        %2626 = vmatmul.mubr.bf16.gmra.mrb[0].mxu0 %v934
        %v2627 = vpop.f32.mrb[0].mxu0
        %v2628 = vadd.f32 %v2515, %v2627
        %v2629 = vpop.f32.mrb[0].mxu0
        %v2630 = vadd.f32 %v2517, %v2629
        %v2631 = vpop.f32.mrb[0].mxu0
        %v2632 = vadd.f32 %v2519, %v2631
        %v2633 = vpop.f32.mrb[0].mxu0
        %v2634 = vadd.f32 %v2521, %v2633
        %2635 = vdwg.mxu0
        %2636 = vmatprep.subr.bf16.mxu0 %v2027
        %2637 = vmatpush1.bf16.msra.mxu0 %v2026
        %2638 = vmatprep.subr.bf16.mxu0 %v2033
        %2639 = vmatpush1.bf16.msra.mxu0 %v2032
        %2640 = vmatprep.subr.bf16.mxu0 %v2039
        %2641 = vmatpush1.bf16.msra.mxu0 %v2038
        %2642 = vmatprep.subr.bf16.mxu0 %v2045
        %2643 = vmatpush1.bf16.msra.mxu0 %v2044
        %2644 = vmatprep.subr.bf16.mxu0 %v2051
        %2645 = vmatpush1.bf16.msra.mxu0 %v2050
        %2646 = vmatprep.subr.bf16.mxu0 %v2057
        %2647 = vmatpush1.bf16.msra.mxu0 %v2056
        %2648 = vmatprep.subr.bf16.mxu0 %v2063
        %2649 = vmatpush1.bf16.msra.mxu0 %v2062
        %2650 = vmatprep.subr.bf16.mxu0 %v2069
        %2651 = vmatpush1.bf16.msra.mxu0 %v2068
        %2652 = vmatprep.subr.bf16.mxu0 %v2075
        %2653 = vmatpush1.bf16.msra.mxu0 %v2074
        %2654 = vmatprep.subr.bf16.mxu0 %v2081
        %2655 = vmatpush1.bf16.msra.mxu0 %v2080
        %2656 = vmatprep.subr.bf16.mxu0 %v2087
        %2657 = vmatpush1.bf16.msra.mxu0 %v2086
        %2658 = vmatprep.subr.bf16.mxu0 %v2093
        %2659 = vmatpush1.bf16.msra.mxu0 %v2092
        %2660 = vmatprep.subr.bf16.mxu0 %v2099
        %2661 = vmatpush1.bf16.msra.mxu0 %v2098
        %2662 = vmatprep.subr.bf16.mxu0 %v2105
        %2663 = vmatpush1.bf16.msra.mxu0 %v2104
        %2664 = vmatprep.subr.bf16.mxu0 %v2111
        %2665 = vmatpush1.bf16.msra.mxu0 %v2110
        %2666 = vmatprep.subr.bf16.mxu0 %v2117
        %2667 = vmatpush1.bf16.msra.mxu0 %v2116
        %2668 = vmatprep.mubr.bf16.mxu0 %v895
        %2669 = vmatmul.mubr.bf16.gmra.mrb[0].mxu0 %v894
        %v2670 = vpop.f32.mrb[0].mxu0
        %v2671 = vadd.f32 %v2558, %v2670
        %v2672 = vpop.f32.mrb[0].mxu0
        %v2673 = vadd.f32 %v2560, %v2672
        %v2674 = vpop.f32.mrb[0].mxu0
        %v2675 = vadd.f32 %v2562, %v2674
        %v2676 = vpop.f32.mrb[0].mxu0
        %v2677 = vadd.f32 %v2564, %v2676
        %2678 = vmatprep.mubr.bf16.mxu0 %v901
        %2679 = vmatmul.mubr.bf16.gmra.mrb[0].mxu0 %v900
        %v2680 = vpop.f32.mrb[0].mxu0
        %v2681 = vadd.f32 %v2568, %v2680
        %v2682 = vpop.f32.mrb[0].mxu0
        %v2683 = vadd.f32 %v2570, %v2682
        %v2684 = vpop.f32.mrb[0].mxu0
        %v2685 = vadd.f32 %v2572, %v2684
        %v2686 = vpop.f32.mrb[0].mxu0
        %v2687 = vadd.f32 %v2574, %v2686
        %2688 = vmatprep.mubr.bf16.mxu0 %v907
        %2689 = vmatmul.mubr.bf16.gmra.mrb[0].mxu0 %v906
        %v2690 = vpop.f32.mrb[0].mxu0
        %v2691 = vadd.f32 %v2578, %v2690
        %v2692 = vpop.f32.mrb[0].mxu0
        %v2693 = vadd.f32 %v2580, %v2692
        %v2694 = vpop.f32.mrb[0].mxu0
        %v2695 = vadd.f32 %v2582, %v2694
        %v2696 = vpop.f32.mrb[0].mxu0
        %v2697 = vadd.f32 %v2584, %v2696
        %2698 = vmatprep.mubr.bf16.mxu0 %v913
        %2699 = vmatmul.mubr.bf16.gmra.mrb[0].mxu0 %v912
        %v2700 = vpop.f32.mrb[0].mxu0
        %v2701 = vadd.f32 %v2588, %v2700
        %v2702 = vpop.f32.mrb[0].mxu0
        %v2703 = vadd.f32 %v2590, %v2702
        %v2704 = vpop.f32.mrb[0].mxu0
        %v2705 = vadd.f32 %v2592, %v2704
        %v2706 = vpop.f32.mrb[0].mxu0
        %v2707 = vadd.f32 %v2594, %v2706
        %2708 = vmatprep.mubr.bf16.mxu0 %v919
        %2709 = vmatmul.mubr.bf16.gmra.mrb[0].mxu0 %v918
        %v2710 = vpop.f32.mrb[0].mxu0
        %v2711 = vadd.f32 %v2598, %v2710
        %v2712 = vpop.f32.mrb[0].mxu0
        %v2713 = vadd.f32 %v2600, %v2712
        %v2714 = vpop.f32.mrb[0].mxu0
        %v2715 = vadd.f32 %v2602, %v2714
        %v2716 = vpop.f32.mrb[0].mxu0
        %v2717 = vadd.f32 %v2604, %v2716
        %2718 = vmatprep.mubr.bf16.mxu0 %v925
        %2719 = vmatmul.mubr.bf16.gmra.mrb[0].mxu0 %v924
        %v2720 = vpop.f32.mrb[0].mxu0
        %v2721 = vadd.f32 %v2608, %v2720
        %v2722 = vpop.f32.mrb[0].mxu0
        %v2723 = vadd.f32 %v2610, %v2722
        %v2724 = vpop.f32.mrb[0].mxu0
        %v2725 = vadd.f32 %v2612, %v2724
        %v2726 = vpop.f32.mrb[0].mxu0
        %v2727 = vadd.f32 %v2614, %v2726
        %2728 = vmatprep.mubr.bf16.mxu0 %v931
        %2729 = vmatmul.mubr.bf16.gmra.mrb[0].mxu0 %v930
        %v2730 = vpop.f32.mrb[0].mxu0
        %v2731 = vadd.f32 %v2618, %v2730
        %v2732 = vpop.f32.mrb[0].mxu0
        %v2733 = vadd.f32 %v2620, %v2732
        %v2734 = vpop.f32.mrb[0].mxu0
        %v2735 = vadd.f32 %v2622, %v2734
        %v2736 = vpop.f32.mrb[0].mxu0
        %v2737 = vadd.f32 %v2624, %v2736
        %2738 = vmatprep.mubr.bf16.mxu0 %v937
        %2739 = vmatmul.mubr.bf16.gmra.mrb[0].mxu0 %v936
        %v2740 = vpop.f32.mrb[0].mxu0
        %v2741 = vadd.f32 %v2628, %v2740
        %v2742 = vpop.f32.mrb[0].mxu0
        %v2743 = vadd.f32 %v2630, %v2742
        %v2744 = vpop.f32.mrb[0].mxu0
        %v2745 = vadd.f32 %v2632, %v2744
        %v2746 = vpop.f32.mrb[0].mxu0
        %v2747 = vadd.f32 %v2634, %v2746
        %2748 = vdwg.mxu0
        %2749 = vmatprep.subr.bf16.mxu0 %v1837
        %2750 = vmatpush1.bf16.msra.mxu0 %v1836
        %2751 = vmatprep.subr.bf16.mxu0 %v1843
        %2752 = vmatpush1.bf16.msra.mxu0 %v1842
        %2753 = vmatprep.subr.bf16.mxu0 %v1849
        %2754 = vmatpush1.bf16.msra.mxu0 %v1848
        %2755 = vmatprep.subr.bf16.mxu0 %v1855
        %2756 = vmatpush1.bf16.msra.mxu0 %v1854
        %2757 = vmatprep.subr.bf16.mxu0 %v1861
        %2758 = vmatpush1.bf16.msra.mxu0 %v1860
        %2759 = vmatprep.subr.bf16.mxu0 %v1867
        %2760 = vmatpush1.bf16.msra.mxu0 %v1866
        %2761 = vmatprep.subr.bf16.mxu0 %v1873
        %2762 = vmatpush1.bf16.msra.mxu0 %v1872
        %2763 = vmatprep.subr.bf16.mxu0 %v1879
        %2764 = vmatpush1.bf16.msra.mxu0 %v1878
        %2765 = vmatprep.subr.bf16.mxu0 %v1885
        %2766 = vmatpush1.bf16.msra.mxu0 %v1884
        %2767 = vmatprep.subr.bf16.mxu0 %v1891
        %2768 = vmatpush1.bf16.msra.mxu0 %v1890
        %2769 = vmatprep.subr.bf16.mxu0 %v1897
        %2770 = vmatpush1.bf16.msra.mxu0 %v1896
        %2771 = vmatprep.subr.bf16.mxu0 %v1903
        %2772 = vmatpush1.bf16.msra.mxu0 %v1902
        %2773 = vmatprep.subr.bf16.mxu0 %v1909
        %2774 = vmatpush1.bf16.msra.mxu0 %v1908
        %2775 = vmatprep.subr.bf16.mxu0 %v1915
        %2776 = vmatpush1.bf16.msra.mxu0 %v1914
        %2777 = vmatprep.subr.bf16.mxu0 %v1921
        %2778 = vmatpush1.bf16.msra.mxu0 %v1920
        %2779 = vmatprep.subr.bf16.mxu0 %v1927
        %2780 = vmatpush1.bf16.msra.mxu0 %v1926
        %2781 = vmatprep.mubr.bf16.mxu0 %v891
        %2782 = vmatmul.mubr.bf16.gmra.mrb[0].mxu0 %v890
        %v2783 = vpop.f32.mrb[0].mxu0
        %v2784 = vadd.f32 %v951, %v2783
        %v2785 = vpop.f32.mrb[0].mxu0
        %v2786 = vadd.f32 %v955, %v2785
        %v2787 = vpop.f32.mrb[0].mxu0
        %v2788 = vadd.f32 %v951, %v2787
        %v2789 = vpop.f32.mrb[0].mxu0
        %v2790 = vadd.f32 %v955, %v2789
        %2791 = vmatprep.mubr.bf16.mxu0 %v897
        %2792 = vmatmul.mubr.bf16.gmra.mrb[0].mxu0 %v896
        %v2793 = vpop.f32.mrb[0].mxu0
        %v2794 = vadd.f32 %v951, %v2793
        %v2795 = vpop.f32.mrb[0].mxu0
        %v2796 = vadd.f32 %v955, %v2795
        %v2797 = vpop.f32.mrb[0].mxu0
        %v2798 = vadd.f32 %v951, %v2797
        %v2799 = vpop.f32.mrb[0].mxu0
        %v2800 = vadd.f32 %v955, %v2799
        %2801 = vmatprep.mubr.bf16.mxu0 %v903
        %2802 = vmatmul.mubr.bf16.gmra.mrb[0].mxu0 %v902
        %v2803 = vpop.f32.mrb[0].mxu0
        %v2804 = vadd.f32 %v951, %v2803
        %v2805 = vpop.f32.mrb[0].mxu0
        %v2806 = vadd.f32 %v955, %v2805
        %v2807 = vpop.f32.mrb[0].mxu0
        %v2808 = vadd.f32 %v951, %v2807
        %v2809 = vpop.f32.mrb[0].mxu0
        %v2810 = vadd.f32 %v955, %v2809
        %2811 = vmatprep.mubr.bf16.mxu0 %v909
        %2812 = vmatmul.mubr.bf16.gmra.mrb[0].mxu0 %v908
        %v2813 = vpop.f32.mrb[0].mxu0
        %v2814 = vadd.f32 %v951, %v2813
        %v2815 = vpop.f32.mrb[0].mxu0
        %v2816 = vadd.f32 %v955, %v2815
        %v2817 = vpop.f32.mrb[0].mxu0
        %v2818 = vadd.f32 %v951, %v2817
        %v2819 = vpop.f32.mrb[0].mxu0
        %v2820 = vadd.f32 %v955, %v2819
        %2821 = vmatprep.mubr.bf16.mxu0 %v915
        %2822 = vmatmul.mubr.bf16.gmra.mrb[0].mxu0 %v914
        %v2823 = vpop.f32.mrb[0].mxu0
        %v2824 = vadd.f32 %v951, %v2823
        %v2825 = vpop.f32.mrb[0].mxu0
        %v2826 = vadd.f32 %v955, %v2825
        %v2827 = vpop.f32.mrb[0].mxu0
        %v2828 = vadd.f32 %v951, %v2827
        %v2829 = vpop.f32.mrb[0].mxu0
        %v2830 = vadd.f32 %v955, %v2829
        %2831 = vmatprep.mubr.bf16.mxu0 %v921
        %2832 = vmatmul.mubr.bf16.gmra.mrb[0].mxu0 %v920
        %v2833 = vpop.f32.mrb[0].mxu0
        %v2834 = vadd.f32 %v951, %v2833
        %v2835 = vpop.f32.mrb[0].mxu0
        %v2836 = vadd.f32 %v955, %v2835
        %v2837 = vpop.f32.mrb[0].mxu0
        %v2838 = vadd.f32 %v951, %v2837
        %v2839 = vpop.f32.mrb[0].mxu0
        %v2840 = vadd.f32 %v955, %v2839
        %2841 = vmatprep.mubr.bf16.mxu0 %v927
        %2842 = vmatmul.mubr.bf16.gmra.mrb[0].mxu0 %v926
        %v2843 = vpop.f32.mrb[0].mxu0
        %v2844 = vadd.f32 %v951, %v2843
        %v2845 = vpop.f32.mrb[0].mxu0
        %v2846 = vadd.f32 %v955, %v2845
        %v2847 = vpop.f32.mrb[0].mxu0
        %v2848 = vadd.f32 %v951, %v2847
        %v2849 = vpop.f32.mrb[0].mxu0
        %v2850 = vadd.f32 %v955, %v2849
        %2851 = vmatprep.mubr.bf16.mxu0 %v933
        %2852 = vmatmul.mubr.bf16.gmra.mrb[0].mxu0 %v932
        %v2853 = vpop.f32.mrb[0].mxu0
        %v2854 = vadd.f32 %v951, %v2853
        %v2855 = vpop.f32.mrb[0].mxu0
        %v2856 = vadd.f32 %v955, %v2855
        %v2857 = vpop.f32.mrb[0].mxu0
        %v2858 = vadd.f32 %v951, %v2857
        %v2859 = vpop.f32.mrb[0].mxu0
        %v2860 = vadd.f32 %v955, %v2859
        %2861 = vdwg.mxu0
        %2862 = vmatprep.subr.bf16.mxu0 %v1933
        %2863 = vmatpush1.bf16.msra.mxu0 %v1932
        %2864 = vmatprep.subr.bf16.mxu0 %v1939
        %2865 = vmatpush1.bf16.msra.mxu0 %v1938
        %2866 = vmatprep.subr.bf16.mxu0 %v1945
        %2867 = vmatpush1.bf16.msra.mxu0 %v1944
        %2868 = vmatprep.subr.bf16.mxu0 %v1951
        %2869 = vmatpush1.bf16.msra.mxu0 %v1950
        %2870 = vmatprep.subr.bf16.mxu0 %v1957
        %2871 = vmatpush1.bf16.msra.mxu0 %v1956
        %2872 = vmatprep.subr.bf16.mxu0 %v1963
        %2873 = vmatpush1.bf16.msra.mxu0 %v1962
        %2874 = vmatprep.subr.bf16.mxu0 %v1969
        %2875 = vmatpush1.bf16.msra.mxu0 %v1968
        %2876 = vmatprep.subr.bf16.mxu0 %v1975
        %2877 = vmatpush1.bf16.msra.mxu0 %v1974
        %2878 = vmatprep.subr.bf16.mxu0 %v1981
        %2879 = vmatpush1.bf16.msra.mxu0 %v1980
        %2880 = vmatprep.subr.bf16.mxu0 %v1987
        %2881 = vmatpush1.bf16.msra.mxu0 %v1986
        %2882 = vmatprep.subr.bf16.mxu0 %v1993
        %2883 = vmatpush1.bf16.msra.mxu0 %v1992
        %2884 = vmatprep.subr.bf16.mxu0 %v1999
        %2885 = vmatpush1.bf16.msra.mxu0 %v1998
        %2886 = vmatprep.subr.bf16.mxu0 %v2005
        %2887 = vmatpush1.bf16.msra.mxu0 %v2004
        %2888 = vmatprep.subr.bf16.mxu0 %v2011
        %2889 = vmatpush1.bf16.msra.mxu0 %v2010
        %2890 = vmatprep.subr.bf16.mxu0 %v2017
        %2891 = vmatpush1.bf16.msra.mxu0 %v2016
        %2892 = vmatprep.subr.bf16.mxu0 %v2023
        %2893 = vmatpush1.bf16.msra.mxu0 %v2022
        %2894 = vmatprep.mubr.bf16.mxu0 %v893
        %2895 = vmatmul.mubr.bf16.gmra.mrb[0].mxu0 %v892
        %v2896 = vpop.f32.mrb[0].mxu0
        %v2897 = vadd.f32 %v2784, %v2896
        %v2898 = vpop.f32.mrb[0].mxu0
        %v2899 = vadd.f32 %v2786, %v2898
        %v2900 = vpop.f32.mrb[0].mxu0
        %v2901 = vadd.f32 %v2788, %v2900
        %v2902 = vpop.f32.mrb[0].mxu0
        %v2903 = vadd.f32 %v2790, %v2902
        %2904 = vmatprep.mubr.bf16.mxu0 %v899
        %2905 = vmatmul.mubr.bf16.gmra.mrb[0].mxu0 %v898
        %v2906 = vpop.f32.mrb[0].mxu0
        %v2907 = vadd.f32 %v2794, %v2906
        %v2908 = vpop.f32.mrb[0].mxu0
        %v2909 = vadd.f32 %v2796, %v2908
        %v2910 = vpop.f32.mrb[0].mxu0
        %v2911 = vadd.f32 %v2798, %v2910
        %v2912 = vpop.f32.mrb[0].mxu0
        %v2913 = vadd.f32 %v2800, %v2912
        %2914 = vmatprep.mubr.bf16.mxu0 %v905
        %2915 = vmatmul.mubr.bf16.gmra.mrb[0].mxu0 %v904
        %v2916 = vpop.f32.mrb[0].mxu0
        %v2917 = vadd.f32 %v2804, %v2916
        %v2918 = vpop.f32.mrb[0].mxu0
        %v2919 = vadd.f32 %v2806, %v2918
        %v2920 = vpop.f32.mrb[0].mxu0
        %v2921 = vadd.f32 %v2808, %v2920
        %v2922 = vpop.f32.mrb[0].mxu0
        %v2923 = vadd.f32 %v2810, %v2922
        %2924 = vmatprep.mubr.bf16.mxu0 %v911
        %2925 = vmatmul.mubr.bf16.gmra.mrb[0].mxu0 %v910
        %v2926 = vpop.f32.mrb[0].mxu0
        %v2927 = vadd.f32 %v2814, %v2926
        %v2928 = vpop.f32.mrb[0].mxu0
        %v2929 = vadd.f32 %v2816, %v2928
        %v2930 = vpop.f32.mrb[0].mxu0
        %v2931 = vadd.f32 %v2818, %v2930
        %v2932 = vpop.f32.mrb[0].mxu0
        %v2933 = vadd.f32 %v2820, %v2932
        %2934 = vmatprep.mubr.bf16.mxu0 %v917
        %2935 = vmatmul.mubr.bf16.gmra.mrb[0].mxu0 %v916
        %v2936 = vpop.f32.mrb[0].mxu0
        %v2937 = vadd.f32 %v2824, %v2936
        %v2938 = vpop.f32.mrb[0].mxu0
        %v2939 = vadd.f32 %v2826, %v2938
        %v2940 = vpop.f32.mrb[0].mxu0
        %v2941 = vadd.f32 %v2828, %v2940
        %v2942 = vpop.f32.mrb[0].mxu0
        %v2943 = vadd.f32 %v2830, %v2942
        %2944 = vmatprep.mubr.bf16.mxu0 %v923
        %2945 = vmatmul.mubr.bf16.gmra.mrb[0].mxu0 %v922
        %v2946 = vpop.f32.mrb[0].mxu0
        %v2947 = vadd.f32 %v2834, %v2946
        %v2948 = vpop.f32.mrb[0].mxu0
        %v2949 = vadd.f32 %v2836, %v2948
        %v2950 = vpop.f32.mrb[0].mxu0
        %v2951 = vadd.f32 %v2838, %v2950
        %v2952 = vpop.f32.mrb[0].mxu0
        %v2953 = vadd.f32 %v2840, %v2952
        %2954 = vmatprep.mubr.bf16.mxu0 %v929
        %2955 = vmatmul.mubr.bf16.gmra.mrb[0].mxu0 %v928
        %v2956 = vpop.f32.mrb[0].mxu0
        %v2957 = vadd.f32 %v2844, %v2956
        %v2958 = vpop.f32.mrb[0].mxu0
        %v2959 = vadd.f32 %v2846, %v2958
        %v2960 = vpop.f32.mrb[0].mxu0
        %v2961 = vadd.f32 %v2848, %v2960
        %v2962 = vpop.f32.mrb[0].mxu0
        %v2963 = vadd.f32 %v2850, %v2962
        %2964 = vmatprep.mubr.bf16.mxu0 %v935
        %2965 = vmatmul.mubr.bf16.gmra.mrb[0].mxu0 %v934
        %v2966 = vpop.f32.mrb[0].mxu0
        %v2967 = vadd.f32 %v2854, %v2966
        %v2968 = vpop.f32.mrb[0].mxu0
        %v2969 = vadd.f32 %v2856, %v2968
        %v2970 = vpop.f32.mrb[0].mxu0
        %v2971 = vadd.f32 %v2858, %v2970
        %v2972 = vpop.f32.mrb[0].mxu0
        %v2973 = vadd.f32 %v2860, %v2972
        %2974 = vdwg.mxu0
        %2975 = vmatprep.subr.bf16.mxu0 %v2029
        %2976 = vmatpush1.bf16.msra.mxu0 %v2028
        %2977 = vmatprep.subr.bf16.mxu0 %v2035
        %2978 = vmatpush1.bf16.msra.mxu0 %v2034
        %2979 = vmatprep.subr.bf16.mxu0 %v2041
        %2980 = vmatpush1.bf16.msra.mxu0 %v2040
        %2981 = vmatprep.subr.bf16.mxu0 %v2047
        %2982 = vmatpush1.bf16.msra.mxu0 %v2046
        %2983 = vmatprep.subr.bf16.mxu0 %v2053
        %2984 = vmatpush1.bf16.msra.mxu0 %v2052
        %2985 = vmatprep.subr.bf16.mxu0 %v2059
        %2986 = vmatpush1.bf16.msra.mxu0 %v2058
        %2987 = vmatprep.subr.bf16.mxu0 %v2065
        %2988 = vmatpush1.bf16.msra.mxu0 %v2064
        %2989 = vmatprep.subr.bf16.mxu0 %v2071
        %2990 = vmatpush1.bf16.msra.mxu0 %v2070
        %2991 = vmatprep.subr.bf16.mxu0 %v2077
        %2992 = vmatpush1.bf16.msra.mxu0 %v2076
        %2993 = vmatprep.subr.bf16.mxu0 %v2083
        %2994 = vmatpush1.bf16.msra.mxu0 %v2082
        %2995 = vmatprep.subr.bf16.mxu0 %v2089
        %2996 = vmatpush1.bf16.msra.mxu0 %v2088
        %2997 = vmatprep.subr.bf16.mxu0 %v2095
        %2998 = vmatpush1.bf16.msra.mxu0 %v2094
        %2999 = vmatprep.subr.bf16.mxu0 %v2101
        %3000 = vmatpush1.bf16.msra.mxu0 %v2100
        %3001 = vmatprep.subr.bf16.mxu0 %v2107
        %3002 = vmatpush1.bf16.msra.mxu0 %v2106
        %3003 = vmatprep.subr.bf16.mxu0 %v2113
        %3004 = vmatpush1.bf16.msra.mxu0 %v2112
        %3005 = vmatprep.subr.bf16.mxu0 %v2119
        %3006 = vmatpush1.bf16.msra.mxu0 %v2118
        %3007 = vmatprep.mubr.bf16.mxu0 %v895
        %3008 = vmatmul.mubr.bf16.gmra.mrb[0].mxu0 %v894
        %v3009 = vpop.f32.mrb[0].mxu0
        %v3010 = vadd.f32 %v2897, %v3009
        %v3011 = vpop.f32.mrb[0].mxu0
        %v3012 = vadd.f32 %v2899, %v3011
        %v3013 = vpop.f32.mrb[0].mxu0
        %v3014 = vadd.f32 %v2901, %v3013
        %v3015 = vpop.f32.mrb[0].mxu0
        %v3016 = vadd.f32 %v2903, %v3015
        %3017 = vmatprep.mubr.bf16.mxu0 %v901
        %3018 = vmatmul.mubr.bf16.gmra.mrb[0].mxu0 %v900
        %v3019 = vpop.f32.mrb[0].mxu0
        %v3020 = vadd.f32 %v2907, %v3019
        %v3021 = vpop.f32.mrb[0].mxu0
        %v3022 = vadd.f32 %v2909, %v3021
        %v3023 = vpop.f32.mrb[0].mxu0
        %v3024 = vadd.f32 %v2911, %v3023
        %v3025 = vpop.f32.mrb[0].mxu0
        %v3026 = vadd.f32 %v2913, %v3025
        %3027 = vmatprep.mubr.bf16.mxu0 %v907
        %3028 = vmatmul.mubr.bf16.gmra.mrb[0].mxu0 %v906
        %v3029 = vpop.f32.mrb[0].mxu0
        %v3030 = vadd.f32 %v2917, %v3029
        %v3031 = vpop.f32.mrb[0].mxu0
        %v3032 = vadd.f32 %v2919, %v3031
        %v3033 = vpop.f32.mrb[0].mxu0
        %v3034 = vadd.f32 %v2921, %v3033
        %v3035 = vpop.f32.mrb[0].mxu0
        %v3036 = vadd.f32 %v2923, %v3035
        %3037 = vmatprep.mubr.bf16.mxu0 %v913
        %3038 = vmatmul.mubr.bf16.gmra.mrb[0].mxu0 %v912
        %v3039 = vpop.f32.mrb[0].mxu0
        %v3040 = vadd.f32 %v2927, %v3039
        %v3041 = vpop.f32.mrb[0].mxu0
        %v3042 = vadd.f32 %v2929, %v3041
        %v3043 = vpop.f32.mrb[0].mxu0
        %v3044 = vadd.f32 %v2931, %v3043
        %v3045 = vpop.f32.mrb[0].mxu0
        %v3046 = vadd.f32 %v2933, %v3045
        %3047 = vmatprep.mubr.bf16.mxu0 %v919
        %3048 = vmatmul.mubr.bf16.gmra.mrb[0].mxu0 %v918
        %v3049 = vpop.f32.mrb[0].mxu0
        %v3050 = vadd.f32 %v2937, %v3049
        %v3051 = vpop.f32.mrb[0].mxu0
        %v3052 = vadd.f32 %v2939, %v3051
        %v3053 = vpop.f32.mrb[0].mxu0
        %v3054 = vadd.f32 %v2941, %v3053
        %v3055 = vpop.f32.mrb[0].mxu0
        %v3056 = vadd.f32 %v2943, %v3055
        %3057 = vmatprep.mubr.bf16.mxu0 %v925
        %3058 = vmatmul.mubr.bf16.gmra.mrb[0].mxu0 %v924
        %v3059 = vpop.f32.mrb[0].mxu0
        %v3060 = vadd.f32 %v2947, %v3059
        %v3061 = vpop.f32.mrb[0].mxu0
        %v3062 = vadd.f32 %v2949, %v3061
        %v3063 = vpop.f32.mrb[0].mxu0
        %v3064 = vadd.f32 %v2951, %v3063
        %v3065 = vpop.f32.mrb[0].mxu0
        %v3066 = vadd.f32 %v2953, %v3065
        %3067 = vmatprep.mubr.bf16.mxu0 %v931
        %3068 = vmatmul.mubr.bf16.gmra.mrb[0].mxu0 %v930
        %v3069 = vpop.f32.mrb[0].mxu0
        %v3070 = vadd.f32 %v2957, %v3069
        %v3071 = vpop.f32.mrb[0].mxu0
        %v3072 = vadd.f32 %v2959, %v3071
        %v3073 = vpop.f32.mrb[0].mxu0
        %v3074 = vadd.f32 %v2961, %v3073
        %v3075 = vpop.f32.mrb[0].mxu0
        %v3076 = vadd.f32 %v2963, %v3075
        %3077 = vmatprep.mubr.bf16.mxu0 %v937
        %3078 = vmatmul.mubr.bf16.gmra.mrb[0].mxu0 %v936
        %v3079 = vpop.f32.mrb[0].mxu0
        %v3080 = vadd.f32 %v2967, %v3079
        %v3081 = vpop.f32.mrb[0].mxu0
        %v3082 = vadd.f32 %v2969, %v3081
        %v3083 = vpop.f32.mrb[0].mxu0
        %v3084 = vadd.f32 %v2971, %v3083
        %v3085 = vpop.f32.mrb[0].mxu0
        %v3086 = vadd.f32 %v2973, %v3085
        %3087 = vdwg.mxu0
        %3088 = vmatprep.subr.bf16.mxu0 %v1839
        %3089 = vmatpush1.bf16.msra.mxu0 %v1838
        %3090 = vmatprep.subr.bf16.mxu0 %v1845
        %3091 = vmatpush1.bf16.msra.mxu0 %v1844
        %3092 = vmatprep.subr.bf16.mxu0 %v1851
        %3093 = vmatpush1.bf16.msra.mxu0 %v1850
        %3094 = vmatprep.subr.bf16.mxu0 %v1857
        %3095 = vmatpush1.bf16.msra.mxu0 %v1856
        %3096 = vmatprep.subr.bf16.mxu0 %v1863
        %3097 = vmatpush1.bf16.msra.mxu0 %v1862
        %3098 = vmatprep.subr.bf16.mxu0 %v1869
        %3099 = vmatpush1.bf16.msra.mxu0 %v1868
        %3100 = vmatprep.subr.bf16.mxu0 %v1875
        %3101 = vmatpush1.bf16.msra.mxu0 %v1874
        %3102 = vmatprep.subr.bf16.mxu0 %v1881
        %3103 = vmatpush1.bf16.msra.mxu0 %v1880
        %3104 = vmatprep.subr.bf16.mxu0 %v1887
        %3105 = vmatpush1.bf16.msra.mxu0 %v1886
        %3106 = vmatprep.subr.bf16.mxu0 %v1893
        %3107 = vmatpush1.bf16.msra.mxu0 %v1892
        %3108 = vmatprep.subr.bf16.mxu0 %v1899
        %3109 = vmatpush1.bf16.msra.mxu0 %v1898
        %3110 = vmatprep.subr.bf16.mxu0 %v1905
        %3111 = vmatpush1.bf16.msra.mxu0 %v1904
        %3112 = vmatprep.subr.bf16.mxu0 %v1911
        %3113 = vmatpush1.bf16.msra.mxu0 %v1910
        %3114 = vmatprep.subr.bf16.mxu0 %v1917
        %3115 = vmatpush1.bf16.msra.mxu0 %v1916
        %3116 = vmatprep.subr.bf16.mxu0 %v1923
        %3117 = vmatpush1.bf16.msra.mxu0 %v1922
        %3118 = vmatprep.subr.bf16.mxu0 %v1929
        %3119 = vmatpush1.bf16.msra.mxu0 %v1928
        %3120 = vmatprep.mubr.bf16.mxu0 %v891
        %3121 = vmatmul.mubr.bf16.gmra.mrb[0].mxu0 %v890
        %v3122 = vpop.f32.mrb[0].mxu0
        %v3123 = vadd.f32 %v959, %v3122
        %v3124 = vpop.f32.mrb[0].mxu0
        %v3125 = vadd.f32 %v963, %v3124
        %v3126 = vpop.f32.mrb[0].mxu0
        %v3127 = vadd.f32 %v959, %v3126
        %v3128 = vpop.f32.mrb[0].mxu0
        %v3129 = vadd.f32 %v963, %v3128
        %3130 = vmatprep.mubr.bf16.mxu0 %v897
        %3131 = vmatmul.mubr.bf16.gmra.mrb[0].mxu0 %v896
        %v3132 = vpop.f32.mrb[0].mxu0
        %v3133 = vadd.f32 %v959, %v3132
        %v3134 = vpop.f32.mrb[0].mxu0
        %v3135 = vadd.f32 %v963, %v3134
        %v3136 = vpop.f32.mrb[0].mxu0
        %v3137 = vadd.f32 %v959, %v3136
        %v3138 = vpop.f32.mrb[0].mxu0
        %v3139 = vadd.f32 %v963, %v3138
        %3140 = vmatprep.mubr.bf16.mxu0 %v903
        %3141 = vmatmul.mubr.bf16.gmra.mrb[0].mxu0 %v902
        %v3142 = vpop.f32.mrb[0].mxu0
        %v3143 = vadd.f32 %v959, %v3142
        %v3144 = vpop.f32.mrb[0].mxu0
        %v3145 = vadd.f32 %v963, %v3144
        %v3146 = vpop.f32.mrb[0].mxu0
        %v3147 = vadd.f32 %v959, %v3146
        %v3148 = vpop.f32.mrb[0].mxu0
        %v3149 = vadd.f32 %v963, %v3148
        %3150 = vmatprep.mubr.bf16.mxu0 %v909
        %3151 = vmatmul.mubr.bf16.gmra.mrb[0].mxu0 %v908
        %v3152 = vpop.f32.mrb[0].mxu0
        %v3153 = vadd.f32 %v959, %v3152
        %v3154 = vpop.f32.mrb[0].mxu0
        %v3155 = vadd.f32 %v963, %v3154
        %v3156 = vpop.f32.mrb[0].mxu0
        %v3157 = vadd.f32 %v959, %v3156
        %v3158 = vpop.f32.mrb[0].mxu0
        %v3159 = vadd.f32 %v963, %v3158
        %3160 = vmatprep.mubr.bf16.mxu0 %v915
        %3161 = vmatmul.mubr.bf16.gmra.mrb[0].mxu0 %v914
        %v3162 = vpop.f32.mrb[0].mxu0
        %v3163 = vadd.f32 %v959, %v3162
        %v3164 = vpop.f32.mrb[0].mxu0
        %v3165 = vadd.f32 %v963, %v3164
        %v3166 = vpop.f32.mrb[0].mxu0
        %v3167 = vadd.f32 %v959, %v3166
        %v3168 = vpop.f32.mrb[0].mxu0
        %v3169 = vadd.f32 %v963, %v3168
        %3170 = vmatprep.mubr.bf16.mxu0 %v921
        %3171 = vmatmul.mubr.bf16.gmra.mrb[0].mxu0 %v920
        %v3172 = vpop.f32.mrb[0].mxu0
        %v3173 = vadd.f32 %v959, %v3172
        %v3174 = vpop.f32.mrb[0].mxu0
        %v3175 = vadd.f32 %v963, %v3174
        %v3176 = vpop.f32.mrb[0].mxu0
        %v3177 = vadd.f32 %v959, %v3176
        %v3178 = vpop.f32.mrb[0].mxu0
        %v3179 = vadd.f32 %v963, %v3178
        %3180 = vmatprep.mubr.bf16.mxu0 %v927
        %3181 = vmatmul.mubr.bf16.gmra.mrb[0].mxu0 %v926
        %v3182 = vpop.f32.mrb[0].mxu0
        %v3183 = vadd.f32 %v959, %v3182
        %v3184 = vpop.f32.mrb[0].mxu0
        %v3185 = vadd.f32 %v963, %v3184
        %v3186 = vpop.f32.mrb[0].mxu0
        %v3187 = vadd.f32 %v959, %v3186
        %v3188 = vpop.f32.mrb[0].mxu0
        %v3189 = vadd.f32 %v963, %v3188
        %3190 = vmatprep.mubr.bf16.mxu0 %v933
        %3191 = vmatmul.mubr.bf16.gmra.mrb[0].mxu0 %v932
        %v3192 = vpop.f32.mrb[0].mxu0
        %v3193 = vadd.f32 %v959, %v3192
        %v3194 = vpop.f32.mrb[0].mxu0
        %v3195 = vadd.f32 %v963, %v3194
        %v3196 = vpop.f32.mrb[0].mxu0
        %v3197 = vadd.f32 %v959, %v3196
        %v3198 = vpop.f32.mrb[0].mxu0
        %v3199 = vadd.f32 %v963, %v3198
        %3200 = vdwg.mxu0
        %3201 = vmatprep.subr.bf16.mxu0 %v1935
        %3202 = vmatpush1.bf16.msra.mxu0 %v1934
        %3203 = vmatprep.subr.bf16.mxu0 %v1941
        %3204 = vmatpush1.bf16.msra.mxu0 %v1940
        %3205 = vmatprep.subr.bf16.mxu0 %v1947
        %3206 = vmatpush1.bf16.msra.mxu0 %v1946
        %3207 = vmatprep.subr.bf16.mxu0 %v1953
        %3208 = vmatpush1.bf16.msra.mxu0 %v1952
        %3209 = vmatprep.subr.bf16.mxu0 %v1959
        %3210 = vmatpush1.bf16.msra.mxu0 %v1958
        %3211 = vmatprep.subr.bf16.mxu0 %v1965
        %3212 = vmatpush1.bf16.msra.mxu0 %v1964
        %3213 = vmatprep.subr.bf16.mxu0 %v1971
        %3214 = vmatpush1.bf16.msra.mxu0 %v1970
        %3215 = vmatprep.subr.bf16.mxu0 %v1977
        %3216 = vmatpush1.bf16.msra.mxu0 %v1976
        %3217 = vmatprep.subr.bf16.mxu0 %v1983
        %3218 = vmatpush1.bf16.msra.mxu0 %v1982
        %3219 = vmatprep.subr.bf16.mxu0 %v1989
        %3220 = vmatpush1.bf16.msra.mxu0 %v1988
        %3221 = vmatprep.subr.bf16.mxu0 %v1995
        %3222 = vmatpush1.bf16.msra.mxu0 %v1994
        %3223 = vmatprep.subr.bf16.mxu0 %v2001
        %3224 = vmatpush1.bf16.msra.mxu0 %v2000
        %3225 = vmatprep.subr.bf16.mxu0 %v2007
        %3226 = vmatpush1.bf16.msra.mxu0 %v2006
        %3227 = vmatprep.subr.bf16.mxu0 %v2013
        %3228 = vmatpush1.bf16.msra.mxu0 %v2012
        %3229 = vmatprep.subr.bf16.mxu0 %v2019
        %3230 = vmatpush1.bf16.msra.mxu0 %v2018
        %3231 = vmatprep.subr.bf16.mxu0 %v2025
        %3232 = vmatpush1.bf16.msra.mxu0 %v2024
        %3233 = vmatprep.mubr.bf16.mxu0 %v893
        %3234 = vmatmul.mubr.bf16.gmra.mrb[0].mxu0 %v892
        %v3235 = vpop.f32.mrb[0].mxu0
        %v3236 = vadd.f32 %v3123, %v3235
        %v3237 = vpop.f32.mrb[0].mxu0
        %v3238 = vadd.f32 %v3125, %v3237
        %v3239 = vpop.f32.mrb[0].mxu0
        %v3240 = vadd.f32 %v3127, %v3239
        %v3241 = vpop.f32.mrb[0].mxu0
        %v3242 = vadd.f32 %v3129, %v3241
        %3243 = vmatprep.mubr.bf16.mxu0 %v899
        %3244 = vmatmul.mubr.bf16.gmra.mrb[0].mxu0 %v898
        %v3245 = vpop.f32.mrb[0].mxu0
        %v3246 = vadd.f32 %v3133, %v3245
        %v3247 = vpop.f32.mrb[0].mxu0
        %v3248 = vadd.f32 %v3135, %v3247
        %v3249 = vpop.f32.mrb[0].mxu0
        %v3250 = vadd.f32 %v3137, %v3249
        %v3251 = vpop.f32.mrb[0].mxu0
        %v3252 = vadd.f32 %v3139, %v3251
        %3253 = vmatprep.mubr.bf16.mxu0 %v905
        %3254 = vmatmul.mubr.bf16.gmra.mrb[0].mxu0 %v904
        %v3255 = vpop.f32.mrb[0].mxu0
        %v3256 = vadd.f32 %v3143, %v3255
        %v3257 = vpop.f32.mrb[0].mxu0
        %v3258 = vadd.f32 %v3145, %v3257
        %v3259 = vpop.f32.mrb[0].mxu0
        %v3260 = vadd.f32 %v3147, %v3259
        %v3261 = vpop.f32.mrb[0].mxu0
        %v3262 = vadd.f32 %v3149, %v3261
        %3263 = vmatprep.mubr.bf16.mxu0 %v911
        %3264 = vmatmul.mubr.bf16.gmra.mrb[0].mxu0 %v910
        %v3265 = vpop.f32.mrb[0].mxu0
        %v3266 = vadd.f32 %v3153, %v3265
        %v3267 = vpop.f32.mrb[0].mxu0
        %v3268 = vadd.f32 %v3155, %v3267
        %v3269 = vpop.f32.mrb[0].mxu0
        %v3270 = vadd.f32 %v3157, %v3269
        %v3271 = vpop.f32.mrb[0].mxu0
        %v3272 = vadd.f32 %v3159, %v3271
        %3273 = vmatprep.mubr.bf16.mxu0 %v917
        %3274 = vmatmul.mubr.bf16.gmra.mrb[0].mxu0 %v916
        %v3275 = vpop.f32.mrb[0].mxu0
        %v3276 = vadd.f32 %v3163, %v3275
        %v3277 = vpop.f32.mrb[0].mxu0
        %v3278 = vadd.f32 %v3165, %v3277
        %v3279 = vpop.f32.mrb[0].mxu0
        %v3280 = vadd.f32 %v3167, %v3279
        %v3281 = vpop.f32.mrb[0].mxu0
        %v3282 = vadd.f32 %v3169, %v3281
        %3283 = vmatprep.mubr.bf16.mxu0 %v923
        %3284 = vmatmul.mubr.bf16.gmra.mrb[0].mxu0 %v922
        %v3285 = vpop.f32.mrb[0].mxu0
        %v3286 = vadd.f32 %v3173, %v3285
        %v3287 = vpop.f32.mrb[0].mxu0
        %v3288 = vadd.f32 %v3175, %v3287
        %v3289 = vpop.f32.mrb[0].mxu0
        %v3290 = vadd.f32 %v3177, %v3289
        %v3291 = vpop.f32.mrb[0].mxu0
        %v3292 = vadd.f32 %v3179, %v3291
        %3293 = vmatprep.mubr.bf16.mxu0 %v929
        %3294 = vmatmul.mubr.bf16.gmra.mrb[0].mxu0 %v928
        %v3295 = vpop.f32.mrb[0].mxu0
        %v3296 = vadd.f32 %v3183, %v3295
        %v3297 = vpop.f32.mrb[0].mxu0
        %v3298 = vadd.f32 %v3185, %v3297
        %v3299 = vpop.f32.mrb[0].mxu0
        %v3300 = vadd.f32 %v3187, %v3299
        %v3301 = vpop.f32.mrb[0].mxu0
        %v3302 = vadd.f32 %v3189, %v3301
        %3303 = vmatprep.mubr.bf16.mxu0 %v935
        %3304 = vmatmul.mubr.bf16.gmra.mrb[0].mxu0 %v934
        %v3305 = vpop.f32.mrb[0].mxu0
        %v3306 = vadd.f32 %v3193, %v3305
        %v3307 = vpop.f32.mrb[0].mxu0
        %v3308 = vadd.f32 %v3195, %v3307
        %v3309 = vpop.f32.mrb[0].mxu0
        %v3310 = vadd.f32 %v3197, %v3309
        %v3311 = vpop.f32.mrb[0].mxu0
        %v3312 = vadd.f32 %v3199, %v3311
        %3313 = vdwg.mxu0
        %3314 = vmatprep.subr.bf16.mxu0 %v2031
        %3315 = vmatpush1.bf16.msra.mxu0 %v2030
        %3316 = vmatprep.subr.bf16.mxu0 %v2037
        %3317 = vmatpush1.bf16.msra.mxu0 %v2036
        %3318 = vmatprep.subr.bf16.mxu0 %v2043
        %3319 = vmatpush1.bf16.msra.mxu0 %v2042
        %3320 = vmatprep.subr.bf16.mxu0 %v2049
        %3321 = vmatpush1.bf16.msra.mxu0 %v2048
        %3322 = vmatprep.subr.bf16.mxu0 %v2055
        %3323 = vmatpush1.bf16.msra.mxu0 %v2054
        %3324 = vmatprep.subr.bf16.mxu0 %v2061
        %3325 = vmatpush1.bf16.msra.mxu0 %v2060
        %3326 = vmatprep.subr.bf16.mxu0 %v2067
        %3327 = vmatpush1.bf16.msra.mxu0 %v2066
        %3328 = vmatprep.subr.bf16.mxu0 %v2073
        %3329 = vmatpush1.bf16.msra.mxu0 %v2072
        %3330 = vmatprep.subr.bf16.mxu0 %v2079
        %3331 = vmatpush1.bf16.msra.mxu0 %v2078
        %3332 = vmatprep.subr.bf16.mxu0 %v2085
        %3333 = vmatpush1.bf16.msra.mxu0 %v2084
        %3334 = vmatprep.subr.bf16.mxu0 %v2091
        %3335 = vmatpush1.bf16.msra.mxu0 %v2090
        %3336 = vmatprep.subr.bf16.mxu0 %v2097
        %3337 = vmatpush1.bf16.msra.mxu0 %v2096
        %3338 = vmatprep.subr.bf16.mxu0 %v2103
        %3339 = vmatpush1.bf16.msra.mxu0 %v2102
        %3340 = vmatprep.subr.bf16.mxu0 %v2109
        %3341 = vmatpush1.bf16.msra.mxu0 %v2108
        %3342 = vmatprep.subr.bf16.mxu0 %v2115
        %3343 = vmatpush1.bf16.msra.mxu0 %v2114
        %3344 = vmatprep.subr.bf16.mxu0 %v2121
        %3345 = vmatpush1.bf16.msra.mxu0 %v2120
        %3346 = vmatprep.mubr.bf16.mxu0 %v895
        %3347 = vmatmul.mubr.bf16.gmra.mrb[0].mxu0 %v894
        %v3348 = vpop.f32.mrb[0].mxu0
        %v3349 = vadd.f32 %v3236, %v3348
        %v3350 = vpop.f32.mrb[0].mxu0
        %v3351 = vadd.f32 %v3238, %v3350
        %v3352 = vpop.f32.mrb[0].mxu0
        %v3353 = vadd.f32 %v3240, %v3352
        %v3354 = vpop.f32.mrb[0].mxu0
        %v3355 = vadd.f32 %v3242, %v3354
        %3356 = vmatprep.mubr.bf16.mxu0 %v901
        %3357 = vmatmul.mubr.bf16.gmra.mrb[0].mxu0 %v900
        %v3358 = vpop.f32.mrb[0].mxu0
        %v3359 = vadd.f32 %v3246, %v3358
        %v3360 = vpop.f32.mrb[0].mxu0
        %v3361 = vadd.f32 %v3248, %v3360
        %v3362 = vpop.f32.mrb[0].mxu0
        %v3363 = vadd.f32 %v3250, %v3362
        %v3364 = vpop.f32.mrb[0].mxu0
        %v3365 = vadd.f32 %v3252, %v3364
        %3366 = vmatprep.mubr.bf16.mxu0 %v907
        %3367 = vmatmul.mubr.bf16.gmra.mrb[0].mxu0 %v906
        %v3368 = vpop.f32.mrb[0].mxu0
        %v3369 = vadd.f32 %v3256, %v3368
        %v3370 = vpop.f32.mrb[0].mxu0
        %v3371 = vadd.f32 %v3258, %v3370
        %v3372 = vpop.f32.mrb[0].mxu0
        %v3373 = vadd.f32 %v3260, %v3372
        %v3374 = vpop.f32.mrb[0].mxu0
        %v3375 = vadd.f32 %v3262, %v3374
        %3376 = vmatprep.mubr.bf16.mxu0 %v913
        %3377 = vmatmul.mubr.bf16.gmra.mrb[0].mxu0 %v912
        %v3378 = vpop.f32.mrb[0].mxu0
        %v3379 = vadd.f32 %v3266, %v3378
        %v3380 = vpop.f32.mrb[0].mxu0
        %v3381 = vadd.f32 %v3268, %v3380
        %v3382 = vpop.f32.mrb[0].mxu0
        %v3383 = vadd.f32 %v3270, %v3382
        %v3384 = vpop.f32.mrb[0].mxu0
        %v3385 = vadd.f32 %v3272, %v3384
        %3386 = vmatprep.mubr.bf16.mxu0 %v919
        %3387 = vmatmul.mubr.bf16.gmra.mrb[0].mxu0 %v918
        %v3388 = vpop.f32.mrb[0].mxu0
        %v3389 = vadd.f32 %v3276, %v3388
        %v3390 = vpop.f32.mrb[0].mxu0
        %v3391 = vadd.f32 %v3278, %v3390
        %v3392 = vpop.f32.mrb[0].mxu0
        %v3393 = vadd.f32 %v3280, %v3392
        %v3394 = vpop.f32.mrb[0].mxu0
        %v3395 = vadd.f32 %v3282, %v3394
        %3396 = vmatprep.mubr.bf16.mxu0 %v925
        %3397 = vmatmul.mubr.bf16.gmra.mrb[0].mxu0 %v924
        %v3398 = vpop.f32.mrb[0].mxu0
        %v3399 = vadd.f32 %v3286, %v3398
        %v3400 = vpop.f32.mrb[0].mxu0
        %v3401 = vadd.f32 %v3288, %v3400
        %v3402 = vpop.f32.mrb[0].mxu0
        %v3403 = vadd.f32 %v3290, %v3402
        %v3404 = vpop.f32.mrb[0].mxu0
        %v3405 = vadd.f32 %v3292, %v3404
        %3406 = vmatprep.mubr.bf16.mxu0 %v931
        %3407 = vmatmul.mubr.bf16.gmra.mrb[0].mxu0 %v930
        %v3408 = vpop.f32.mrb[0].mxu0
        %v3409 = vadd.f32 %v3296, %v3408
        %v3410 = vpop.f32.mrb[0].mxu0
        %v3411 = vadd.f32 %v3298, %v3410
        %v3412 = vpop.f32.mrb[0].mxu0
        %v3413 = vadd.f32 %v3300, %v3412
        %v3414 = vpop.f32.mrb[0].mxu0
        %v3415 = vadd.f32 %v3302, %v3414
        %3416 = vmatprep.mubr.bf16.mxu0 %v937
        %3417 = vmatmul.mubr.bf16.gmra.mrb[0].mxu0 %v936
        %v3418 = vpop.f32.mrb[0].mxu0
        %v3419 = vadd.f32 %v3306, %v3418
        %v3420 = vpop.f32.mrb[0].mxu0
        %v3421 = vadd.f32 %v3308, %v3420
        %v3422 = vpop.f32.mrb[0].mxu0
        %v3423 = vadd.f32 %v3310, %v3422
        %v3424 = vpop.f32.mrb[0].mxu0
        %v3425 = vadd.f32 %v3312, %v3424
        %3426 = vdwg.mxu0
        %v3427 = vmax.f32 %v2671, 0.0
        %v3428 = vmax.f32 %v2673, 0.0
        %v3429 = vmax.f32 %v3010, 0.0
        %v3430 = vmax.f32 %v3012, 0.0
        %v3431 = vmax.f32 %v3349, 0.0
        %v3432 = vmax.f32 %v3351, 0.0
        %v3433 = vmax.f32 %v2675, 0.0
        %v3434 = vmax.f32 %v2677, 0.0
        %v3435 = vmax.f32 %v3014, 0.0
        %v3436 = vmax.f32 %v3016, 0.0
        %v3437 = vmax.f32 %v3353, 0.0
        %v3438 = vmax.f32 %v3355, 0.0
        %v3439 = vmax.f32 %v2681, 0.0
        %v3440 = vmax.f32 %v2683, 0.0
        %v3441 = vmax.f32 %v3020, 0.0
        %v3442 = vmax.f32 %v3022, 0.0
        %v3443 = vmax.f32 %v3359, 0.0
        %v3444 = vmax.f32 %v3361, 0.0
        %v3445 = vmax.f32 %v2685, 0.0
        %v3446 = vmax.f32 %v2687, 0.0
        %v3447 = vmax.f32 %v3024, 0.0
        %v3448 = vmax.f32 %v3026, 0.0
        %v3449 = vmax.f32 %v3363, 0.0
        %v3450 = vmax.f32 %v3365, 0.0
        %v3451 = vmax.f32 %v2691, 0.0
        %v3452 = vmax.f32 %v2693, 0.0
        %v3453 = vmax.f32 %v3030, 0.0
        %v3454 = vmax.f32 %v3032, 0.0
        %v3455 = vmax.f32 %v3369, 0.0
        %v3456 = vmax.f32 %v3371, 0.0
        %v3457 = vmax.f32 %v2695, 0.0
        %v3458 = vmax.f32 %v2697, 0.0
        %v3459 = vmax.f32 %v3034, 0.0
        %v3460 = vmax.f32 %v3036, 0.0
        %v3461 = vmax.f32 %v3373, 0.0
        %v3462 = vmax.f32 %v3375, 0.0
        %v3463 = vmax.f32 %v2701, 0.0
        %v3464 = vmax.f32 %v2703, 0.0
        %v3465 = vmax.f32 %v3040, 0.0
        %v3466 = vmax.f32 %v3042, 0.0
        %v3467 = vmax.f32 %v3379, 0.0
        %v3468 = vmax.f32 %v3381, 0.0
        %v3469 = vmax.f32 %v2705, 0.0
        %v3470 = vmax.f32 %v2707, 0.0
        %v3471 = vmax.f32 %v3044, 0.0
        %v3472 = vmax.f32 %v3046, 0.0
        %v3473 = vmax.f32 %v3383, 0.0
        %v3474 = vmax.f32 %v3385, 0.0
        %v3475 = vmax.f32 %v2711, 0.0
        %v3476 = vmax.f32 %v2713, 0.0
        %v3477 = vmax.f32 %v3050, 0.0
        %v3478 = vmax.f32 %v3052, 0.0
        %v3479 = vmax.f32 %v3389, 0.0
        %v3480 = vmax.f32 %v3391, 0.0
        %v3481 = vmax.f32 %v2715, 0.0
        %v3482 = vmax.f32 %v2717, 0.0
        %v3483 = vmax.f32 %v3054, 0.0
        %v3484 = vmax.f32 %v3056, 0.0
        %v3485 = vmax.f32 %v3393, 0.0
        %v3486 = vmax.f32 %v3395, 0.0
        %v3487 = vmax.f32 %v2721, 0.0
        %v3488 = vmax.f32 %v2723, 0.0
        %v3489 = vmax.f32 %v3060, 0.0
        %v3490 = vmax.f32 %v3062, 0.0
        %v3491 = vmax.f32 %v3399, 0.0
        %v3492 = vmax.f32 %v3401, 0.0
        %v3493 = vmax.f32 %v2725, 0.0
        %v3494 = vmax.f32 %v2727, 0.0
        %v3495 = vmax.f32 %v3064, 0.0
        %v3496 = vmax.f32 %v3066, 0.0
        %v3497 = vmax.f32 %v3403, 0.0
        %v3498 = vmax.f32 %v3405, 0.0
        %v3499 = vmax.f32 %v2731, 0.0
        %v3500 = vmax.f32 %v2733, 0.0
        %v3501 = vmax.f32 %v3070, 0.0
        %v3502 = vmax.f32 %v3072, 0.0
        %v3503 = vmax.f32 %v3409, 0.0
        %v3504 = vmax.f32 %v3411, 0.0
        %v3505 = vmax.f32 %v2735, 0.0
        %v3506 = vmax.f32 %v2737, 0.0
        %v3507 = vmax.f32 %v3074, 0.0
        %v3508 = vmax.f32 %v3076, 0.0
        %v3509 = vmax.f32 %v3413, 0.0
        %v3510 = vmax.f32 %v3415, 0.0
        %v3511 = vmax.f32 %v2741, 0.0
        %v3512 = vmax.f32 %v2743, 0.0
        %v3513 = vmax.f32 %v3080, 0.0
        %v3514 = vmax.f32 %v3082, 0.0
        %v3515 = vmax.f32 %v3419, 0.0
        %v3516 = vmax.f32 %v3421, 0.0
        %v3517 = vmax.f32 %v2745, 0.0
        %v3518 = vmax.f32 %v2747, 0.0
        %v3519 = vmax.f32 %v3084, 0.0
        %v3520 = vmax.f32 %v3086, 0.0
        %v3521 = vmax.f32 %v3423, 0.0
        %v3522 = vmax.f32 %v3425, 0.0
        %v3523 = vld [vmem:[%s3] sm:$0xf]
        %v3524 = vld [vmem:[%s3 + $0x4] sm:$0xf]
        %v3525 = vld [vmem:[%s3 + $0x8] sm:$0xf]
        %v3526 = vld [vmem:[%s3 + $0xc] sm:$0xf]
        %v3527 = vld [vmem:[%s3 + $0x10] sm:$0xf]
        %v3528 = vld [vmem:[%s3 + $0x14] sm:$0xf]
        %v3529 = vld [vmem:[%s3 + $0x18] sm:$0xf]
        %v3530 = vld [vmem:[%s3 + $0x1c] sm:$0xf]
        %v3531 = vld [vmem:[%s3 + $0x20] sm:$0xf]
        %v3532 = vld [vmem:[%s3 + $0x24] sm:$0xf]
        %v3533 = vld [vmem:[%s3 + $0x28] sm:$0xf]
        %v3534 = vld [vmem:[%s3 + $0x2c] sm:$0xf]
        %v3535 = vld [vmem:[%s3 + $0x30] sm:$0xf]
        %v3536 = vld [vmem:[%s3 + $0x34] sm:$0xf]
        %v3537 = vld [vmem:[%s3 + $0x38] sm:$0xf]
        %v3538 = vld [vmem:[%s3 + $0x3c] sm:$0xf]
        %v3539 = vld [vmem:[%s3 + $0x40] sm:$0xf]
        %v3540 = vld [vmem:[%s3 + $0x44] sm:$0xf]
        %v3541 = vld [vmem:[%s3 + $0x48] sm:$0xf]
        %v3542 = vld [vmem:[%s3 + $0x4c] sm:$0xf]
        %v3543 = vld [vmem:[%s3 + $0x50] sm:$0xf]
        %v3544 = vld [vmem:[%s3 + $0x54] sm:$0xf]
        %v3545 = vld [vmem:[%s3 + $0x58] sm:$0xf]
        %v3546 = vld [vmem:[%s3 + $0x5c] sm:$0xf]
        %v3547 = vld [vmem:[%s3 + $0x60] sm:$0xf]
        %v3548 = vld [vmem:[%s3 + $0x64] sm:$0xf]
        %v3549 = vld [vmem:[%s3 + $0x68] sm:$0xf]
        %v3550 = vld [vmem:[%s3 + $0x6c] sm:$0xf]
        %v3551 = vld [vmem:[%s3 + $0x70] sm:$0xf]
        %v3552 = vld [vmem:[%s3 + $0x74] sm:$0xf]
        %v3553 = vld [vmem:[%s3 + $0x78] sm:$0xf]
        %v3554 = vld [vmem:[%s3 + $0x7c] sm:$0xf]
        %v3555 = vld [vmem:[%s3 + $0x80] sm:$0xf]
        %v3556 = vld [vmem:[%s3 + $0x84] sm:$0xf]
        %v3557 = vld [vmem:[%s3 + $0x88] sm:$0xf]
        %v3558 = vld [vmem:[%s3 + $0x8c] sm:$0xf]
        %v3559 = vld [vmem:[%s3 + $0x90] sm:$0xf]
        %v3560 = vld [vmem:[%s3 + $0x94] sm:$0xf]
        %v3561 = vld [vmem:[%s3 + $0x98] sm:$0xf]
        %v3562 = vld [vmem:[%s3 + $0x9c] sm:$0xf]
        %v3563 = vld [vmem:[%s3 + $0xa0] sm:$0xf]
        %v3564 = vld [vmem:[%s3 + $0xa4] sm:$0xf]
        %v3565 = vld [vmem:[%s3 + $0xa8] sm:$0xf]
        %v3566 = vld [vmem:[%s3 + $0xac] sm:$0xf]
        %v3567 = vld [vmem:[%s3 + $0xb0] sm:$0xf]
        %v3568 = vld [vmem:[%s3 + $0xb4] sm:$0xf]
        %v3569 = vld [vmem:[%s3 + $0xb8] sm:$0xf]
        %v3570 = vld [vmem:[%s3 + $0xbc] sm:$0xf]
        %v3571 = vld [vmem:[%s3 + $0xc0] sm:$0xf]
        %v3572 = vld [vmem:[%s3 + $0xc4] sm:$0xf]
        %v3573 = vld [vmem:[%s3 + $0xc8] sm:$0xf]
        %v3574 = vld [vmem:[%s3 + $0xcc] sm:$0xf]
        %v3575 = vld [vmem:[%s3 + $0xd0] sm:$0xf]
        %v3576 = vld [vmem:[%s3 + $0xd4] sm:$0xf]
        %v3577 = vld [vmem:[%s3 + $0xd8] sm:$0xf]
        %v3578 = vld [vmem:[%s3 + $0xdc] sm:$0xf]
        %v3579 = vld [vmem:[%s3 + $0xe0] sm:$0xf]
        %v3580 = vld [vmem:[%s3 + $0xe4] sm:$0xf]
        %v3581 = vld [vmem:[%s3 + $0xe8] sm:$0xf]
        %v3582 = vld [vmem:[%s3 + $0xec] sm:$0xf]
        %v3583 = vld [vmem:[%s3 + $0xf0] sm:$0xf]
        %v3584 = vld [vmem:[%s3 + $0xf4] sm:$0xf]
        %v3585 = vld [vmem:[%s3 + $0xf8] sm:$0xf]
        %v3586 = vld [vmem:[%s3 + $0xfc] sm:$0xf]
        %v3587 = vld [vmem:[%s3 + $0x100] sm:$0xf]
        %v3588 = vld [vmem:[%s3 + $0x104] sm:$0xf]
        %v3589 = vld [vmem:[%s3 + $0x108] sm:$0xf]
        %v3590 = vld [vmem:[%s3 + $0x10c] sm:$0xf]
        %v3591 = vld [vmem:[%s3 + $0x110] sm:$0xf]
        %v3592 = vld [vmem:[%s3 + $0x114] sm:$0xf]
        %v3593 = vld [vmem:[%s3 + $0x118] sm:$0xf]
        %v3594 = vld [vmem:[%s3 + $0x11c] sm:$0xf]
        %v3595 = vld [vmem:[%s3 + $0x120] sm:$0xf]
        %v3596 = vld [vmem:[%s3 + $0x124] sm:$0xf]
        %v3597 = vld [vmem:[%s3 + $0x128] sm:$0xf]
        %v3598 = vld [vmem:[%s3 + $0x12c] sm:$0xf]
        %v3599 = vld [vmem:[%s3 + $0x130] sm:$0xf]
        %v3600 = vld [vmem:[%s3 + $0x134] sm:$0xf]
        %v3601 = vld [vmem:[%s3 + $0x138] sm:$0xf]
        %v3602 = vld [vmem:[%s3 + $0x13c] sm:$0xf]
        %v3603 = vld [vmem:[%s3 + $0x140] sm:$0xf]
        %v3604 = vld [vmem:[%s3 + $0x144] sm:$0xf]
        %v3605 = vld [vmem:[%s3 + $0x148] sm:$0xf]
        %v3606 = vld [vmem:[%s3 + $0x14c] sm:$0xf]
        %v3607 = vld [vmem:[%s3 + $0x150] sm:$0xf]
        %v3608 = vld [vmem:[%s3 + $0x154] sm:$0xf]
        %v3609 = vld [vmem:[%s3 + $0x158] sm:$0xf]
        %v3610 = vld [vmem:[%s3 + $0x15c] sm:$0xf]
        %v3611 = vld [vmem:[%s3 + $0x160] sm:$0xf]
        %v3612 = vld [vmem:[%s3 + $0x164] sm:$0xf]
        %v3613 = vld [vmem:[%s3 + $0x168] sm:$0xf]
        %v3614 = vld [vmem:[%s3 + $0x16c] sm:$0xf]
        %v3615 = vld [vmem:[%s3 + $0x170] sm:$0xf]
        %v3616 = vld [vmem:[%s3 + $0x174] sm:$0xf]
        %v3617 = vld [vmem:[%s3 + $0x178] sm:$0xf]
        %v3618 = vld [vmem:[%s3 + $0x17c] sm:$0xf]
        %v3619 = vpack.c.bf16 %v3433, %v3427
        %v3620 = vpack.c.bf16 %v3434, %v3428
        %v3621 = vpack.c.bf16 %v3435, %v3429
        %v3622 = vpack.c.bf16 %v3436, %v3430
        %v3623 = vpack.c.bf16 %v3437, %v3431
        %v3624 = vpack.c.bf16 %v3438, %v3432
        %v3625 = vpack.c.bf16 %v3445, %v3439
        %v3626 = vpack.c.bf16 %v3446, %v3440
        %v3627 = vpack.c.bf16 %v3447, %v3441
        %v3628 = vpack.c.bf16 %v3448, %v3442
        %v3629 = vpack.c.bf16 %v3449, %v3443
        %v3630 = vpack.c.bf16 %v3450, %v3444
        %v3631 = vpack.c.bf16 %v3457, %v3451
        %v3632 = vpack.c.bf16 %v3458, %v3452
        %v3633 = vpack.c.bf16 %v3459, %v3453
        %v3634 = vpack.c.bf16 %v3460, %v3454
        %v3635 = vpack.c.bf16 %v3461, %v3455
        %v3636 = vpack.c.bf16 %v3462, %v3456
        %v3637 = vpack.c.bf16 %v3469, %v3463
        %v3638 = vpack.c.bf16 %v3470, %v3464
        %v3639 = vpack.c.bf16 %v3471, %v3465
        %v3640 = vpack.c.bf16 %v3472, %v3466
        %v3641 = vpack.c.bf16 %v3473, %v3467
        %v3642 = vpack.c.bf16 %v3474, %v3468
        %v3643 = vpack.c.bf16 %v3481, %v3475
        %v3644 = vpack.c.bf16 %v3482, %v3476
        %v3645 = vpack.c.bf16 %v3483, %v3477
        %v3646 = vpack.c.bf16 %v3484, %v3478
        %v3647 = vpack.c.bf16 %v3485, %v3479
        %v3648 = vpack.c.bf16 %v3486, %v3480
        %v3649 = vpack.c.bf16 %v3493, %v3487
        %v3650 = vpack.c.bf16 %v3494, %v3488
        %v3651 = vpack.c.bf16 %v3495, %v3489
        %v3652 = vpack.c.bf16 %v3496, %v3490
        %v3653 = vpack.c.bf16 %v3497, %v3491
        %v3654 = vpack.c.bf16 %v3498, %v3492
        %v3655 = vpack.c.bf16 %v3505, %v3499
        %v3656 = vpack.c.bf16 %v3506, %v3500
        %v3657 = vpack.c.bf16 %v3507, %v3501
        %v3658 = vpack.c.bf16 %v3508, %v3502
        %v3659 = vpack.c.bf16 %v3509, %v3503
        %v3660 = vpack.c.bf16 %v3510, %v3504
        %v3661 = vpack.c.bf16 %v3517, %v3511
        %v3662 = vpack.c.bf16 %v3518, %v3512
        %v3663 = vpack.c.bf16 %v3519, %v3513
        %v3664 = vpack.c.bf16 %v3520, %v3514
        %v3665 = vpack.c.bf16 %v3521, %v3515
        %v3666 = vpack.c.bf16 %v3522, %v3516
        %v3667 = vld [vmem:[#allocation6] sm:$0x1]
        %v3669 = vlaneseq
        %v3670 = vshrl.u32 %v3669, 7
        %v3671 = vsub.s32 0, %v3670
        %v3672 = vrot.slane %v3667, %v3671
        %v3770 = vunpack.c.l.b16 %v3523
        %v3771 = vunpack.c.l.b16 %v3524
        %v3772 = vunpack.c.l.b16 %v3525
        %v3773 = vunpack.c.l.b16 %v3526
        %v3774 = vunpack.c.l.b16 %v3527
        %v3775 = vunpack.c.l.b16 %v3528
        %v3776 = vunpack.c.l.b16 %v3529
        %v3777 = vunpack.c.l.b16 %v3530
        %v3778 = vunpack.c.l.b16 %v3531
        %v3779 = vunpack.c.l.b16 %v3532
        %v3780 = vunpack.c.l.b16 %v3533
        %v3781 = vunpack.c.l.b16 %v3534
        %v3782 = vunpack.c.l.b16 %v3535
        %v3783 = vunpack.c.l.b16 %v3536
        %v3784 = vunpack.c.l.b16 %v3537
        %v3785 = vunpack.c.l.b16 %v3538
        %v3786 = vunpack.c.l.b16 %v3539
        %v3787 = vunpack.c.l.b16 %v3540
        %v3788 = vunpack.c.l.b16 %v3541
        %v3789 = vunpack.c.l.b16 %v3542
        %v3790 = vunpack.c.l.b16 %v3543
        %v3791 = vunpack.c.l.b16 %v3544
        %v3792 = vunpack.c.l.b16 %v3545
        %v3793 = vunpack.c.l.b16 %v3546
        %v3794 = vunpack.c.l.b16 %v3547
        %v3795 = vunpack.c.l.b16 %v3548
        %v3796 = vunpack.c.l.b16 %v3549
        %v3797 = vunpack.c.l.b16 %v3550
        %v3798 = vunpack.c.l.b16 %v3551
        %v3799 = vunpack.c.l.b16 %v3552
        %v3800 = vunpack.c.l.b16 %v3553
        %v3801 = vunpack.c.l.b16 %v3554
        %v3802 = vunpack.c.l.b16 %v3555
        %v3803 = vunpack.c.l.b16 %v3556
        %v3804 = vunpack.c.l.b16 %v3557
        %v3805 = vunpack.c.l.b16 %v3558
        %v3806 = vunpack.c.l.b16 %v3559
        %v3807 = vunpack.c.l.b16 %v3560
        %v3808 = vunpack.c.l.b16 %v3561
        %v3809 = vunpack.c.l.b16 %v3562
        %v3810 = vunpack.c.l.b16 %v3563
        %v3811 = vunpack.c.l.b16 %v3564
        %v3812 = vunpack.c.l.b16 %v3565
        %v3813 = vunpack.c.l.b16 %v3566
        %v3814 = vunpack.c.l.b16 %v3567
        %v3815 = vunpack.c.l.b16 %v3568
        %v3816 = vunpack.c.l.b16 %v3569
        %v3817 = vunpack.c.l.b16 %v3570
        %v3818 = vunpack.c.l.b16 %v3571
        %v3819 = vunpack.c.l.b16 %v3572
        %v3820 = vunpack.c.l.b16 %v3573
        %v3821 = vunpack.c.l.b16 %v3574
        %v3822 = vunpack.c.l.b16 %v3575
        %v3823 = vunpack.c.l.b16 %v3576
        %v3824 = vunpack.c.l.b16 %v3577
        %v3825 = vunpack.c.l.b16 %v3578
        %v3826 = vunpack.c.l.b16 %v3579
        %v3827 = vunpack.c.l.b16 %v3580
        %v3828 = vunpack.c.l.b16 %v3581
        %v3829 = vunpack.c.l.b16 %v3582
        %v3830 = vunpack.c.l.b16 %v3583
        %v3831 = vunpack.c.l.b16 %v3584
        %v3832 = vunpack.c.l.b16 %v3585
        %v3833 = vunpack.c.l.b16 %v3586
        %v3834 = vunpack.c.l.b16 %v3587
        %v3835 = vunpack.c.l.b16 %v3588
        %v3836 = vunpack.c.l.b16 %v3589
        %v3837 = vunpack.c.l.b16 %v3590
        %v3838 = vunpack.c.l.b16 %v3591
        %v3839 = vunpack.c.l.b16 %v3592
        %v3840 = vunpack.c.l.b16 %v3593
        %v3841 = vunpack.c.l.b16 %v3594
        %v3842 = vunpack.c.l.b16 %v3595
        %v3843 = vunpack.c.l.b16 %v3596
        %v3844 = vunpack.c.l.b16 %v3597
        %v3845 = vunpack.c.l.b16 %v3598
        %v3846 = vunpack.c.l.b16 %v3599
        %v3847 = vunpack.c.l.b16 %v3600
        %v3848 = vunpack.c.l.b16 %v3601
        %v3849 = vunpack.c.l.b16 %v3602
        %v3850 = vunpack.c.l.b16 %v3603
        %v3851 = vunpack.c.l.b16 %v3604
        %v3852 = vunpack.c.l.b16 %v3605
        %v3853 = vunpack.c.l.b16 %v3606
        %v3854 = vunpack.c.l.b16 %v3607
        %v3855 = vunpack.c.l.b16 %v3608
        %v3856 = vunpack.c.l.b16 %v3609
        %v3857 = vunpack.c.l.b16 %v3610
        %v3858 = vunpack.c.l.b16 %v3611
        %v3859 = vunpack.c.l.b16 %v3612
        %v3860 = vunpack.c.l.b16 %v3613
        %v3861 = vunpack.c.l.b16 %v3614
        %v3862 = vunpack.c.l.b16 %v3615
        %v3863 = vunpack.c.l.b16 %v3616
        %v3864 = vunpack.c.l.b16 %v3617
        %v3865 = vunpack.c.l.b16 %v3618
        %v3866 = vpack.c.b16 %v3771, %v3770
        %v3867 = vpack.c.b16 %v3773, %v3772
        %v3868 = vpack.c.b16 %v3775, %v3774
        %v3869 = vpack.c.b16 %v3777, %v3776
        %v3870 = vpack.c.b16 %v3779, %v3778
        %v3871 = vpack.c.b16 %v3781, %v3780
        %v3872 = vpack.c.b16 %v3783, %v3782
        %v3873 = vpack.c.b16 %v3785, %v3784
        %v3874 = vpack.c.b16 %v3787, %v3786
        %v3875 = vpack.c.b16 %v3789, %v3788
        %v3876 = vpack.c.b16 %v3791, %v3790
        %v3877 = vpack.c.b16 %v3793, %v3792
        %v3878 = vpack.c.b16 %v3795, %v3794
        %v3879 = vpack.c.b16 %v3797, %v3796
        %v3880 = vpack.c.b16 %v3799, %v3798
        %v3881 = vpack.c.b16 %v3801, %v3800
        %v3882 = vpack.c.b16 %v3803, %v3802
        %v3883 = vpack.c.b16 %v3805, %v3804
        %v3884 = vpack.c.b16 %v3807, %v3806
        %v3885 = vpack.c.b16 %v3809, %v3808
        %v3886 = vpack.c.b16 %v3811, %v3810
        %v3887 = vpack.c.b16 %v3813, %v3812
        %v3888 = vpack.c.b16 %v3815, %v3814
        %v3889 = vpack.c.b16 %v3817, %v3816
        %v3890 = vpack.c.b16 %v3819, %v3818
        %v3891 = vpack.c.b16 %v3821, %v3820
        %v3892 = vpack.c.b16 %v3823, %v3822
        %v3893 = vpack.c.b16 %v3825, %v3824
        %v3894 = vpack.c.b16 %v3827, %v3826
        %v3895 = vpack.c.b16 %v3829, %v3828
        %v3896 = vpack.c.b16 %v3831, %v3830
        %v3897 = vpack.c.b16 %v3833, %v3832
        %v3898 = vpack.c.b16 %v3835, %v3834
        %v3899 = vpack.c.b16 %v3837, %v3836
        %v3900 = vpack.c.b16 %v3839, %v3838
        %v3901 = vpack.c.b16 %v3841, %v3840
        %v3902 = vpack.c.b16 %v3843, %v3842
        %v3903 = vpack.c.b16 %v3845, %v3844
        %v3904 = vpack.c.b16 %v3847, %v3846
        %v3905 = vpack.c.b16 %v3849, %v3848
        %v3906 = vpack.c.b16 %v3851, %v3850
        %v3907 = vpack.c.b16 %v3853, %v3852
        %v3908 = vpack.c.b16 %v3855, %v3854
        %v3909 = vpack.c.b16 %v3857, %v3856
        %v3910 = vpack.c.b16 %v3859, %v3858
        %v3911 = vpack.c.b16 %v3861, %v3860
        %v3912 = vpack.c.b16 %v3863, %v3862
        %v3913 = vpack.c.b16 %v3865, %v3864
        %3962 = vmatprep.subr.bf16.mxu0 0
        %3963 = vmatpush1.bf16.msra.mxu0 %v3866
        %3964 = vmatprep.subr.bf16.mxu0 0
        %3965 = vmatpush1.bf16.msra.mxu0 %v3867
        %3966 = vmatprep.subr.bf16.mxu0 0
        %3967 = vmatpush1.bf16.msra.mxu0 %v3868
        %3968 = vmatprep.subr.bf16.mxu0 0
        %3969 = vmatpush1.bf16.msra.mxu0 %v3869
        %3970 = vmatprep.subr.bf16.mxu0 0
        %3971 = vmatpush1.bf16.msra.mxu0 %v3870
        %3972 = vmatprep.subr.bf16.mxu0 0
        %3973 = vmatpush1.bf16.msra.mxu0 %v3871
        %3974 = vmatprep.subr.bf16.mxu0 0
        %3975 = vmatpush1.bf16.msra.mxu0 %v3872
        %3976 = vmatprep.subr.bf16.mxu0 0
        %3977 = vmatpush1.bf16.msra.mxu0 %v3873
        %3978 = vmatprep.subr.bf16.mxu0 0
        %3979 = vmatpush1.bf16.msra.mxu0 %v3874
        %3980 = vmatprep.subr.bf16.mxu0 0
        %3981 = vmatpush1.bf16.msra.mxu0 %v3875
        %3982 = vmatprep.subr.bf16.mxu0 0
        %3983 = vmatpush1.bf16.msra.mxu0 %v3876
        %3984 = vmatprep.subr.bf16.mxu0 0
        %3985 = vmatpush1.bf16.msra.mxu0 %v3877
        %3986 = vmatprep.subr.bf16.mxu0 0
        %3987 = vmatpush1.bf16.msra.mxu0 %v3878
        %3988 = vmatprep.subr.bf16.mxu0 0
        %3989 = vmatpush1.bf16.msra.mxu0 %v3879
        %3990 = vmatprep.subr.bf16.mxu0 0
        %3991 = vmatpush1.bf16.msra.mxu0 %v3880
        %3992 = vmatprep.subr.bf16.mxu0 0
        %3993 = vmatpush1.bf16.msra.mxu0 %v3881
        %3994 = vmatprep.mubr.bf16.mxu0 %v3620
        %3995 = vmatmul.mubr.bf16.gmra.mrb[0].mxu0 %v3619
        %v3996 = vpop.f32.mrb[0].mxu0
        %v3997 = vadd.f32 %v3672, %v3996
        %v3998 = vpop.f32.mrb[0].mxu0
        %v3999 = vpop.f32.mrb[0].mxu0
        %v4000 = vadd.f32 %v3672, %v3999
        %v4001 = vpop.f32.mrb[0].mxu0
        %4002 = vmatprep.mubr.bf16.mxu0 %v3626
        %4003 = vmatmul.mubr.bf16.gmra.mrb[0].mxu0 %v3625
        %v4004 = vpop.f32.mrb[0].mxu0
        %v4005 = vadd.f32 %v3672, %v4004
        %v4006 = vpop.f32.mrb[0].mxu0
        %v4007 = vpop.f32.mrb[0].mxu0
        %v4008 = vadd.f32 %v3672, %v4007
        %v4009 = vpop.f32.mrb[0].mxu0
        %4010 = vmatprep.mubr.bf16.mxu0 %v3632
        %4011 = vmatmul.mubr.bf16.gmra.mrb[0].mxu0 %v3631
        %v4012 = vpop.f32.mrb[0].mxu0
        %v4013 = vadd.f32 %v3672, %v4012
        %v4014 = vpop.f32.mrb[0].mxu0
        %v4015 = vpop.f32.mrb[0].mxu0
        %v4016 = vadd.f32 %v3672, %v4015
        %v4017 = vpop.f32.mrb[0].mxu0
        %4018 = vmatprep.mubr.bf16.mxu0 %v3638
        %4019 = vmatmul.mubr.bf16.gmra.mrb[0].mxu0 %v3637
        %v4020 = vpop.f32.mrb[0].mxu0
        %v4021 = vadd.f32 %v3672, %v4020
        %v4022 = vpop.f32.mrb[0].mxu0
        %v4023 = vpop.f32.mrb[0].mxu0
        %v4024 = vadd.f32 %v3672, %v4023
        %v4025 = vpop.f32.mrb[0].mxu0
        %4026 = vmatprep.mubr.bf16.mxu0 %v3644
        %4027 = vmatmul.mubr.bf16.gmra.mrb[0].mxu0 %v3643
        %v4028 = vpop.f32.mrb[0].mxu0
        %v4029 = vadd.f32 %v3672, %v4028
        %v4030 = vpop.f32.mrb[0].mxu0
        %v4031 = vpop.f32.mrb[0].mxu0
        %v4032 = vadd.f32 %v3672, %v4031
        %v4033 = vpop.f32.mrb[0].mxu0
        %4034 = vmatprep.mubr.bf16.mxu0 %v3650
        %4035 = vmatmul.mubr.bf16.gmra.mrb[0].mxu0 %v3649
        %v4036 = vpop.f32.mrb[0].mxu0
        %v4037 = vadd.f32 %v3672, %v4036
        %v4038 = vpop.f32.mrb[0].mxu0
        %v4039 = vpop.f32.mrb[0].mxu0
        %v4040 = vadd.f32 %v3672, %v4039
        %v4041 = vpop.f32.mrb[0].mxu0
        %4042 = vmatprep.mubr.bf16.mxu0 %v3656
        %4043 = vmatmul.mubr.bf16.gmra.mrb[0].mxu0 %v3655
        %v4044 = vpop.f32.mrb[0].mxu0
        %v4045 = vadd.f32 %v3672, %v4044
        %v4046 = vpop.f32.mrb[0].mxu0
        %v4047 = vpop.f32.mrb[0].mxu0
        %v4048 = vadd.f32 %v3672, %v4047
        %v4049 = vpop.f32.mrb[0].mxu0
        %4050 = vmatprep.mubr.bf16.mxu0 %v3662
        %4051 = vmatmul.mubr.bf16.gmra.mrb[0].mxu0 %v3661
        %v4052 = vpop.f32.mrb[0].mxu0
        %v4053 = vadd.f32 %v3672, %v4052
        %v4054 = vpop.f32.mrb[0].mxu0
        %v4055 = vpop.f32.mrb[0].mxu0
        %v4056 = vadd.f32 %v3672, %v4055
        %v4057 = vpop.f32.mrb[0].mxu0
        %4058 = vdwg.mxu0
        %4059 = vmatprep.subr.bf16.mxu0 0
        %4060 = vmatpush1.bf16.msra.mxu0 %v3882
        %4061 = vmatprep.subr.bf16.mxu0 0
        %4062 = vmatpush1.bf16.msra.mxu0 %v3883
        %4063 = vmatprep.subr.bf16.mxu0 0
        %4064 = vmatpush1.bf16.msra.mxu0 %v3884
        %4065 = vmatprep.subr.bf16.mxu0 0
        %4066 = vmatpush1.bf16.msra.mxu0 %v3885
        %4067 = vmatprep.subr.bf16.mxu0 0
        %4068 = vmatpush1.bf16.msra.mxu0 %v3886
        %4069 = vmatprep.subr.bf16.mxu0 0
        %4070 = vmatpush1.bf16.msra.mxu0 %v3887
        %4071 = vmatprep.subr.bf16.mxu0 0
        %4072 = vmatpush1.bf16.msra.mxu0 %v3888
        %4073 = vmatprep.subr.bf16.mxu0 0
        %4074 = vmatpush1.bf16.msra.mxu0 %v3889
        %4075 = vmatprep.subr.bf16.mxu0 0
        %4076 = vmatpush1.bf16.msra.mxu0 %v3890
        %4077 = vmatprep.subr.bf16.mxu0 0
        %4078 = vmatpush1.bf16.msra.mxu0 %v3891
        %4079 = vmatprep.subr.bf16.mxu0 0
        %4080 = vmatpush1.bf16.msra.mxu0 %v3892
        %4081 = vmatprep.subr.bf16.mxu0 0
        %4082 = vmatpush1.bf16.msra.mxu0 %v3893
        %4083 = vmatprep.subr.bf16.mxu0 0
        %4084 = vmatpush1.bf16.msra.mxu0 %v3894
        %4085 = vmatprep.subr.bf16.mxu0 0
        %4086 = vmatpush1.bf16.msra.mxu0 %v3895
        %4087 = vmatprep.subr.bf16.mxu0 0
        %4088 = vmatpush1.bf16.msra.mxu0 %v3896
        %4089 = vmatprep.subr.bf16.mxu0 0
        %4090 = vmatpush1.bf16.msra.mxu0 %v3897
        %4091 = vmatprep.mubr.bf16.mxu0 %v3622
        %4092 = vmatmul.mubr.bf16.gmra.mrb[0].mxu0 %v3621
        %v4093 = vpop.f32.mrb[0].mxu0
        %v4094 = vadd.f32 %v3997, %v4093
        %v4095 = vpop.f32.mrb[0].mxu0
        %v4096 = vpop.f32.mrb[0].mxu0
        %v4097 = vadd.f32 %v4000, %v4096
        %v4098 = vpop.f32.mrb[0].mxu0
        %4099 = vmatprep.mubr.bf16.mxu0 %v3628
        %4100 = vmatmul.mubr.bf16.gmra.mrb[0].mxu0 %v3627
        %v4101 = vpop.f32.mrb[0].mxu0
        %v4102 = vadd.f32 %v4005, %v4101
        %v4103 = vpop.f32.mrb[0].mxu0
        %v4104 = vpop.f32.mrb[0].mxu0
        %v4105 = vadd.f32 %v4008, %v4104
        %v4106 = vpop.f32.mrb[0].mxu0
        %4107 = vmatprep.mubr.bf16.mxu0 %v3634
        %4108 = vmatmul.mubr.bf16.gmra.mrb[0].mxu0 %v3633
        %v4109 = vpop.f32.mrb[0].mxu0
        %v4110 = vadd.f32 %v4013, %v4109
        %v4111 = vpop.f32.mrb[0].mxu0
        %v4112 = vpop.f32.mrb[0].mxu0
        %v4113 = vadd.f32 %v4016, %v4112
        %v4114 = vpop.f32.mrb[0].mxu0
        %4115 = vmatprep.mubr.bf16.mxu0 %v3640
        %4116 = vmatmul.mubr.bf16.gmra.mrb[0].mxu0 %v3639
        %v4117 = vpop.f32.mrb[0].mxu0
        %v4118 = vadd.f32 %v4021, %v4117
        %v4119 = vpop.f32.mrb[0].mxu0
        %v4120 = vpop.f32.mrb[0].mxu0
        %v4121 = vadd.f32 %v4024, %v4120
        %v4122 = vpop.f32.mrb[0].mxu0
        %4123 = vmatprep.mubr.bf16.mxu0 %v3646
        %4124 = vmatmul.mubr.bf16.gmra.mrb[0].mxu0 %v3645
        %v4125 = vpop.f32.mrb[0].mxu0
        %v4126 = vadd.f32 %v4029, %v4125
        %v4127 = vpop.f32.mrb[0].mxu0
        %v4128 = vpop.f32.mrb[0].mxu0
        %v4129 = vadd.f32 %v4032, %v4128
        %v4130 = vpop.f32.mrb[0].mxu0
        %4131 = vmatprep.mubr.bf16.mxu0 %v3652
        %4132 = vmatmul.mubr.bf16.gmra.mrb[0].mxu0 %v3651
        %v4133 = vpop.f32.mrb[0].mxu0
        %v4134 = vadd.f32 %v4037, %v4133
        %v4135 = vpop.f32.mrb[0].mxu0
        %v4136 = vpop.f32.mrb[0].mxu0
        %v4137 = vadd.f32 %v4040, %v4136
        %v4138 = vpop.f32.mrb[0].mxu0
        %4139 = vmatprep.mubr.bf16.mxu0 %v3658
        %4140 = vmatmul.mubr.bf16.gmra.mrb[0].mxu0 %v3657
        %v4141 = vpop.f32.mrb[0].mxu0
        %v4142 = vadd.f32 %v4045, %v4141
        %v4143 = vpop.f32.mrb[0].mxu0
        %v4144 = vpop.f32.mrb[0].mxu0
        %v4145 = vadd.f32 %v4048, %v4144
        %v4146 = vpop.f32.mrb[0].mxu0
        %4147 = vmatprep.mubr.bf16.mxu0 %v3664
        %4148 = vmatmul.mubr.bf16.gmra.mrb[0].mxu0 %v3663
        %v4149 = vpop.f32.mrb[0].mxu0
        %v4150 = vadd.f32 %v4053, %v4149
        %v4151 = vpop.f32.mrb[0].mxu0
        %v4152 = vpop.f32.mrb[0].mxu0
        %v4153 = vadd.f32 %v4056, %v4152
        %v4154 = vpop.f32.mrb[0].mxu0
        %4155 = vdwg.mxu0
        %4156 = vmatprep.subr.bf16.mxu0 0
        %4157 = vmatpush1.bf16.msra.mxu0 %v3898
        %4158 = vmatprep.subr.bf16.mxu0 0
        %4159 = vmatpush1.bf16.msra.mxu0 %v3899
        %4160 = vmatprep.subr.bf16.mxu0 0
        %4161 = vmatpush1.bf16.msra.mxu0 %v3900
        %4162 = vmatprep.subr.bf16.mxu0 0
        %4163 = vmatpush1.bf16.msra.mxu0 %v3901
        %4164 = vmatprep.subr.bf16.mxu0 0
        %4165 = vmatpush1.bf16.msra.mxu0 %v3902
        %4166 = vmatprep.subr.bf16.mxu0 0
        %4167 = vmatpush1.bf16.msra.mxu0 %v3903
        %4168 = vmatprep.subr.bf16.mxu0 0
        %4169 = vmatpush1.bf16.msra.mxu0 %v3904
        %4170 = vmatprep.subr.bf16.mxu0 0
        %4171 = vmatpush1.bf16.msra.mxu0 %v3905
        %4172 = vmatprep.subr.bf16.mxu0 0
        %4173 = vmatpush1.bf16.msra.mxu0 %v3906
        %4174 = vmatprep.subr.bf16.mxu0 0
        %4175 = vmatpush1.bf16.msra.mxu0 %v3907
        %4176 = vmatprep.subr.bf16.mxu0 0
        %4177 = vmatpush1.bf16.msra.mxu0 %v3908
        %4178 = vmatprep.subr.bf16.mxu0 0
        %4179 = vmatpush1.bf16.msra.mxu0 %v3909
        %4180 = vmatprep.subr.bf16.mxu0 0
        %4181 = vmatpush1.bf16.msra.mxu0 %v3910
        %4182 = vmatprep.subr.bf16.mxu0 0
        %4183 = vmatpush1.bf16.msra.mxu0 %v3911
        %4184 = vmatprep.subr.bf16.mxu0 0
        %4185 = vmatpush1.bf16.msra.mxu0 %v3912
        %4186 = vmatprep.subr.bf16.mxu0 0
        %4187 = vmatpush1.bf16.msra.mxu0 %v3913
        %4188 = vmatprep.mubr.bf16.mxu0 %v3624
        %4189 = vmatmul.mubr.bf16.gmra.mrb[0].mxu0 %v3623
        %v4190 = vpop.f32.mrb[0].mxu0
        %v4191 = vadd.f32 %v4094, %v4190
        %v4192 = vpop.f32.mrb[0].mxu0
        %v4193 = vpop.f32.mrb[0].mxu0
        %v4194 = vadd.f32 %v4097, %v4193
        %v4195 = vpop.f32.mrb[0].mxu0
        %4196 = vmatprep.mubr.bf16.mxu0 %v3630
        %4197 = vmatmul.mubr.bf16.gmra.mrb[0].mxu0 %v3629
        %v4198 = vpop.f32.mrb[0].mxu0
        %v4199 = vadd.f32 %v4102, %v4198
        %v4200 = vpop.f32.mrb[0].mxu0
        %v4201 = vpop.f32.mrb[0].mxu0
        %v4202 = vadd.f32 %v4105, %v4201
        %v4203 = vpop.f32.mrb[0].mxu0
        %4204 = vmatprep.mubr.bf16.mxu0 %v3636
        %4205 = vmatmul.mubr.bf16.gmra.mrb[0].mxu0 %v3635
        %v4206 = vpop.f32.mrb[0].mxu0
        %v4207 = vadd.f32 %v4110, %v4206
        %v4208 = vpop.f32.mrb[0].mxu0
        %v4209 = vpop.f32.mrb[0].mxu0
        %v4210 = vadd.f32 %v4113, %v4209
        %v4211 = vpop.f32.mrb[0].mxu0
        %4212 = vmatprep.mubr.bf16.mxu0 %v3642
        %4213 = vmatmul.mubr.bf16.gmra.mrb[0].mxu0 %v3641
        %v4214 = vpop.f32.mrb[0].mxu0
        %v4215 = vadd.f32 %v4118, %v4214
        %v4216 = vpop.f32.mrb[0].mxu0
        %v4217 = vpop.f32.mrb[0].mxu0
        %v4218 = vadd.f32 %v4121, %v4217
        %v4219 = vpop.f32.mrb[0].mxu0
        %4220 = vmatprep.mubr.bf16.mxu0 %v3648
        %4221 = vmatmul.mubr.bf16.gmra.mrb[0].mxu0 %v3647
        %v4222 = vpop.f32.mrb[0].mxu0
        %v4223 = vadd.f32 %v4126, %v4222
        %v4224 = vpop.f32.mrb[0].mxu0
        %v4225 = vpop.f32.mrb[0].mxu0
        %v4226 = vadd.f32 %v4129, %v4225
        %v4227 = vpop.f32.mrb[0].mxu0
        %4228 = vmatprep.mubr.bf16.mxu0 %v3654
        %4229 = vmatmul.mubr.bf16.gmra.mrb[0].mxu0 %v3653
        %v4230 = vpop.f32.mrb[0].mxu0
        %v4231 = vadd.f32 %v4134, %v4230
        %v4232 = vpop.f32.mrb[0].mxu0
        %v4233 = vpop.f32.mrb[0].mxu0
        %v4234 = vadd.f32 %v4137, %v4233
        %v4235 = vpop.f32.mrb[0].mxu0
        %4236 = vmatprep.mubr.bf16.mxu0 %v3660
        %4237 = vmatmul.mubr.bf16.gmra.mrb[0].mxu0 %v3659
        %v4238 = vpop.f32.mrb[0].mxu0
        %v4239 = vadd.f32 %v4142, %v4238
        %v4240 = vpop.f32.mrb[0].mxu0
        %v4241 = vpop.f32.mrb[0].mxu0
        %v4242 = vadd.f32 %v4145, %v4241
        %v4243 = vpop.f32.mrb[0].mxu0
        %4244 = vmatprep.mubr.bf16.mxu0 %v3666
        %4245 = vmatmul.mubr.bf16.gmra.mrb[0].mxu0 %v3665
        %v4246 = vpop.f32.mrb[0].mxu0
        %v4247 = vadd.f32 %v4150, %v4246
        %v4248 = vpop.f32.mrb[0].mxu0
        %v4249 = vpop.f32.mrb[0].mxu0
        %v4250 = vadd.f32 %v4153, %v4249
        %v4251 = vpop.f32.mrb[0].mxu0
        %4252 = vdwg.mxu0
        %vm4253 = vcmask 261120
        %v4254 = vsel %vm4253, %v4191, -inf
        %v4255 = vrot.slane %v4254, 4
        %v4256 = vmax.f32 %v4254, %v4255
        %v4257 = vrot.slane %v4256, 2
        %v4258 = vmax.f32 %v4256, %v4257
        %v4259 = vrot.slane %v4258, 1
        %v4260 = vmax.f32 %v4258, %v4259
        %v4261 = vsel %vm4253, %v4194, -inf
        %v4262 = vrot.slane %v4261, 4
        %v4263 = vmax.f32 %v4261, %v4262
        %v4264 = vrot.slane %v4263, 2
        %v4265 = vmax.f32 %v4263, %v4264
        %v4266 = vrot.slane %v4265, 1
        %v4267 = vmax.f32 %v4265, %v4266
        %v4268 = vsel %vm4253, %v4199, -inf
        %v4269 = vrot.slane %v4268, 4
        %v4270 = vmax.f32 %v4268, %v4269
        %v4271 = vrot.slane %v4270, 2
        %v4272 = vmax.f32 %v4270, %v4271
        %v4273 = vrot.slane %v4272, 1
        %v4274 = vmax.f32 %v4272, %v4273
        %v4275 = vsel %vm4253, %v4202, -inf
        %v4276 = vrot.slane %v4275, 4
        %v4277 = vmax.f32 %v4275, %v4276
        %v4278 = vrot.slane %v4277, 2
        %v4279 = vmax.f32 %v4277, %v4278
        %v4280 = vrot.slane %v4279, 1
        %v4281 = vmax.f32 %v4279, %v4280
        %v4282 = vsel %vm4253, %v4207, -inf
        %v4283 = vrot.slane %v4282, 4
        %v4284 = vmax.f32 %v4282, %v4283
        %v4285 = vrot.slane %v4284, 2
        %v4286 = vmax.f32 %v4284, %v4285
        %v4287 = vrot.slane %v4286, 1
        %v4288 = vmax.f32 %v4286, %v4287
        %v4289 = vsel %vm4253, %v4210, -inf
        %v4290 = vrot.slane %v4289, 4
        %v4291 = vmax.f32 %v4289, %v4290
        %v4292 = vrot.slane %v4291, 2
        %v4293 = vmax.f32 %v4291, %v4292
        %v4294 = vrot.slane %v4293, 1
        %v4295 = vmax.f32 %v4293, %v4294
        %v4296 = vsel %vm4253, %v4215, -inf
        %v4297 = vrot.slane %v4296, 4
        %v4298 = vmax.f32 %v4296, %v4297
        %v4299 = vrot.slane %v4298, 2
        %v4300 = vmax.f32 %v4298, %v4299
        %v4301 = vrot.slane %v4300, 1
        %v4302 = vmax.f32 %v4300, %v4301
        %v4303 = vsel %vm4253, %v4218, -inf
        %v4304 = vrot.slane %v4303, 4
        %v4305 = vmax.f32 %v4303, %v4304
        %v4306 = vrot.slane %v4305, 2
        %v4307 = vmax.f32 %v4305, %v4306
        %v4308 = vrot.slane %v4307, 1
        %v4309 = vmax.f32 %v4307, %v4308
        %v4310 = vsel %vm4253, %v4223, -inf
        %v4311 = vrot.slane %v4310, 4
        %v4312 = vmax.f32 %v4310, %v4311
        %v4313 = vrot.slane %v4312, 2
        %v4314 = vmax.f32 %v4312, %v4313
        %v4315 = vrot.slane %v4314, 1
        %v4316 = vmax.f32 %v4314, %v4315
        %v4317 = vsel %vm4253, %v4226, -inf
        %v4318 = vrot.slane %v4317, 4
        %v4319 = vmax.f32 %v4317, %v4318
        %v4320 = vrot.slane %v4319, 2
        %v4321 = vmax.f32 %v4319, %v4320
        %v4322 = vrot.slane %v4321, 1
        %v4323 = vmax.f32 %v4321, %v4322
        %v4324 = vsel %vm4253, %v4231, -inf
        %v4325 = vrot.slane %v4324, 4
        %v4326 = vmax.f32 %v4324, %v4325
        %v4327 = vrot.slane %v4326, 2
        %v4328 = vmax.f32 %v4326, %v4327
        %v4329 = vrot.slane %v4328, 1
        %v4330 = vmax.f32 %v4328, %v4329
        %v4331 = vsel %vm4253, %v4234, -inf
        %v4332 = vrot.slane %v4331, 4
        %v4333 = vmax.f32 %v4331, %v4332
        %v4334 = vrot.slane %v4333, 2
        %v4335 = vmax.f32 %v4333, %v4334
        %v4336 = vrot.slane %v4335, 1
        %v4337 = vmax.f32 %v4335, %v4336
        %v4338 = vsel %vm4253, %v4239, -inf
        %v4339 = vrot.slane %v4338, 4
        %v4340 = vmax.f32 %v4338, %v4339
        %v4341 = vrot.slane %v4340, 2
        %v4342 = vmax.f32 %v4340, %v4341
        %v4343 = vrot.slane %v4342, 1
        %v4344 = vmax.f32 %v4342, %v4343
        %v4345 = vsel %vm4253, %v4242, -inf
        %v4346 = vrot.slane %v4345, 4
        %v4347 = vmax.f32 %v4345, %v4346
        %v4348 = vrot.slane %v4347, 2
        %v4349 = vmax.f32 %v4347, %v4348
        %v4350 = vrot.slane %v4349, 1
        %v4351 = vmax.f32 %v4349, %v4350
        %v4352 = vsel %vm4253, %v4247, -inf
        %v4353 = vrot.slane %v4352, 4
        %v4354 = vmax.f32 %v4352, %v4353
        %v4355 = vrot.slane %v4354, 2
        %v4356 = vmax.f32 %v4354, %v4355
        %v4357 = vrot.slane %v4356, 1
        %v4358 = vmax.f32 %v4356, %v4357
        %v4359 = vsel %vm4253, %v4250, -inf
        %v4360 = vrot.slane %v4359, 4
        %v4361 = vmax.f32 %v4359, %v4360
        %v4362 = vrot.slane %v4361, 2
        %v4363 = vmax.f32 %v4361, %v4362
        %v4364 = vrot.slane %v4363, 1
        %v4365 = vmax.f32 %v4363, %v4364
        %vm4382 = vcmask 1041409
        %v4383 = vsel %vm4382, %v4267, %v4260
        %vm4384 = vcmask 1042434
        %v4385 = vsel %vm4384, %v4274, %v4383
        %vm4386 = vcmask 1043459
        %v4387 = vsel %vm4386, %v4281, %v4385
        %vm4388 = vcmask 1044484
        %v4389 = vsel %vm4388, %v4288, %v4387
        %vm4390 = vcmask 1045509
        %v4391 = vsel %vm4390, %v4295, %v4389
        %vm4392 = vcmask 1046534
        %v4393 = vsel %vm4392, %v4302, %v4391
        %vm4394 = vcmask 1047559
        %v4395 = vsel %vm4394, %v4309, %v4393
        %v4396 = vsel %vm4382, %v4323, %v4316
        %v4397 = vsel %vm4384, %v4330, %v4396
        %v4398 = vsel %vm4386, %v4337, %v4397
        %v4399 = vsel %vm4388, %v4344, %v4398
        %v4400 = vsel %vm4390, %v4351, %v4399
        %v4401 = vsel %vm4392, %v4358, %v4400
        %v4402 = vsel %vm4394, %v4365, %v4401
        %4405 = vst.msk [vmem:[%s264] sm:$0xff] %vm4253, %v4395
        %4406 = vst.msk [vmem:[%s264 + $0x8] sm:$0xff] %vm4253, %v4402
        %p4407 = scmp.lt.s32.totalorder %s18, 1
        %s4408 = scalar_select %p4407, %s18, 1
        %s4409 = smul.addr %s4408, 2
        %s4410 = smul.addr %s4409, 8
        %s4411 = scalar_lea.vmem %s5, %s4410
        // Predicated region
        $region53: #{mask_mamba_forward.4} parent=39 // pred_check
          %p4412 = pneg %p146
        $region54: #{mask_mamba_forward.4} parent=39 // pred_check_branch
          %4414 = sbr.rel (%p4412) target = $region56
        $region55: #{mask_mamba_forward.4} parent=39 // pred_region
          _
        $region56: #{mask_mamba_forward.4} parent=39 // pred_fallthru
          _
      $region40: #{mask_mamba_forward.4} parent=5 // pred_fallthru
        _
      %p4415 = scmp.le.s32.totalorder 2, %s13
      // Predicated region
      $region57: #{mask_mamba_forward.4} parent=5 // pred_check
        %p4416 = pneg %p4415
      $region58: #{mask_mamba_forward.4} parent=5 // pred_check_branch
        %4418 = sbr.rel (%p4416) target = $region60
      $region59: #{mask_mamba_forward.4} parent=5 // pred_region
        %s4419 = ssub.s32 %s13, 2
        // Predicated region
        $region61: #{mask_mamba_forward.4} parent=59 // pred_check
          %p4420 = pneg %p152
        $region62: #{mask_mamba_forward.4} parent=59 // pred_check_branch
          %4422 = sbr.rel (%p4420) target = $region64
        $region63: #{mask_mamba_forward.4} parent=59 // pred_region
          %p4423 = scmp.lt.s32.totalorder %s19, 1
          %s4424 = scalar_select %p4423, %s19, 1
          %s4425 = smul.addr %s4424, 2
          %s4426 = smul.addr %s4425, 8
          %s4427 = scalar_lea.vmem %s5, %s4426
        $region64: #{mask_mamba_forward.4} parent=59 // pred_fallthru
          _
      $region60: #{mask_mamba_forward.4} parent=5 // pred_fallthru
        _
    $region6: #{mask_mamba_forward.4} parent=1 // loop_footer
      %s17 = sadd.s32 1, %s13
    $region7: #{mask_mamba_forward.4} parent=1 // loop_footer_branch
      %12 = sbr.rel target = $region3
    $region8: #{mask_mamba_forward.4} parent=1 // loop_exit
      _
    %4428 = vsyncpa [#allocation3], 1
    %s4429 = scalar_lea.sflag [#allocation3], 1
    %4430 = vsyncpa %s4429, 1
    %4431 = vsyncpa [#allocation5], 1

</llo_original>
